<compile_context>
chip_gen: v6e
topology: v6e:2x2x1
jax: 0.10.0
libtpu: 0.0.40
codegen_flags: <defaults>
</compile_context>

<pallas_src>
import jax
import jax.numpy as jnp
from jax.experimental import pallas as pl
from jax.experimental.pallas import tpu as pltpu


# ----------------------------------------------------------------------------
# Fused kernel.  Row layout everywhere: rows [0:Bh] = forward direction (real
# batch in rows [0:B]), rows [Bh:Bp] = backward direction.  Sequences are stored
# time-major as (T*Bp, .) 2-D arrays (one Bp-row block per time step).
# ----------------------------------------------------------------------------
def elmo_fused_kernel(x1_ref, w1ih_ref, w1hh_ref, b1_ref,
                      w2ih_ref, w2hh_ref, b2_ref,
                      wcm_ref, whhc_ref, bc_ref,
                      wfc_ref, bfc_ref,
                      maskh_ref, mask4_ref,
                      out_ref,
                      pre_scr, h1_scr, h2_scr):
    f32 = jnp.float32
    bf16 = jnp.bfloat16
    Bp = out_ref.shape[0]
    Bh = Bp // 2
    H = whhc_ref.shape[0]
    T = x1_ref.shape[0] // Bp

    # (Bp, 2H) 0/1 mask: fwd rows keep lanes [0:H], bwd rows keep lanes [H:2H]
    maskh = maskh_ref[0:Bp, :]

    def packed_lstm(whh_pk, h_scr):
        """Fused fwd+bwd recurrence over the pre-gates in pre_scr.  The packed hidden
        (Bp, 2H) holds h in lanes [0:H] for fwd rows / [H:2H] for bwd rows (zeros in
        the other half), so one (Bp,2H)x(2H,4H) bf16 matmul against the K-stacked
        W_hh computes both directions' gates.  Per-direction h is stored per step."""
        h_pk = jnp.zeros((Bp, 2 * H), bf16)
        c = jnp.zeros((Bp, H), f32)
        for t in range(T):
            sl = slice(t * Bp, (t + 1) * Bp)
            gates = pre_scr[sl, :] + jnp.dot(h_pk, whh_pk, preferred_element_type=f32)
            sig = jax.nn.sigmoid(gates)                    # one full-width (Bp,4H) EUP pass
            th = jnp.tanh(gates)                           # one full-width (Bp,4H) EUP pass
            c = sig[:, H:2 * H] * c + sig[:, 0:H] * th[:, 2 * H:3 * H]
            h = sig[:, 3 * H:4 * H] * jnp.tanh(c)
            h_scr[sl, :] = h
            h_pk = (jnp.concatenate([h, h], axis=1) * maskh).astype(bf16)

    # ---- layer 1: hoisted K-stacked bf16 input projection + packed recurrence ----
    pre_scr[...] = (jnp.dot(x1_ref[...], w1ih_ref[...], preferred_element_type=f32)
                    + b1_ref[...])
    packed_lstm(w1hh_ref[...], h1_scr)

    # ---- layer 2: fwd rows consume outf1[t]; bwd rows consume the time-reversed
    #      layer-1 bwd sequence outb1_raw[T-1-t] (== torch.flip(outb1, [1])[t]). ----
    h1_all = h1_scr[...]                                          # (T*Bp, H) f32
    h1_rev = jnp.concatenate(
        [h1_scr[slice((T - 1 - t) * Bp, (T - t) * Bp), :] for t in range(T)], axis=0)
    x2 = (jnp.concatenate([h1_all, h1_rev], axis=1) * maskh_ref[...]).astype(bf16)
    pre_scr[...] = (jnp.dot(x2, w2ih_ref[...], preferred_element_type=f32)
                    + b2_ref[...])
    packed_lstm(w2hh_ref[...], h2_scr)

    # ---- classifier pre-gates: softmax(lamdas) is folded into wcm (wrapper), so the
    #      layer mix + split cat([fwd,bwd]) @ W_ih collapse into ONE 128-K matmul:
    #        fwd rows of xm = [h1 | h2 | 0 | 0],  bwd rows = [0 | 0 | h1 | h2]
    #        wcm            = [[l0*Wc_f], [l1*Wc_f], [l0*Wc_b], [l1*Wc_b]]           ----
    h2_all = h2_scr[...]
    xm = (jnp.concatenate([h1_all, h2_all, h1_all, h2_all], axis=1)
          * mask4_ref[...]).astype(bf16)
    P = jnp.dot(xm, wcm_ref[...], preferred_element_type=f32)     # (T*Bp, 4H) f32
    bc = bc_ref[...]
    # Time-order bookkeeping (review concern): rows [0:Bh] of P[t] hold
    # (l0*outf1[t] + l1*outf2[t]) @ Wc_f, and rows [Bh:Bp] of P[T-1-t] hold
    # (l0*outb1_raw[T-1-t] + l1*outb2_raw[T-1-t]) @ Wc_b, i.e. exactly the projection
    # of combined_out[t] = l0*net_out1[t] + l1*net_out2[t] (both backward terms are
    # the FLIPPED sequences evaluated at index t, as in the PyTorch reference).
    for t in range(T):
        a = P[t * Bp:(t + 1) * Bp, :]
        b = P[(T - 1 - t) * Bp:(T - t) * Bp, :]
        b_sh = pltpu.roll(b, shift=Bh, axis=0)      # bwd band -> rows [0:Bh]; rest junk
        pre_scr[t * Bp:(t + 1) * Bp, :] = a + b_sh + bc

    # ---- classifier LSTM (rows [0:B] real; padded rows carry harmless finite junk) ----
    whhc = whhc_ref[...]
    h_c = jnp.zeros((Bp, H), f32)
    c_c = jnp.zeros((Bp, H), f32)
    for t in range(T):
        sl = slice(t * Bp, (t + 1) * Bp)
        gates = pre_scr[sl, :] + jnp.dot(h_c.astype(bf16), whhc,
                                         preferred_element_type=f32)
        sig = jax.nn.sigmoid(gates)
        th = jnp.tanh(gates)
        c_c = sig[:, H:2 * H] * c_c + sig[:, 0:H] * th[:, 2 * H:3 * H]
        h_c = sig[:, 3 * H:4 * H] * jnp.tanh(c_c)

    # final Linear on the last hidden state (see TODO(synk): in_features=H)
    out_ref[...] = (jnp.dot(h_c, wfc_ref[...], preferred_element_type=f32)
                    + bfc_ref[...])


# ----------------------------------------------------------------------------
# Wrapper: layout plumbing only (time-major packing, per-direction batch pad,
# K-stacked / lambda-folded weights, masks) + one grid-less pallas_call.
# ----------------------------------------------------------------------------
def news_classifier_elmo_forward(xf, xb, params):
    f32, bf16 = jnp.float32, jnp.bfloat16
    B, T, H = xf.shape
    Bh = ((B + 3) // 4) * 4          # per-direction rows; Bp = 2*Bh is sublane aligned
    Bp = 2 * Bh
    C = params["wfc_t"].shape[1]

    def time_major_pad(x):
        x = jnp.transpose(x, (1, 0, 2))                       # (T, B, H)
        return jnp.pad(x, ((0, 0), (0, Bh - B), (0, 0)))      # (T, Bh, H)

    xf_t = time_major_pad(xf)
    xb_t = time_major_pad(xb)
    zT = jnp.zeros((T, Bh, H), f32)
    # packed layer-1 input: fwd rows = [xf | 0], bwd rows = [0 | xb]
    x1 = jnp.concatenate([jnp.concatenate([xf_t, zT], axis=2),
                          jnp.concatenate([zT, xb_t], axis=2)], axis=1)
    x1 = x1.reshape(T * Bp, 2 * H).astype(bf16)

    wih_f1, whh_f1, b_f1 = params["f1"]
    wih_b1, whh_b1, b_b1 = params["b1"]
    wih_f2, whh_f2, b_f2 = params["f2"]
    wih_b2, whh_b2, b_b2 = params["b2"]
    wih_c, whh_c, b_c = params["clf_lstm"]

    kstack = lambda wf, wb: jnp.concatenate([wf, wb], axis=0).astype(bf16)  # (2H, 4H)
    w1ih, w1hh = kstack(wih_f1, wih_b1), kstack(whh_f1, whh_b1)
    w2ih, w2hh = kstack(wih_f2, wih_b2), kstack(whh_f2, whh_b2)

    def bias_full(bf_, bb_):          # per-row-band bias, tiled over time: (T*Bp, 4H)
        b = jnp.concatenate([jnp.tile(bf_, (Bh, 1)), jnp.tile(bb_, (Bh, 1))], axis=0)
        return jnp.tile(b, (T, 1))

    b1_full = bias_full(b_f1, b_b1)
    b2_full = bias_full(b_f2, b_b2)

    # classifier: split W_ih into fwd/bwd halves and fold softmax(lamdas) into them
    lam = jax.nn.softmax(params["lamdas"], axis=-1)
    wc_f, wc_b = wih_c[:H, :], wih_c[H:, :]
    wcm = jnp.concatenate([lam[0] * wc_f, lam[1] * wc_f,
                           lam[0] * wc_b, lam[1] * wc_b], axis=0).astype(bf16)  # (4H,4H)

    ones_h = jnp.ones((Bh, H), f32)
    zer_h = jnp.zeros((Bh, H), f32)
    maskh = jnp.concatenate([jnp.concatenate([ones_h, zer_h], axis=1),
                             jnp.concatenate([zer_h, ones_h], axis=1)], axis=0)   # (Bp,2H)
    mask4 = jnp.concatenate(
        [jnp.concatenate([ones_h, ones_h, zer_h, zer_h], axis=1),
         jnp.concatenate([zer_h, zer_h, ones_h, ones_h], axis=1)], axis=0)         # (Bp,4H)
    maskh_full = jnp.tile(maskh, (T, 1))
    mask4_full = jnp.tile(mask4, (T, 1))

    operands = (x1, w1ih, w1hh, b1_full,
                w2ih, w2hh, b2_full,
                wcm, whh_c.astype(bf16), b_c,
                params["wfc_t"], params["bfc"],
                maskh_full, mask4_full)

    vmem = pl.BlockSpec(memory_space=pltpu.MemorySpace.VMEM)
    out = pl.pallas_call(
        elmo_fused_kernel,
        out_shape=jax.ShapeDtypeStruct((Bp, C), f32),
        in_specs=[vmem] * len(operands),
        out_specs=vmem,
        scratch_shapes=[pltpu.VMEM((T * Bp, 4 * H), f32),   # reused pre-gate scratch
                        pltpu.VMEM((T * Bp, H), f32),       # layer-1 outputs (packed rows)
                        pltpu.VMEM((T * Bp, H), f32)],      # layer-2 outputs (packed rows)
    )(*operands)
    return out[:B]


# ----------------------------------------------------------------------------
# Deterministic parameter init (shapes follow the PyTorch __init__) + f32 reference
# ----------------------------------------------------------------------------
def init_lstm_params(key, d_in, h):
    k1, k2, k3, k4 = jax.random.split(key, 4)
    s = 1.0 / jnp.sqrt(jnp.float32(h))
    w_ih = jax.random.uniform(k1, (4 * h, d_in), minval=-s, maxval=s, dtype=jnp.float32)
    w_hh = jax.random.uniform(k2, (4 * h, h), minval=-s, maxval=s, dtype=jnp.float32)
    b_ih = jax.random.uniform(k3, (4 * h,), minval=-s, maxval=s, dtype=jnp.float32)
    b_hh = jax.random.uniform(k4, (4 * h,), minval=-s, maxval=s, dtype=jnp.float32)
    # pre-transpose for (x @ W^T) as (x @ W_T); fold the two biases together
    return w_ih.T, w_hh.T, (b_ih + b_hh).reshape(1, 4 * h)


def _lstm_ref(x, w_ih_t, w_hh_t, b):
    B, T, _ = x.shape
    H = w_hh_t.shape[0]
    h = jnp.zeros((B, H), jnp.float32)
    c = jnp.zeros((B, H), jnp.float32)
    outs = []
    for t in range(T):
        g = x[:, t, :] @ w_ih_t + h @ w_hh_t + b
        i = jax.nn.sigmoid(g[:, :H])
        f = jax.nn.sigmoid(g[:, H:2 * H])
        gg = jnp.tanh(g[:, 2 * H:3 * H])
        o = jax.nn.sigmoid(g[:, 3 * H:])
        c = f * c + i * gg
        h = o * jnp.tanh(c)
        outs.append(h)
    return jnp.stack(outs, axis=1), h


def reference_forward(xf, xb, params):
    H = xf.shape[2]
    outf1, _ = _lstm_ref(xf, *params["f1"])
    outb1, _ = _lstm_ref(xb, *params["b1"])
    outb1 = outb1[:, ::-1, :]
    net1 = jnp.concatenate([outf1, outb1], axis=2)
    outf2, _ = _lstm_ref(outf1, *params["f2"])
    outb2, _ = _lstm_ref(outb1, *params["b2"])
    outb2 = outb2[:, ::-1, :]
    net2 = jnp.concatenate([outf2, outb2], axis=2)
    lam = jax.nn.softmax(params["lamdas"], axis=-1)
    comb = lam[0] * net1 + lam[1] * net2
    _, h_last = _lstm_ref(comb, *params["clf_lstm"])
    return h_last @ params["wfc_t"] + params["bfc"]


if __name__ == "__main__":
    B, T, H, C = 2, 8, 32, 4   # batch, seq, hidden_size(=embedding_size), num_classes

    root = jax.random.PRNGKey(0)
    keys = jax.random.split(root, 10)

    # inputs (pre-embedded sequences, forward and backward-ordered)
    xf = jax.random.normal(keys[0], (B, T, H), dtype=jnp.float32)
    xb = jax.random.normal(keys[1], (B, T, H), dtype=jnp.float32)

    s_fc = 1.0 / jnp.sqrt(jnp.float32(H))
    params = {
        "f1": init_lstm_params(keys[2], H, H),
        "b1": init_lstm_params(keys[3], H, H),
        "f2": init_lstm_params(keys[4], H, H),
        "b2": init_lstm_params(keys[5], H, H),
        "clf_lstm": init_lstm_params(keys[6], 2 * H, H),
        "lamdas": jax.random.normal(keys[7], (2,), dtype=jnp.float32),
        # see TODO(synk) at top: fc uses in_features=H so the forward is runnable
        "wfc_t": jax.random.uniform(keys[8], (C, H), minval=-s_fc, maxval=s_fc,
                                    dtype=jnp.float32).T,
        "bfc": jax.random.uniform(keys[9], (1, C), minval=-s_fc, maxval=s_fc,
                                  dtype=jnp.float32),
    }

    fwd = jax.jit(news_classifier_elmo_forward)
    logits = fwd(xf, xb, params)
    logits = jax.block_until_ready(logits)
    assert logits.shape == (B, C)
    assert bool(jnp.all(jnp.isfinite(logits)))

    # f32 reference of the (fixed-up) PyTorch forward; bf16 MXU operands in the kernel
    # give small numerical drift, so compare with a loose tolerance.
    ref = reference_forward(xf, xb, params)
    assert float(jnp.max(jnp.abs(logits - ref))) < 1e-1
    print("KERNEL_OK")
</pallas_src>

<mosaic_0001>
module attributes {stable_mosaic.version = 11 : i64} {
  func.func @elmo_fused_kernel(%arg0: memref<64x64xbf16, #tpu.memory_space<vmem>>, %arg1: memref<64x128xbf16, #tpu.memory_space<vmem>>, %arg2: memref<64x128xbf16, #tpu.memory_space<vmem>>, %arg3: memref<64x128xf32, #tpu.memory_space<vmem>>, %arg4: memref<64x128xbf16, #tpu.memory_space<vmem>>, %arg5: memref<64x128xbf16, #tpu.memory_space<vmem>>, %arg6: memref<64x128xf32, #tpu.memory_space<vmem>>, %arg7: memref<128x128xbf16, #tpu.memory_space<vmem>>, %arg8: memref<32x128xbf16, #tpu.memory_space<vmem>>, %arg9: memref<1x128xf32, #tpu.memory_space<vmem>>, %arg10: memref<32x4xf32, #tpu.memory_space<vmem>>, %arg11: memref<1x4xf32, #tpu.memory_space<vmem>>, %arg12: memref<64x64xf32, #tpu.memory_space<vmem>>, %arg13: memref<64x128xf32, #tpu.memory_space<vmem>>, %arg14: memref<8x4xf32, #tpu.memory_space<vmem>>, %arg15: memref<64x128xf32, #tpu.memory_space<vmem>>, %arg16: memref<64x32xf32, #tpu.memory_space<vmem>>, %arg17: memref<64x32xf32, #tpu.memory_space<vmem>>) attributes {dimension_semantics = [], scalar_prefetch = 0 : i64, scratch_operands = 3 : i64, tpu.core_type = #tpu.core_type<tc>} {
    %c0 = arith.constant 0 : index
    %c0_0 = arith.constant 0 : index
    %0 = vector.load %arg12[%c0, %c0_0] : memref<64x64xf32, #tpu.memory_space<vmem>>, vector<8x64xf32>
    %c0_1 = arith.constant 0 : index
    %c0_2 = arith.constant 0 : index
    %1 = vector.load %arg0[%c0_1, %c0_2] : memref<64x64xbf16, #tpu.memory_space<vmem>>, vector<64x64xbf16>
    %c0_3 = arith.constant 0 : index
    %c0_4 = arith.constant 0 : index
    %2 = vector.load %arg1[%c0_3, %c0_4] : memref<64x128xbf16, #tpu.memory_space<vmem>>, vector<64x128xbf16>
    %cst = arith.constant dense<0.000000e+00> : vector<64x128xf32>
    %3 = tpu.matmul %1, %2, %cst {dimension_numbers = #tpu.dot_dimension_numbers<[1], [0], [0], [1], [0, 0, 1, 1], [], []>} : vector<64x64xbf16>, vector<64x128xbf16>, vector<64x128xf32> -> vector<64x128xf32>
    %c0_5 = arith.constant 0 : index
    %c0_6 = arith.constant 0 : index
    %4 = vector.load %arg3[%c0_5, %c0_6] : memref<64x128xf32, #tpu.memory_space<vmem>>, vector<64x128xf32>
    %5 = arith.addf %3, %4 : vector<64x128xf32>
    %c0_7 = arith.constant 0 : index
    %c0_8 = arith.constant 0 : index
    %6 = vector.load %arg15[%c0_7, %c0_8] : memref<64x128xf32, #tpu.memory_space<vmem>>, vector<64x128xf32>
    tpu.vector_store %arg15[%c0_7, %c0_8], %5 {strides = array<i32>} : memref<64x128xf32, #tpu.memory_space<vmem>>, vector<64x128xf32>,
    %c0_9 = arith.constant 0 : index
    %c0_10 = arith.constant 0 : index
    %7 = vector.load %arg2[%c0_9, %c0_10] : memref<64x128xbf16, #tpu.memory_space<vmem>>, vector<64x128xbf16>
    %cst_11 = arith.constant 0.000000e+00 : bf16
    %8 = vector.broadcast %cst_11 : bf16 to vector<8x64xbf16>
    %cst_12 = arith.constant 0.000000e+00 : f32
    %9 = vector.broadcast %cst_12 : f32 to vector<8x32xf32>
    %c0_13 = arith.constant 0 : index
    %c0_14 = arith.constant 0 : index
    %10 = vector.load %arg15[%c0_13, %c0_14] : memref<64x128xf32, #tpu.memory_space<vmem>>, vector<8x128xf32>
    %cst_15 = arith.constant dense<0.000000e+00> : vector<8x128xf32>
    %11 = tpu.matmul %8, %7, %cst_15 {dimension_numbers = #tpu.dot_dimension_numbers<[1], [0], [0], [1], [0, 0, 1, 1], [], []>} : vector<8x64xbf16>, vector<64x128xbf16>, vector<8x128xf32> -> vector<8x128xf32>
    %12 = arith.addf %10, %11 : vector<8x128xf32>
    %13 = arith.negf %12 : vector<8x128xf32>
    %14 = math.exp %13 : vector<8x128xf32>
    %cst_16 = arith.constant 1.000000e+00 : f32
    %15 = vector.broadcast %cst_16 : f32 to vector<8x128xf32>
    %16 = arith.addf %15, %14 : vector<8x128xf32>
    %17 = arith.divf %15, %16 : vector<8x128xf32>
    %18 = math.tanh %12 : vector<8x128xf32>
    %19 = vector.extract_strided_slice %17 {offsets = [0, 32], sizes = [8, 32], strides = [1, 1]} : vector<8x128xf32> to vector<8x32xf32>
    %20 = arith.mulf %19, %9 : vector<8x32xf32>
    %21 = vector.extract_strided_slice %17 {offsets = [0, 0], sizes = [8, 32], strides = [1, 1]} : vector<8x128xf32> to vector<8x32xf32>
    %22 = vector.extract_strided_slice %18 {offsets = [0, 64], sizes = [8, 32], strides = [1, 1]} : vector<8x128xf32> to vector<8x32xf32>
    %23 = arith.mulf %21, %22 : vector<8x32xf32>
    %24 = arith.addf %20, %23 : vector<8x32xf32>
    %25 = vector.extract_strided_slice %17 {offsets = [0, 96], sizes = [8, 32], strides = [1, 1]} : vector<8x128xf32> to vector<8x32xf32>
    %26 = math.tanh %24 : vector<8x32xf32>
    %27 = arith.mulf %25, %26 : vector<8x32xf32>
    %c0_17 = arith.constant 0 : index
    %c0_18 = arith.constant 0 : index
    %28 = vector.load %arg16[%c0_17, %c0_18] : memref<64x32xf32, #tpu.memory_space<vmem>>, vector<8x32xf32>
    tpu.vector_store %arg16[%c0_17, %c0_18], %27 {strides = array<i32>} : memref<64x32xf32, #tpu.memory_space<vmem>>, vector<8x32xf32>,
    %29 = tpu.concatenate %27, %27 in 1 : vector<8x32xf32>, vector<8x32xf32> -> vector<8x64xf32>
    %30 = arith.mulf %29, %0 : vector<8x64xf32>
    %31 = arith.truncf %30 : vector<8x64xf32> to vector<8x64xbf16>
    %c8 = arith.constant 8 : index
    %c0_19 = arith.constant 0 : index
    %32 = vector.load %arg15[%c8, %c0_19] : memref<64x128xf32, #tpu.memory_space<vmem>>, vector<8x128xf32>
    %cst_20 = arith.constant dense<0.000000e+00> : vector<8x128xf32>
    %33 = tpu.matmul %31, %7, %cst_20 {dimension_numbers = #tpu.dot_dimension_numbers<[1], [0], [0], [1], [0, 0, 1, 1], [], []>} : vector<8x64xbf16>, vector<64x128xbf16>, vector<8x128xf32> -> vector<8x128xf32>
    %34 = arith.addf %32, %33 : vector<8x128xf32>
    %35 = arith.negf %34 : vector<8x128xf32>
    %36 = math.exp %35 : vector<8x128xf32>
    %cst_21 = arith.constant 1.000000e+00 : f32
    %37 = vector.broadcast %cst_21 : f32 to vector<8x128xf32>
    %38 = arith.addf %37, %36 : vector<8x128xf32>
    %39 = arith.divf %37, %38 : vector<8x128xf32>
    %40 = math.tanh %34 : vector<8x128xf32>
    %41 = vector.extract_strided_slice %39 {offsets = [0, 32], sizes = [8, 32], strides = [1, 1]} : vector<8x128xf32> to vector<8x32xf32>
    %42 = arith.mulf %41, %24 : vector<8x32xf32>
    %43 = vector.extract_strided_slice %39 {offsets = [0, 0], sizes = [8, 32], strides = [1, 1]} : vector<8x128xf32> to vector<8x32xf32>
    %44 = vector.extract_strided_slice %40 {offsets = [0, 64], sizes = [8, 32], strides = [1, 1]} : vector<8x128xf32> to vector<8x32xf32>
    %45 = arith.mulf %43, %44 : vector<8x32xf32>
    %46 = arith.addf %42, %45 : vector<8x32xf32>
    %47 = vector.extract_strided_slice %39 {offsets = [0, 96], sizes = [8, 32], strides = [1, 1]} : vector<8x128xf32> to vector<8x32xf32>
    %48 = math.tanh %46 : vector<8x32xf32>
    %49 = arith.mulf %47, %48 : vector<8x32xf32>
    %c8_22 = arith.constant 8 : index
    %c0_23 = arith.constant 0 : index
    %50 = vector.load %arg16[%c8_22, %c0_23] : memref<64x32xf32, #tpu.memory_space<vmem>>, vector<8x32xf32>
    tpu.vector_store %arg16[%c8_22, %c0_23], %49 {strides = array<i32>} : memref<64x32xf32, #tpu.memory_space<vmem>>, vector<8x32xf32>,
    %51 = tpu.concatenate %49, %49 in 1 : vector<8x32xf32>, vector<8x32xf32> -> vector<8x64xf32>
    %52 = arith.mulf %51, %0 : vector<8x64xf32>
    %53 = arith.truncf %52 : vector<8x64xf32> to vector<8x64xbf16>
    %c16 = arith.constant 16 : index
    %c0_24 = arith.constant 0 : index
    %54 = vector.load %arg15[%c16, %c0_24] : memref<64x128xf32, #tpu.memory_space<vmem>>, vector<8x128xf32>
    %cst_25 = arith.constant dense<0.000000e+00> : vector<8x128xf32>
    %55 = tpu.matmul %53, %7, %cst_25 {dimension_numbers = #tpu.dot_dimension_numbers<[1], [0], [0], [1], [0, 0, 1, 1], [], []>} : vector<8x64xbf16>, vector<64x128xbf16>, vector<8x128xf32> -> vector<8x128xf32>
    %56 = arith.addf %54, %55 : vector<8x128xf32>
    %57 = arith.negf %56 : vector<8x128xf32>
    %58 = math.exp %57 : vector<8x128xf32>
    %cst_26 = arith.constant 1.000000e+00 : f32
    %59 = vector.broadcast %cst_26 : f32 to vector<8x128xf32>
    %60 = arith.addf %59, %58 : vector<8x128xf32>
    %61 = arith.divf %59, %60 : vector<8x128xf32>
    %62 = math.tanh %56 : vector<8x128xf32>
    %63 = vector.extract_strided_slice %61 {offsets = [0, 32], sizes = [8, 32], strides = [1, 1]} : vector<8x128xf32> to vector<8x32xf32>
    %64 = arith.mulf %63, %46 : vector<8x32xf32>
    %65 = vector.extract_strided_slice %61 {offsets = [0, 0], sizes = [8, 32], strides = [1, 1]} : vector<8x128xf32> to vector<8x32xf32>
    %66 = vector.extract_strided_slice %62 {offsets = [0, 64], sizes = [8, 32], strides = [1, 1]} : vector<8x128xf32> to vector<8x32xf32>
    %67 = arith.mulf %65, %66 : vector<8x32xf32>
    %68 = arith.addf %64, %67 : vector<8x32xf32>
    %69 = vector.extract_strided_slice %61 {offsets = [0, 96], sizes = [8, 32], strides = [1, 1]} : vector<8x128xf32> to vector<8x32xf32>
    %70 = math.tanh %68 : vector<8x32xf32>
    %71 = arith.mulf %69, %70 : vector<8x32xf32>
    %c16_27 = arith.constant 16 : index
    %c0_28 = arith.constant 0 : index
    %72 = vector.load %arg16[%c16_27, %c0_28] : memref<64x32xf32, #tpu.memory_space<vmem>>, vector<8x32xf32>
    tpu.vector_store %arg16[%c16_27, %c0_28], %71 {strides = array<i32>} : memref<64x32xf32, #tpu.memory_space<vmem>>, vector<8x32xf32>,
    %73 = tpu.concatenate %71, %71 in 1 : vector<8x32xf32>, vector<8x32xf32> -> vector<8x64xf32>
    %74 = arith.mulf %73, %0 : vector<8x64xf32>
    %75 = arith.truncf %74 : vector<8x64xf32> to vector<8x64xbf16>
    %c24 = arith.constant 24 : index
    %c0_29 = arith.constant 0 : index
    %76 = vector.load %arg15[%c24, %c0_29] : memref<64x128xf32, #tpu.memory_space<vmem>>, vector<8x128xf32>
    %cst_30 = arith.constant dense<0.000000e+00> : vector<8x128xf32>
    %77 = tpu.matmul %75, %7, %cst_30 {dimension_numbers = #tpu.dot_dimension_numbers<[1], [0], [0], [1], [0, 0, 1, 1], [], []>} : vector<8x64xbf16>, vector<64x128xbf16>, vector<8x128xf32> -> vector<8x128xf32>
    %78 = arith.addf %76, %77 : vector<8x128xf32>
    %79 = arith.negf %78 : vector<8x128xf32>
    %80 = math.exp %79 : vector<8x128xf32>
    %cst_31 = arith.constant 1.000000e+00 : f32
    %81 = vector.broadcast %cst_31 : f32 to vector<8x128xf32>
    %82 = arith.addf %81, %80 : vector<8x128xf32>
    %83 = arith.divf %81, %82 : vector<8x128xf32>
    %84 = math.tanh %78 : vector<8x128xf32>
    %85 = vector.extract_strided_slice %83 {offsets = [0, 32], sizes = [8, 32], strides = [1, 1]} : vector<8x128xf32> to vector<8x32xf32>
    %86 = arith.mulf %85, %68 : vector<8x32xf32>
    %87 = vector.extract_strided_slice %83 {offsets = [0, 0], sizes = [8, 32], strides = [1, 1]} : vector<8x128xf32> to vector<8x32xf32>
    %88 = vector.extract_strided_slice %84 {offsets = [0, 64], sizes = [8, 32], strides = [1, 1]} : vector<8x128xf32> to vector<8x32xf32>
    %89 = arith.mulf %87, %88 : vector<8x32xf32>
    %90 = arith.addf %86, %89 : vector<8x32xf32>
    %91 = vector.extract_strided_slice %83 {offsets = [0, 96], sizes = [8, 32], strides = [1, 1]} : vector<8x128xf32> to vector<8x32xf32>
    %92 = math.tanh %90 : vector<8x32xf32>
    %93 = arith.mulf %91, %92 : vector<8x32xf32>
    %c24_32 = arith.constant 24 : index
    %c0_33 = arith.constant 0 : index
    %94 = vector.load %arg16[%c24_32, %c0_33] : memref<64x32xf32, #tpu.memory_space<vmem>>, vector<8x32xf32>
    tpu.vector_store %arg16[%c24_32, %c0_33], %93 {strides = array<i32>} : memref<64x32xf32, #tpu.memory_space<vmem>>, vector<8x32xf32>,
    %95 = tpu.concatenate %93, %93 in 1 : vector<8x32xf32>, vector<8x32xf32> -> vector<8x64xf32>
    %96 = arith.mulf %95, %0 : vector<8x64xf32>
    %97 = arith.truncf %96 : vector<8x64xf32> to vector<8x64xbf16>
    %c32 = arith.constant 32 : index
    %c0_34 = arith.constant 0 : index
    %98 = vector.load %arg15[%c32, %c0_34] : memref<64x128xf32, #tpu.memory_space<vmem>>, vector<8x128xf32>
    %cst_35 = arith.constant dense<0.000000e+00> : vector<8x128xf32>
    %99 = tpu.matmul %97, %7, %cst_35 {dimension_numbers = #tpu.dot_dimension_numbers<[1], [0], [0], [1], [0, 0, 1, 1], [], []>} : vector<8x64xbf16>, vector<64x128xbf16>, vector<8x128xf32> -> vector<8x128xf32>
    %100 = arith.addf %98, %99 : vector<8x128xf32>
    %101 = arith.negf %100 : vector<8x128xf32>
    %102 = math.exp %101 : vector<8x128xf32>
    %cst_36 = arith.constant 1.000000e+00 : f32
    %103 = vector.broadcast %cst_36 : f32 to vector<8x128xf32>
    %104 = arith.addf %103, %102 : vector<8x128xf32>
    %105 = arith.divf %103, %104 : vector<8x128xf32>
    %106 = math.tanh %100 : vector<8x128xf32>
    %107 = vector.extract_strided_slice %105 {offsets = [0, 32], sizes = [8, 32], strides = [1, 1]} : vector<8x128xf32> to vector<8x32xf32>
    %108 = arith.mulf %107, %90 : vector<8x32xf32>
    %109 = vector.extract_strided_slice %105 {offsets = [0, 0], sizes = [8, 32], strides = [1, 1]} : vector<8x128xf32> to vector<8x32xf32>
    %110 = vector.extract_strided_slice %106 {offsets = [0, 64], sizes = [8, 32], strides = [1, 1]} : vector<8x128xf32> to vector<8x32xf32>
    %111 = arith.mulf %109, %110 : vector<8x32xf32>
    %112 = arith.addf %108, %111 : vector<8x32xf32>
    %113 = vector.extract_strided_slice %105 {offsets = [0, 96], sizes = [8, 32], strides = [1, 1]} : vector<8x128xf32> to vector<8x32xf32>
    %114 = math.tanh %112 : vector<8x32xf32>
    %115 = arith.mulf %113, %114 : vector<8x32xf32>
    %c32_37 = arith.constant 32 : index
    %c0_38 = arith.constant 0 : index
    %116 = vector.load %arg16[%c32_37, %c0_38] : memref<64x32xf32, #tpu.memory_space<vmem>>, vector<8x32xf32>
    tpu.vector_store %arg16[%c32_37, %c0_38], %115 {strides = array<i32>} : memref<64x32xf32, #tpu.memory_space<vmem>>, vector<8x32xf32>,
    %117 = tpu.concatenate %115, %115 in 1 : vector<8x32xf32>, vector<8x32xf32> -> vector<8x64xf32>
    %118 = arith.mulf %117, %0 : vector<8x64xf32>
    %119 = arith.truncf %118 : vector<8x64xf32> to vector<8x64xbf16>
    %c40 = arith.constant 40 : index
    %c0_39 = arith.constant 0 : index
    %120 = vector.load %arg15[%c40, %c0_39] : memref<64x128xf32, #tpu.memory_space<vmem>>, vector<8x128xf32>
    %cst_40 = arith.constant dense<0.000000e+00> : vector<8x128xf32>
    %121 = tpu.matmul %119, %7, %cst_40 {dimension_numbers = #tpu.dot_dimension_numbers<[1], [0], [0], [1], [0, 0, 1, 1], [], []>} : vector<8x64xbf16>, vector<64x128xbf16>, vector<8x128xf32> -> vector<8x128xf32>
    %122 = arith.addf %120, %121 : vector<8x128xf32>
    %123 = arith.negf %122 : vector<8x128xf32>
    %124 = math.exp %123 : vector<8x128xf32>
    %cst_41 = arith.constant 1.000000e+00 : f32
    %125 = vector.broadcast %cst_41 : f32 to vector<8x128xf32>
    %126 = arith.addf %125, %124 : vector<8x128xf32>
    %127 = arith.divf %125, %126 : vector<8x128xf32>
    %128 = math.tanh %122 : vector<8x128xf32>
    %129 = vector.extract_strided_slice %127 {offsets = [0, 32], sizes = [8, 32], strides = [1, 1]} : vector<8x128xf32> to vector<8x32xf32>
    %130 = arith.mulf %129, %112 : vector<8x32xf32>
    %131 = vector.extract_strided_slice %127 {offsets = [0, 0], sizes = [8, 32], strides = [1, 1]} : vector<8x128xf32> to vector<8x32xf32>
    %132 = vector.extract_strided_slice %128 {offsets = [0, 64], sizes = [8, 32], strides = [1, 1]} : vector<8x128xf32> to vector<8x32xf32>
    %133 = arith.mulf %131, %132 : vector<8x32xf32>
    %134 = arith.addf %130, %133 : vector<8x32xf32>
    %135 = vector.extract_strided_slice %127 {offsets = [0, 96], sizes = [8, 32], strides = [1, 1]} : vector<8x128xf32> to vector<8x32xf32>
    %136 = math.tanh %134 : vector<8x32xf32>
    %137 = arith.mulf %135, %136 : vector<8x32xf32>
    %c40_42 = arith.constant 40 : index
    %c0_43 = arith.constant 0 : index
    %138 = vector.load %arg16[%c40_42, %c0_43] : memref<64x32xf32, #tpu.memory_space<vmem>>, vector<8x32xf32>
    tpu.vector_store %arg16[%c40_42, %c0_43], %137 {strides = array<i32>} : memref<64x32xf32, #tpu.memory_space<vmem>>, vector<8x32xf32>,
    %139 = tpu.concatenate %137, %137 in 1 : vector<8x32xf32>, vector<8x32xf32> -> vector<8x64xf32>
    %140 = arith.mulf %139, %0 : vector<8x64xf32>
    %141 = arith.truncf %140 : vector<8x64xf32> to vector<8x64xbf16>
    %c48 = arith.constant 48 : index
    %c0_44 = arith.constant 0 : index
    %142 = vector.load %arg15[%c48, %c0_44] : memref<64x128xf32, #tpu.memory_space<vmem>>, vector<8x128xf32>
    %cst_45 = arith.constant dense<0.000000e+00> : vector<8x128xf32>
    %143 = tpu.matmul %141, %7, %cst_45 {dimension_numbers = #tpu.dot_dimension_numbers<[1], [0], [0], [1], [0, 0, 1, 1], [], []>} : vector<8x64xbf16>, vector<64x128xbf16>, vector<8x128xf32> -> vector<8x128xf32>
    %144 = arith.addf %142, %143 : vector<8x128xf32>
    %145 = arith.negf %144 : vector<8x128xf32>
    %146 = math.exp %145 : vector<8x128xf32>
    %cst_46 = arith.constant 1.000000e+00 : f32
    %147 = vector.broadcast %cst_46 : f32 to vector<8x128xf32>
    %148 = arith.addf %147, %146 : vector<8x128xf32>
    %149 = arith.divf %147, %148 : vector<8x128xf32>
    %150 = math.tanh %144 : vector<8x128xf32>
    %151 = vector.extract_strided_slice %149 {offsets = [0, 32], sizes = [8, 32], strides = [1, 1]} : vector<8x128xf32> to vector<8x32xf32>
    %152 = arith.mulf %151, %134 : vector<8x32xf32>
    %153 = vector.extract_strided_slice %149 {offsets = [0, 0], sizes = [8, 32], strides = [1, 1]} : vector<8x128xf32> to vector<8x32xf32>
    %154 = vector.extract_strided_slice %150 {offsets = [0, 64], sizes = [8, 32], strides = [1, 1]} : vector<8x128xf32> to vector<8x32xf32>
    %155 = arith.mulf %153, %154 : vector<8x32xf32>
    %156 = arith.addf %152, %155 : vector<8x32xf32>
    %157 = vector.extract_strided_slice %149 {offsets = [0, 96], sizes = [8, 32], strides = [1, 1]} : vector<8x128xf32> to vector<8x32xf32>
    %158 = math.tanh %156 : vector<8x32xf32>
    %159 = arith.mulf %157, %158 : vector<8x32xf32>
    %c48_47 = arith.constant 48 : index
    %c0_48 = arith.constant 0 : index
    %160 = vector.load %arg16[%c48_47, %c0_48] : memref<64x32xf32, #tpu.memory_space<vmem>>, vector<8x32xf32>
    tpu.vector_store %arg16[%c48_47, %c0_48], %159 {strides = array<i32>} : memref<64x32xf32, #tpu.memory_space<vmem>>, vector<8x32xf32>,
    %161 = tpu.concatenate %159, %159 in 1 : vector<8x32xf32>, vector<8x32xf32> -> vector<8x64xf32>
    %162 = arith.mulf %161, %0 : vector<8x64xf32>
    %163 = arith.truncf %162 : vector<8x64xf32> to vector<8x64xbf16>
    %c56 = arith.constant 56 : index
    %c0_49 = arith.constant 0 : index
    %164 = vector.load %arg15[%c56, %c0_49] : memref<64x128xf32, #tpu.memory_space<vmem>>, vector<8x128xf32>
    %cst_50 = arith.constant dense<0.000000e+00> : vector<8x128xf32>
    %165 = tpu.matmul %163, %7, %cst_50 {dimension_numbers = #tpu.dot_dimension_numbers<[1], [0], [0], [1], [0, 0, 1, 1], [], []>} : vector<8x64xbf16>, vector<64x128xbf16>, vector<8x128xf32> -> vector<8x128xf32>
    %166 = arith.addf %164, %165 : vector<8x128xf32>
    %167 = arith.negf %166 : vector<8x128xf32>
    %168 = math.exp %167 : vector<8x128xf32>
    %cst_51 = arith.constant 1.000000e+00 : f32
    %169 = vector.broadcast %cst_51 : f32 to vector<8x128xf32>
    %170 = arith.addf %169, %168 : vector<8x128xf32>
    %171 = arith.divf %169, %170 : vector<8x128xf32>
    %172 = math.tanh %166 : vector<8x128xf32>
    %173 = vector.extract_strided_slice %171 {offsets = [0, 32], sizes = [8, 32], strides = [1, 1]} : vector<8x128xf32> to vector<8x32xf32>
    %174 = arith.mulf %173, %156 : vector<8x32xf32>
    %175 = vector.extract_strided_slice %171 {offsets = [0, 0], sizes = [8, 32], strides = [1, 1]} : vector<8x128xf32> to vector<8x32xf32>
    %176 = vector.extract_strided_slice %172 {offsets = [0, 64], sizes = [8, 32], strides = [1, 1]} : vector<8x128xf32> to vector<8x32xf32>
    %177 = arith.mulf %175, %176 : vector<8x32xf32>
    %178 = arith.addf %174, %177 : vector<8x32xf32>
    %179 = vector.extract_strided_slice %171 {offsets = [0, 96], sizes = [8, 32], strides = [1, 1]} : vector<8x128xf32> to vector<8x32xf32>
    %180 = math.tanh %178 : vector<8x32xf32>
    %181 = arith.mulf %179, %180 : vector<8x32xf32>
    %c56_52 = arith.constant 56 : index
    %c0_53 = arith.constant 0 : index
    %182 = vector.load %arg16[%c56_52, %c0_53] : memref<64x32xf32, #tpu.memory_space<vmem>>, vector<8x32xf32>
    tpu.vector_store %arg16[%c56_52, %c0_53], %181 {strides = array<i32>} : memref<64x32xf32, #tpu.memory_space<vmem>>, vector<8x32xf32>,
    %c0_54 = arith.constant 0 : index
    %c0_55 = arith.constant 0 : index
    %183 = vector.load %arg16[%c0_54, %c0_55] : memref<64x32xf32, #tpu.memory_space<vmem>>, vector<64x32xf32>
    %c56_56 = arith.constant 56 : index
    %c0_57 = arith.constant 0 : index
    %184 = vector.load %arg16[%c56_56, %c0_57] : memref<64x32xf32, #tpu.memory_space<vmem>>, vector<8x32xf32>
    %c48_58 = arith.constant 48 : index
    %c0_59 = arith.constant 0 : index
    %185 = vector.load %arg16[%c48_58, %c0_59] : memref<64x32xf32, #tpu.memory_space<vmem>>, vector<8x32xf32>
    %c40_60 = arith.constant 40 : index
    %c0_61 = arith.constant 0 : index
    %186 = vector.load %arg16[%c40_60, %c0_61] : memref<64x32xf32, #tpu.memory_space<vmem>>, vector<8x32xf32>
    %c32_62 = arith.constant 32 : index
    %c0_63 = arith.constant 0 : index
    %187 = vector.load %arg16[%c32_62, %c0_63] : memref<64x32xf32, #tpu.memory_space<vmem>>, vector<8x32xf32>
    %c24_64 = arith.constant 24 : index
    %c0_65 = arith.constant 0 : index
    %188 = vector.load %arg16[%c24_64, %c0_65] : memref<64x32xf32, #tpu.memory_space<vmem>>, vector<8x32xf32>
    %c16_66 = arith.constant 16 : index
    %c0_67 = arith.constant 0 : index
    %189 = vector.load %arg16[%c16_66, %c0_67] : memref<64x32xf32, #tpu.memory_space<vmem>>, vector<8x32xf32>
    %c8_68 = arith.constant 8 : index
    %c0_69 = arith.constant 0 : index
    %190 = vector.load %arg16[%c8_68, %c0_69] : memref<64x32xf32, #tpu.memory_space<vmem>>, vector<8x32xf32>
    %c0_70 = arith.constant 0 : index
    %c0_71 = arith.constant 0 : index
    %191 = vector.load %arg16[%c0_70, %c0_71] : memref<64x32xf32, #tpu.memory_space<vmem>>, vector<8x32xf32>
    %192 = tpu.concatenate %184, %185, %186, %187, %188, %189, %190, %191 in 0 : vector<8x32xf32>, vector<8x32xf32>, vector<8x32xf32>, vector<8x32xf32>, vector<8x32xf32>, vector<8x32xf32>, vector<8x32xf32>, vector<8x32xf32> -> vector<64x32xf32>
    %193 = tpu.concatenate %183, %192 in 1 : vector<64x32xf32>, vector<64x32xf32> -> vector<64x64xf32>
    %c0_72 = arith.constant 0 : index
    %c0_73 = arith.constant 0 : index
    %194 = vector.load %arg12[%c0_72, %c0_73] : memref<64x64xf32, #tpu.memory_space<vmem>>, vector<64x64xf32>
    %195 = arith.mulf %193, %194 : vector<64x64xf32>
    %196 = arith.truncf %195 : vector<64x64xf32> to vector<64x64xbf16>
    %c0_74 = arith.constant 0 : index
    %c0_75 = arith.constant 0 : index
    %197 = vector.load %arg4[%c0_74, %c0_75] : memref<64x128xbf16, #tpu.memory_space<vmem>>, vector<64x128xbf16>
    %cst_76 = arith.constant dense<0.000000e+00> : vector<64x128xf32>
    %198 = tpu.matmul %196, %197, %cst_76 {dimension_numbers = #tpu.dot_dimension_numbers<[1], [0], [0], [1], [0, 0, 1, 1], [], []>} : vector<64x64xbf16>, vector<64x128xbf16>, vector<64x128xf32> -> vector<64x128xf32>
    %c0_77 = arith.constant 0 : index
    %c0_78 = arith.constant 0 : index
    %199 = vector.load %arg6[%c0_77, %c0_78] : memref<64x128xf32, #tpu.memory_space<vmem>>, vector<64x128xf32>
    %200 = arith.addf %198, %199 : vector<64x128xf32>
    %c0_79 = arith.constant 0 : index
    %c0_80 = arith.constant 0 : index
    %201 = vector.load %arg15[%c0_79, %c0_80] : memref<64x128xf32, #tpu.memory_space<vmem>>, vector<64x128xf32>
    tpu.vector_store %arg15[%c0_79, %c0_80], %200 {strides = array<i32>} : memref<64x128xf32, #tpu.memory_space<vmem>>, vector<64x128xf32>,
    %c0_81 = arith.constant 0 : index
    %c0_82 = arith.constant 0 : index
    %202 = vector.load %arg5[%c0_81, %c0_82] : memref<64x128xbf16, #tpu.memory_space<vmem>>, vector<64x128xbf16>
    %cst_83 = arith.constant 0.000000e+00 : bf16
    %203 = vector.broadcast %cst_83 : bf16 to vector<8x64xbf16>
    %cst_84 = arith.constant 0.000000e+00 : f32
    %204 = vector.broadcast %cst_84 : f32 to vector<8x32xf32>
    %c0_85 = arith.constant 0 : index
    %c0_86 = arith.constant 0 : index
    %205 = vector.load %arg15[%c0_85, %c0_86] : memref<64x128xf32, #tpu.memory_space<vmem>>, vector<8x128xf32>
    %cst_87 = arith.constant dense<0.000000e+00> : vector<8x128xf32>
    %206 = tpu.matmul %203, %202, %cst_87 {dimension_numbers = #tpu.dot_dimension_numbers<[1], [0], [0], [1], [0, 0, 1, 1], [], []>} : vector<8x64xbf16>, vector<64x128xbf16>, vector<8x128xf32> -> vector<8x128xf32>
    %207 = arith.addf %205, %206 : vector<8x128xf32>
    %208 = arith.negf %207 : vector<8x128xf32>
    %209 = math.exp %208 : vector<8x128xf32>
    %cst_88 = arith.constant 1.000000e+00 : f32
    %210 = vector.broadcast %cst_88 : f32 to vector<8x128xf32>
    %211 = arith.addf %210, %209 : vector<8x128xf32>
    %212 = arith.divf %210, %211 : vector<8x128xf32>
    %213 = math.tanh %207 : vector<8x128xf32>
    %214 = vector.extract_strided_slice %212 {offsets = [0, 32], sizes = [8, 32], strides = [1, 1]} : vector<8x128xf32> to vector<8x32xf32>
    %215 = arith.mulf %214, %204 : vector<8x32xf32>
    %216 = vector.extract_strided_slice %212 {offsets = [0, 0], sizes = [8, 32], strides = [1, 1]} : vector<8x128xf32> to vector<8x32xf32>
    %217 = vector.extract_strided_slice %213 {offsets = [0, 64], sizes = [8, 32], strides = [1, 1]} : vector<8x128xf32> to vector<8x32xf32>
    %218 = arith.mulf %216, %217 : vector<8x32xf32>
    %219 = arith.addf %215, %218 : vector<8x32xf32>
    %220 = vector.extract_strided_slice %212 {offsets = [0, 96], sizes = [8, 32], strides = [1, 1]} : vector<8x128xf32> to vector<8x32xf32>
    %221 = math.tanh %219 : vector<8x32xf32>
    %222 = arith.mulf %220, %221 : vector<8x32xf32>
    %c0_89 = arith.constant 0 : index
    %c0_90 = arith.constant 0 : index
    %223 = vector.load %arg17[%c0_89, %c0_90] : memref<64x32xf32, #tpu.memory_space<vmem>>, vector<8x32xf32>
    tpu.vector_store %arg17[%c0_89, %c0_90], %222 {strides = array<i32>} : memref<64x32xf32, #tpu.memory_space<vmem>>, vector<8x32xf32>,
    %224 = tpu.concatenate %222, %222 in 1 : vector<8x32xf32>, vector<8x32xf32> -> vector<8x64xf32>
    %225 = arith.mulf %224, %0 : vector<8x64xf32>
    %226 = arith.truncf %225 : vector<8x64xf32> to vector<8x64xbf16>
    %c8_91 = arith.constant 8 : index
    %c0_92 = arith.constant 0 : index
    %227 = vector.load %arg15[%c8_91, %c0_92] : memref<64x128xf32, #tpu.memory_space<vmem>>, vector<8x128xf32>
    %cst_93 = arith.constant dense<0.000000e+00> : vector<8x128xf32>
    %228 = tpu.matmul %226, %202, %cst_93 {dimension_numbers = #tpu.dot_dimension_numbers<[1], [0], [0], [1], [0, 0, 1, 1], [], []>} : vector<8x64xbf16>, vector<64x128xbf16>, vector<8x128xf32> -> vector<8x128xf32>
    %229 = arith.addf %227, %228 : vector<8x128xf32>
    %230 = arith.negf %229 : vector<8x128xf32>
    %231 = math.exp %230 : vector<8x128xf32>
    %cst_94 = arith.constant 1.000000e+00 : f32
    %232 = vector.broadcast %cst_94 : f32 to vector<8x128xf32>
    %233 = arith.addf %232, %231 : vector<8x128xf32>
    %234 = arith.divf %232, %233 : vector<8x128xf32>
    %235 = math.tanh %229 : vector<8x128xf32>
    %236 = vector.extract_strided_slice %234 {offsets = [0, 32], sizes = [8, 32], strides = [1, 1]} : vector<8x128xf32> to vector<8x32xf32>
    %237 = arith.mulf %236, %219 : vector<8x32xf32>
    %238 = vector.extract_strided_slice %234 {offsets = [0, 0], sizes = [8, 32], strides = [1, 1]} : vector<8x128xf32> to vector<8x32xf32>
    %239 = vector.extract_strided_slice %235 {offsets = [0, 64], sizes = [8, 32], strides = [1, 1]} : vector<8x128xf32> to vector<8x32xf32>
    %240 = arith.mulf %238, %239 : vector<8x32xf32>
    %241 = arith.addf %237, %240 : vector<8x32xf32>
    %242 = vector.extract_strided_slice %234 {offsets = [0, 96], sizes = [8, 32], strides = [1, 1]} : vector<8x128xf32> to vector<8x32xf32>
    %243 = math.tanh %241 : vector<8x32xf32>
    %244 = arith.mulf %242, %243 : vector<8x32xf32>
    %c8_95 = arith.constant 8 : index
    %c0_96 = arith.constant 0 : index
    %245 = vector.load %arg17[%c8_95, %c0_96] : memref<64x32xf32, #tpu.memory_space<vmem>>, vector<8x32xf32>
    tpu.vector_store %arg17[%c8_95, %c0_96], %244 {strides = array<i32>} : memref<64x32xf32, #tpu.memory_space<vmem>>, vector<8x32xf32>,
    %246 = tpu.concatenate %244, %244 in 1 : vector<8x32xf32>, vector<8x32xf32> -> vector<8x64xf32>
    %247 = arith.mulf %246, %0 : vector<8x64xf32>
    %248 = arith.truncf %247 : vector<8x64xf32> to vector<8x64xbf16>
    %c16_97 = arith.constant 16 : index
    %c0_98 = arith.constant 0 : index
    %249 = vector.load %arg15[%c16_97, %c0_98] : memref<64x128xf32, #tpu.memory_space<vmem>>, vector<8x128xf32>
    %cst_99 = arith.constant dense<0.000000e+00> : vector<8x128xf32>
    %250 = tpu.matmul %248, %202, %cst_99 {dimension_numbers = #tpu.dot_dimension_numbers<[1], [0], [0], [1], [0, 0, 1, 1], [], []>} : vector<8x64xbf16>, vector<64x128xbf16>, vector<8x128xf32> -> vector<8x128xf32>
    %251 = arith.addf %249, %250 : vector<8x128xf32>
    %252 = arith.negf %251 : vector<8x128xf32>
    %253 = math.exp %252 : vector<8x128xf32>
    %cst_100 = arith.constant 1.000000e+00 : f32
    %254 = vector.broadcast %cst_100 : f32 to vector<8x128xf32>
    %255 = arith.addf %254, %253 : vector<8x128xf32>
    %256 = arith.divf %254, %255 : vector<8x128xf32>
    %257 = math.tanh %251 : vector<8x128xf32>
    %258 = vector.extract_strided_slice %256 {offsets = [0, 32], sizes = [8, 32], strides = [1, 1]} : vector<8x128xf32> to vector<8x32xf32>
    %259 = arith.mulf %258, %241 : vector<8x32xf32>
    %260 = vector.extract_strided_slice %256 {offsets = [0, 0], sizes = [8, 32], strides = [1, 1]} : vector<8x128xf32> to vector<8x32xf32>
    %261 = vector.extract_strided_slice %257 {offsets = [0, 64], sizes = [8, 32], strides = [1, 1]} : vector<8x128xf32> to vector<8x32xf32>
    %262 = arith.mulf %260, %261 : vector<8x32xf32>
    %263 = arith.addf %259, %262 : vector<8x32xf32>
    %264 = vector.extract_strided_slice %256 {offsets = [0, 96], sizes = [8, 32], strides = [1, 1]} : vector<8x128xf32> to vector<8x32xf32>
    %265 = math.tanh %263 : vector<8x32xf32>
    %266 = arith.mulf %264, %265 : vector<8x32xf32>
    %c16_101 = arith.constant 16 : index
    %c0_102 = arith.constant 0 : index
    %267 = vector.load %arg17[%c16_101, %c0_102] : memref<64x32xf32, #tpu.memory_space<vmem>>, vector<8x32xf32>
    tpu.vector_store %arg17[%c16_101, %c0_102], %266 {strides = array<i32>} : memref<64x32xf32, #tpu.memory_space<vmem>>, vector<8x32xf32>,
    %268 = tpu.concatenate %266, %266 in 1 : vector<8x32xf32>, vector<8x32xf32> -> vector<8x64xf32>
    %269 = arith.mulf %268, %0 : vector<8x64xf32>
    %270 = arith.truncf %269 : vector<8x64xf32> to vector<8x64xbf16>
    %c24_103 = arith.constant 24 : index
    %c0_104 = arith.constant 0 : index
    %271 = vector.load %arg15[%c24_103, %c0_104] : memref<64x128xf32, #tpu.memory_space<vmem>>, vector<8x128xf32>
    %cst_105 = arith.constant dense<0.000000e+00> : vector<8x128xf32>
    %272 = tpu.matmul %270, %202, %cst_105 {dimension_numbers = #tpu.dot_dimension_numbers<[1], [0], [0], [1], [0, 0, 1, 1], [], []>} : vector<8x64xbf16>, vector<64x128xbf16>, vector<8x128xf32> -> vector<8x128xf32>
    %273 = arith.addf %271, %272 : vector<8x128xf32>
    %274 = arith.negf %273 : vector<8x128xf32>
    %275 = math.exp %274 : vector<8x128xf32>
    %cst_106 = arith.constant 1.000000e+00 : f32
    %276 = vector.broadcast %cst_106 : f32 to vector<8x128xf32>
    %277 = arith.addf %276, %275 : vector<8x128xf32>
    %278 = arith.divf %276, %277 : vector<8x128xf32>
    %279 = math.tanh %273 : vector<8x128xf32>
    %280 = vector.extract_strided_slice %278 {offsets = [0, 32], sizes = [8, 32], strides = [1, 1]} : vector<8x128xf32> to vector<8x32xf32>
    %281 = arith.mulf %280, %263 : vector<8x32xf32>
    %282 = vector.extract_strided_slice %278 {offsets = [0, 0], sizes = [8, 32], strides = [1, 1]} : vector<8x128xf32> to vector<8x32xf32>
    %283 = vector.extract_strided_slice %279 {offsets = [0, 64], sizes = [8, 32], strides = [1, 1]} : vector<8x128xf32> to vector<8x32xf32>
    %284 = arith.mulf %282, %283 : vector<8x32xf32>
    %285 = arith.addf %281, %284 : vector<8x32xf32>
    %286 = vector.extract_strided_slice %278 {offsets = [0, 96], sizes = [8, 32], strides = [1, 1]} : vector<8x128xf32> to vector<8x32xf32>
    %287 = math.tanh %285 : vector<8x32xf32>
    %288 = arith.mulf %286, %287 : vector<8x32xf32>
    %c24_107 = arith.constant 24 : index
    %c0_108 = arith.constant 0 : index
    %289 = vector.load %arg17[%c24_107, %c0_108] : memref<64x32xf32, #tpu.memory_space<vmem>>, vector<8x32xf32>
    tpu.vector_store %arg17[%c24_107, %c0_108], %288 {strides = array<i32>} : memref<64x32xf32, #tpu.memory_space<vmem>>, vector<8x32xf32>,
    %290 = tpu.concatenate %288, %288 in 1 : vector<8x32xf32>, vector<8x32xf32> -> vector<8x64xf32>
    %291 = arith.mulf %290, %0 : vector<8x64xf32>
    %292 = arith.truncf %291 : vector<8x64xf32> to vector<8x64xbf16>
    %c32_109 = arith.constant 32 : index
    %c0_110 = arith.constant 0 : index
    %293 = vector.load %arg15[%c32_109, %c0_110] : memref<64x128xf32, #tpu.memory_space<vmem>>, vector<8x128xf32>
    %cst_111 = arith.constant dense<0.000000e+00> : vector<8x128xf32>
    %294 = tpu.matmul %292, %202, %cst_111 {dimension_numbers = #tpu.dot_dimension_numbers<[1], [0], [0], [1], [0, 0, 1, 1], [], []>} : vector<8x64xbf16>, vector<64x128xbf16>, vector<8x128xf32> -> vector<8x128xf32>
    %295 = arith.addf %293, %294 : vector<8x128xf32>
    %296 = arith.negf %295 : vector<8x128xf32>
    %297 = math.exp %296 : vector<8x128xf32>
    %cst_112 = arith.constant 1.000000e+00 : f32
    %298 = vector.broadcast %cst_112 : f32 to vector<8x128xf32>
    %299 = arith.addf %298, %297 : vector<8x128xf32>
    %300 = arith.divf %298, %299 : vector<8x128xf32>
    %301 = math.tanh %295 : vector<8x128xf32>
    %302 = vector.extract_strided_slice %300 {offsets = [0, 32], sizes = [8, 32], strides = [1, 1]} : vector<8x128xf32> to vector<8x32xf32>
    %303 = arith.mulf %302, %285 : vector<8x32xf32>
    %304 = vector.extract_strided_slice %300 {offsets = [0, 0], sizes = [8, 32], strides = [1, 1]} : vector<8x128xf32> to vector<8x32xf32>
    %305 = vector.extract_strided_slice %301 {offsets = [0, 64], sizes = [8, 32], strides = [1, 1]} : vector<8x128xf32> to vector<8x32xf32>
    %306 = arith.mulf %304, %305 : vector<8x32xf32>
    %307 = arith.addf %303, %306 : vector<8x32xf32>
    %308 = vector.extract_strided_slice %300 {offsets = [0, 96], sizes = [8, 32], strides = [1, 1]} : vector<8x128xf32> to vector<8x32xf32>
    %309 = math.tanh %307 : vector<8x32xf32>
    %310 = arith.mulf %308, %309 : vector<8x32xf32>
    %c32_113 = arith.constant 32 : index
    %c0_114 = arith.constant 0 : index
    %311 = vector.load %arg17[%c32_113, %c0_114] : memref<64x32xf32, #tpu.memory_space<vmem>>, vector<8x32xf32>
    tpu.vector_store %arg17[%c32_113, %c0_114], %310 {strides = array<i32>} : memref<64x32xf32, #tpu.memory_space<vmem>>, vector<8x32xf32>,
    %312 = tpu.concatenate %310, %310 in 1 : vector<8x32xf32>, vector<8x32xf32> -> vector<8x64xf32>
    %313 = arith.mulf %312, %0 : vector<8x64xf32>
    %314 = arith.truncf %313 : vector<8x64xf32> to vector<8x64xbf16>
    %c40_115 = arith.constant 40 : index
    %c0_116 = arith.constant 0 : index
    %315 = vector.load %arg15[%c40_115, %c0_116] : memref<64x128xf32, #tpu.memory_space<vmem>>, vector<8x128xf32>
    %cst_117 = arith.constant dense<0.000000e+00> : vector<8x128xf32>
    %316 = tpu.matmul %314, %202, %cst_117 {dimension_numbers = #tpu.dot_dimension_numbers<[1], [0], [0], [1], [0, 0, 1, 1], [], []>} : vector<8x64xbf16>, vector<64x128xbf16>, vector<8x128xf32> -> vector<8x128xf32>
    %317 = arith.addf %315, %316 : vector<8x128xf32>
    %318 = arith.negf %317 : vector<8x128xf32>
    %319 = math.exp %318 : vector<8x128xf32>
    %cst_118 = arith.constant 1.000000e+00 : f32
    %320 = vector.broadcast %cst_118 : f32 to vector<8x128xf32>
    %321 = arith.addf %320, %319 : vector<8x128xf32>
    %322 = arith.divf %320, %321 : vector<8x128xf32>
    %323 = math.tanh %317 : vector<8x128xf32>
    %324 = vector.extract_strided_slice %322 {offsets = [0, 32], sizes = [8, 32], strides = [1, 1]} : vector<8x128xf32> to vector<8x32xf32>
    %325 = arith.mulf %324, %307 : vector<8x32xf32>
    %326 = vector.extract_strided_slice %322 {offsets = [0, 0], sizes = [8, 32], strides = [1, 1]} : vector<8x128xf32> to vector<8x32xf32>
    %327 = vector.extract_strided_slice %323 {offsets = [0, 64], sizes = [8, 32], strides = [1, 1]} : vector<8x128xf32> to vector<8x32xf32>
    %328 = arith.mulf %326, %327 : vector<8x32xf32>
    %329 = arith.addf %325, %328 : vector<8x32xf32>
    %330 = vector.extract_strided_slice %322 {offsets = [0, 96], sizes = [8, 32], strides = [1, 1]} : vector<8x128xf32> to vector<8x32xf32>
    %331 = math.tanh %329 : vector<8x32xf32>
    %332 = arith.mulf %330, %331 : vector<8x32xf32>
    %c40_119 = arith.constant 40 : index
    %c0_120 = arith.constant 0 : index
    %333 = vector.load %arg17[%c40_119, %c0_120] : memref<64x32xf32, #tpu.memory_space<vmem>>, vector<8x32xf32>
    tpu.vector_store %arg17[%c40_119, %c0_120], %332 {strides = array<i32>} : memref<64x32xf32, #tpu.memory_space<vmem>>, vector<8x32xf32>,
    %334 = tpu.concatenate %332, %332 in 1 : vector<8x32xf32>, vector<8x32xf32> -> vector<8x64xf32>
    %335 = arith.mulf %334, %0 : vector<8x64xf32>
    %336 = arith.truncf %335 : vector<8x64xf32> to vector<8x64xbf16>
    %c48_121 = arith.constant 48 : index
    %c0_122 = arith.constant 0 : index
    %337 = vector.load %arg15[%c48_121, %c0_122] : memref<64x128xf32, #tpu.memory_space<vmem>>, vector<8x128xf32>
    %cst_123 = arith.constant dense<0.000000e+00> : vector<8x128xf32>
    %338 = tpu.matmul %336, %202, %cst_123 {dimension_numbers = #tpu.dot_dimension_numbers<[1], [0], [0], [1], [0, 0, 1, 1], [], []>} : vector<8x64xbf16>, vector<64x128xbf16>, vector<8x128xf32> -> vector<8x128xf32>
    %339 = arith.addf %337, %338 : vector<8x128xf32>
    %340 = arith.negf %339 : vector<8x128xf32>
    %341 = math.exp %340 : vector<8x128xf32>
    %cst_124 = arith.constant 1.000000e+00 : f32
    %342 = vector.broadcast %cst_124 : f32 to vector<8x128xf32>
    %343 = arith.addf %342, %341 : vector<8x128xf32>
    %344 = arith.divf %342, %343 : vector<8x128xf32>
    %345 = math.tanh %339 : vector<8x128xf32>
    %346 = vector.extract_strided_slice %344 {offsets = [0, 32], sizes = [8, 32], strides = [1, 1]} : vector<8x128xf32> to vector<8x32xf32>
    %347 = arith.mulf %346, %329 : vector<8x32xf32>
    %348 = vector.extract_strided_slice %344 {offsets = [0, 0], sizes = [8, 32], strides = [1, 1]} : vector<8x128xf32> to vector<8x32xf32>
    %349 = vector.extract_strided_slice %345 {offsets = [0, 64], sizes = [8, 32], strides = [1, 1]} : vector<8x128xf32> to vector<8x32xf32>
    %350 = arith.mulf %348, %349 : vector<8x32xf32>
    %351 = arith.addf %347, %350 : vector<8x32xf32>
    %352 = vector.extract_strided_slice %344 {offsets = [0, 96], sizes = [8, 32], strides = [1, 1]} : vector<8x128xf32> to vector<8x32xf32>
    %353 = math.tanh %351 : vector<8x32xf32>
    %354 = arith.mulf %352, %353 : vector<8x32xf32>
    %c48_125 = arith.constant 48 : index
    %c0_126 = arith.constant 0 : index
    %355 = vector.load %arg17[%c48_125, %c0_126] : memref<64x32xf32, #tpu.memory_space<vmem>>, vector<8x32xf32>
    tpu.vector_store %arg17[%c48_125, %c0_126], %354 {strides = array<i32>} : memref<64x32xf32, #tpu.memory_space<vmem>>, vector<8x32xf32>,
    %356 = tpu.concatenate %354, %354 in 1 : vector<8x32xf32>, vector<8x32xf32> -> vector<8x64xf32>
    %357 = arith.mulf %356, %0 : vector<8x64xf32>
    %358 = arith.truncf %357 : vector<8x64xf32> to vector<8x64xbf16>
    %c56_127 = arith.constant 56 : index
    %c0_128 = arith.constant 0 : index
    %359 = vector.load %arg15[%c56_127, %c0_128] : memref<64x128xf32, #tpu.memory_space<vmem>>, vector<8x128xf32>
    %cst_129 = arith.constant dense<0.000000e+00> : vector<8x128xf32>
    %360 = tpu.matmul %358, %202, %cst_129 {dimension_numbers = #tpu.dot_dimension_numbers<[1], [0], [0], [1], [0, 0, 1, 1], [], []>} : vector<8x64xbf16>, vector<64x128xbf16>, vector<8x128xf32> -> vector<8x128xf32>
    %361 = arith.addf %359, %360 : vector<8x128xf32>
    %362 = arith.negf %361 : vector<8x128xf32>
    %363 = math.exp %362 : vector<8x128xf32>
    %cst_130 = arith.constant 1.000000e+00 : f32
    %364 = vector.broadcast %cst_130 : f32 to vector<8x128xf32>
    %365 = arith.addf %364, %363 : vector<8x128xf32>
    %366 = arith.divf %364, %365 : vector<8x128xf32>
    %367 = math.tanh %361 : vector<8x128xf32>
    %368 = vector.extract_strided_slice %366 {offsets = [0, 32], sizes = [8, 32], strides = [1, 1]} : vector<8x128xf32> to vector<8x32xf32>
    %369 = arith.mulf %368, %351 : vector<8x32xf32>
    %370 = vector.extract_strided_slice %366 {offsets = [0, 0], sizes = [8, 32], strides = [1, 1]} : vector<8x128xf32> to vector<8x32xf32>
    %371 = vector.extract_strided_slice %367 {offsets = [0, 64], sizes = [8, 32], strides = [1, 1]} : vector<8x128xf32> to vector<8x32xf32>
    %372 = arith.mulf %370, %371 : vector<8x32xf32>
    %373 = arith.addf %369, %372 : vector<8x32xf32>
    %374 = vector.extract_strided_slice %366 {offsets = [0, 96], sizes = [8, 32], strides = [1, 1]} : vector<8x128xf32> to vector<8x32xf32>
    %375 = math.tanh %373 : vector<8x32xf32>
    %376 = arith.mulf %374, %375 : vector<8x32xf32>
    %c56_131 = arith.constant 56 : index
    %c0_132 = arith.constant 0 : index
    %377 = vector.load %arg17[%c56_131, %c0_132] : memref<64x32xf32, #tpu.memory_space<vmem>>, vector<8x32xf32>
    tpu.vector_store %arg17[%c56_131, %c0_132], %376 {strides = array<i32>} : memref<64x32xf32, #tpu.memory_space<vmem>>, vector<8x32xf32>,
    %c0_133 = arith.constant 0 : index
    %c0_134 = arith.constant 0 : index
    %378 = vector.load %arg17[%c0_133, %c0_134] : memref<64x32xf32, #tpu.memory_space<vmem>>, vector<64x32xf32>
    %379 = tpu.concatenate %183, %378, %183, %378 in 1 : vector<64x32xf32>, vector<64x32xf32>, vector<64x32xf32>, vector<64x32xf32> -> vector<64x128xf32>
    %c0_135 = arith.constant 0 : index
    %c0_136 = arith.constant 0 : index
    %380 = vector.load %arg13[%c0_135, %c0_136] : memref<64x128xf32, #tpu.memory_space<vmem>>, vector<64x128xf32>
    %381 = arith.mulf %379, %380 : vector<64x128xf32>
    %382 = arith.truncf %381 : vector<64x128xf32> to vector<64x128xbf16>
    %c0_137 = arith.constant 0 : index
    %c0_138 = arith.constant 0 : index
    %383 = vector.load %arg7[%c0_137, %c0_138] : memref<128x128xbf16, #tpu.memory_space<vmem>>, vector<128x128xbf16>
    %cst_139 = arith.constant dense<0.000000e+00> : vector<64x128xf32>
    %384 = tpu.matmul %382, %383, %cst_139 {dimension_numbers = #tpu.dot_dimension_numbers<[1], [0], [0], [1], [0, 0, 1, 1], [], []>} : vector<64x128xbf16>, vector<128x128xbf16>, vector<64x128xf32> -> vector<64x128xf32>
    %c0_140 = arith.constant 0 : index
    %c0_141 = arith.constant 0 : index
    %385 = vector.load %arg9[%c0_140, %c0_141] : memref<1x128xf32, #tpu.memory_space<vmem>>, vector<1x128xf32>
    %386 = vector.extract_strided_slice %384 {offsets = [0, 0], sizes = [8, 128], strides = [1, 1]} : vector<64x128xf32> to vector<8x128xf32>
    %387 = vector.extract_strided_slice %384 {offsets = [56, 0], sizes = [8, 128], strides = [1, 1]} : vector<64x128xf32> to vector<8x128xf32>
    %c4_i32 = arith.constant 4 : i32
    %388 = tpu.dynamic_rotate %387 by %c4_i32 dim 0 : vector<8x128xf32>, i32 -> vector<8x128xf32>
    %389 = arith.addf %386, %388 : vector<8x128xf32>
    %390 = vector.broadcast %385 : vector<1x128xf32> to vector<8x128xf32>
    %391 = arith.addf %389, %390 : vector<8x128xf32>
    %c0_142 = arith.constant 0 : index
    %c0_143 = arith.constant 0 : index
    %392 = vector.load %arg15[%c0_142, %c0_143] : memref<64x128xf32, #tpu.memory_space<vmem>>, vector<8x128xf32>
    tpu.vector_store %arg15[%c0_142, %c0_143], %391 {strides = array<i32>} : memref<64x128xf32, #tpu.memory_space<vmem>>, vector<8x128xf32>,
    %393 = vector.extract_strided_slice %384 {offsets = [8, 0], sizes = [8, 128], strides = [1, 1]} : vector<64x128xf32> to vector<8x128xf32>
    %394 = vector.extract_strided_slice %384 {offsets = [48, 0], sizes = [8, 128], strides = [1, 1]} : vector<64x128xf32> to vector<8x128xf32>
    %c4_i32_144 = arith.constant 4 : i32
    %395 = tpu.dynamic_rotate %394 by %c4_i32_144 dim 0 : vector<8x128xf32>, i32 -> vector<8x128xf32>
    %396 = arith.addf %393, %395 : vector<8x128xf32>
    %397 = vector.broadcast %385 : vector<1x128xf32> to vector<8x128xf32>
    %398 = arith.addf %396, %397 : vector<8x128xf32>
    %c8_145 = arith.constant 8 : index
    %c0_146 = arith.constant 0 : index
    %399 = vector.load %arg15[%c8_145, %c0_146] : memref<64x128xf32, #tpu.memory_space<vmem>>, vector<8x128xf32>
    tpu.vector_store %arg15[%c8_145, %c0_146], %398 {strides = array<i32>} : memref<64x128xf32, #tpu.memory_space<vmem>>, vector<8x128xf32>,
    %400 = vector.extract_strided_slice %384 {offsets = [16, 0], sizes = [8, 128], strides = [1, 1]} : vector<64x128xf32> to vector<8x128xf32>
    %401 = vector.extract_strided_slice %384 {offsets = [40, 0], sizes = [8, 128], strides = [1, 1]} : vector<64x128xf32> to vector<8x128xf32>
    %c4_i32_147 = arith.constant 4 : i32
    %402 = tpu.dynamic_rotate %401 by %c4_i32_147 dim 0 : vector<8x128xf32>, i32 -> vector<8x128xf32>
    %403 = arith.addf %400, %402 : vector<8x128xf32>
    %404 = vector.broadcast %385 : vector<1x128xf32> to vector<8x128xf32>
    %405 = arith.addf %403, %404 : vector<8x128xf32>
    %c16_148 = arith.constant 16 : index
    %c0_149 = arith.constant 0 : index
    %406 = vector.load %arg15[%c16_148, %c0_149] : memref<64x128xf32, #tpu.memory_space<vmem>>, vector<8x128xf32>
    tpu.vector_store %arg15[%c16_148, %c0_149], %405 {strides = array<i32>} : memref<64x128xf32, #tpu.memory_space<vmem>>, vector<8x128xf32>,
    %407 = vector.extract_strided_slice %384 {offsets = [24, 0], sizes = [8, 128], strides = [1, 1]} : vector<64x128xf32> to vector<8x128xf32>
    %408 = vector.extract_strided_slice %384 {offsets = [32, 0], sizes = [8, 128], strides = [1, 1]} : vector<64x128xf32> to vector<8x128xf32>
    %c4_i32_150 = arith.constant 4 : i32
    %409 = tpu.dynamic_rotate %408 by %c4_i32_150 dim 0 : vector<8x128xf32>, i32 -> vector<8x128xf32>
    %410 = arith.addf %407, %409 : vector<8x128xf32>
    %411 = vector.broadcast %385 : vector<1x128xf32> to vector<8x128xf32>
    %412 = arith.addf %410, %411 : vector<8x128xf32>
    %c24_151 = arith.constant 24 : index
    %c0_152 = arith.constant 0 : index
    %413 = vector.load %arg15[%c24_151, %c0_152] : memref<64x128xf32, #tpu.memory_space<vmem>>, vector<8x128xf32>
    tpu.vector_store %arg15[%c24_151, %c0_152], %412 {strides = array<i32>} : memref<64x128xf32, #tpu.memory_space<vmem>>, vector<8x128xf32>,
    %414 = vector.extract_strided_slice %384 {offsets = [32, 0], sizes = [8, 128], strides = [1, 1]} : vector<64x128xf32> to vector<8x128xf32>
    %415 = vector.extract_strided_slice %384 {offsets = [24, 0], sizes = [8, 128], strides = [1, 1]} : vector<64x128xf32> to vector<8x128xf32>
    %c4_i32_153 = arith.constant 4 : i32
    %416 = tpu.dynamic_rotate %415 by %c4_i32_153 dim 0 : vector<8x128xf32>, i32 -> vector<8x128xf32>
    %417 = arith.addf %414, %416 : vector<8x128xf32>
    %418 = vector.broadcast %385 : vector<1x128xf32> to vector<8x128xf32>
    %419 = arith.addf %417, %418 : vector<8x128xf32>
    %c32_154 = arith.constant 32 : index
    %c0_155 = arith.constant 0 : index
    %420 = vector.load %arg15[%c32_154, %c0_155] : memref<64x128xf32, #tpu.memory_space<vmem>>, vector<8x128xf32>
    tpu.vector_store %arg15[%c32_154, %c0_155], %419 {strides = array<i32>} : memref<64x128xf32, #tpu.memory_space<vmem>>, vector<8x128xf32>,
    %421 = vector.extract_strided_slice %384 {offsets = [40, 0], sizes = [8, 128], strides = [1, 1]} : vector<64x128xf32> to vector<8x128xf32>
    %422 = vector.extract_strided_slice %384 {offsets = [16, 0], sizes = [8, 128], strides = [1, 1]} : vector<64x128xf32> to vector<8x128xf32>
    %c4_i32_156 = arith.constant 4 : i32
    %423 = tpu.dynamic_rotate %422 by %c4_i32_156 dim 0 : vector<8x128xf32>, i32 -> vector<8x128xf32>
    %424 = arith.addf %421, %423 : vector<8x128xf32>
    %425 = vector.broadcast %385 : vector<1x128xf32> to vector<8x128xf32>
    %426 = arith.addf %424, %425 : vector<8x128xf32>
    %c40_157 = arith.constant 40 : index
    %c0_158 = arith.constant 0 : index
    %427 = vector.load %arg15[%c40_157, %c0_158] : memref<64x128xf32, #tpu.memory_space<vmem>>, vector<8x128xf32>
    tpu.vector_store %arg15[%c40_157, %c0_158], %426 {strides = array<i32>} : memref<64x128xf32, #tpu.memory_space<vmem>>, vector<8x128xf32>,
    %428 = vector.extract_strided_slice %384 {offsets = [48, 0], sizes = [8, 128], strides = [1, 1]} : vector<64x128xf32> to vector<8x128xf32>
    %429 = vector.extract_strided_slice %384 {offsets = [8, 0], sizes = [8, 128], strides = [1, 1]} : vector<64x128xf32> to vector<8x128xf32>
    %c4_i32_159 = arith.constant 4 : i32
    %430 = tpu.dynamic_rotate %429 by %c4_i32_159 dim 0 : vector<8x128xf32>, i32 -> vector<8x128xf32>
    %431 = arith.addf %428, %430 : vector<8x128xf32>
    %432 = vector.broadcast %385 : vector<1x128xf32> to vector<8x128xf32>
    %433 = arith.addf %431, %432 : vector<8x128xf32>
    %c48_160 = arith.constant 48 : index
    %c0_161 = arith.constant 0 : index
    %434 = vector.load %arg15[%c48_160, %c0_161] : memref<64x128xf32, #tpu.memory_space<vmem>>, vector<8x128xf32>
    tpu.vector_store %arg15[%c48_160, %c0_161], %433 {strides = array<i32>} : memref<64x128xf32, #tpu.memory_space<vmem>>, vector<8x128xf32>,
    %435 = vector.extract_strided_slice %384 {offsets = [56, 0], sizes = [8, 128], strides = [1, 1]} : vector<64x128xf32> to vector<8x128xf32>
    %436 = vector.extract_strided_slice %384 {offsets = [0, 0], sizes = [8, 128], strides = [1, 1]} : vector<64x128xf32> to vector<8x128xf32>
    %c4_i32_162 = arith.constant 4 : i32
    %437 = tpu.dynamic_rotate %436 by %c4_i32_162 dim 0 : vector<8x128xf32>, i32 -> vector<8x128xf32>
    %438 = arith.addf %435, %437 : vector<8x128xf32>
    %439 = vector.broadcast %385 : vector<1x128xf32> to vector<8x128xf32>
    %440 = arith.addf %438, %439 : vector<8x128xf32>
    %c56_163 = arith.constant 56 : index
    %c0_164 = arith.constant 0 : index
    %441 = vector.load %arg15[%c56_163, %c0_164] : memref<64x128xf32, #tpu.memory_space<vmem>>, vector<8x128xf32>
    tpu.vector_store %arg15[%c56_163, %c0_164], %440 {strides = array<i32>} : memref<64x128xf32, #tpu.memory_space<vmem>>, vector<8x128xf32>,
    %c0_165 = arith.constant 0 : index
    %c0_166 = arith.constant 0 : index
    %442 = vector.load %arg8[%c0_165, %c0_166] : memref<32x128xbf16, #tpu.memory_space<vmem>>, vector<32x128xbf16>
    %cst_167 = arith.constant 0.000000e+00 : f32
    %443 = vector.broadcast %cst_167 : f32 to vector<8x32xf32>
    %cst_168 = arith.constant 0.000000e+00 : f32
    %444 = vector.broadcast %cst_168 : f32 to vector<8x32xf32>
    %c0_169 = arith.constant 0 : index
    %c0_170 = arith.constant 0 : index
    %445 = vector.load %arg15[%c0_169, %c0_170] : memref<64x128xf32, #tpu.memory_space<vmem>>, vector<8x128xf32>
    %446 = arith.truncf %443 : vector<8x32xf32> to vector<8x32xbf16>
    %cst_171 = arith.constant dense<0.000000e+00> : vector<8x128xf32>
    %447 = tpu.matmul %446, %442, %cst_171 {dimension_numbers = #tpu.dot_dimension_numbers<[1], [0], [0], [1], [0, 0, 1, 1], [], []>} : vector<8x32xbf16>, vector<32x128xbf16>, vector<8x128xf32> -> vector<8x128xf32>
    %448 = arith.addf %445, %447 : vector<8x128xf32>
    %449 = arith.negf %448 : vector<8x128xf32>
    %450 = math.exp %449 : vector<8x128xf32>
    %cst_172 = arith.constant 1.000000e+00 : f32
    %451 = vector.broadcast %cst_172 : f32 to vector<8x128xf32>
    %452 = arith.addf %451, %450 : vector<8x128xf32>
    %453 = arith.divf %451, %452 : vector<8x128xf32>
    %454 = math.tanh %448 : vector<8x128xf32>
    %455 = vector.extract_strided_slice %453 {offsets = [0, 32], sizes = [8, 32], strides = [1, 1]} : vector<8x128xf32> to vector<8x32xf32>
    %456 = arith.mulf %455, %444 : vector<8x32xf32>
    %457 = vector.extract_strided_slice %453 {offsets = [0, 0], sizes = [8, 32], strides = [1, 1]} : vector<8x128xf32> to vector<8x32xf32>
    %458 = vector.extract_strided_slice %454 {offsets = [0, 64], sizes = [8, 32], strides = [1, 1]} : vector<8x128xf32> to vector<8x32xf32>
    %459 = arith.mulf %457, %458 : vector<8x32xf32>
    %460 = arith.addf %456, %459 : vector<8x32xf32>
    %461 = vector.extract_strided_slice %453 {offsets = [0, 96], sizes = [8, 32], strides = [1, 1]} : vector<8x128xf32> to vector<8x32xf32>
    %462 = math.tanh %460 : vector<8x32xf32>
    %463 = arith.mulf %461, %462 : vector<8x32xf32>
    %c8_173 = arith.constant 8 : index
    %c0_174 = arith.constant 0 : index
    %464 = vector.load %arg15[%c8_173, %c0_174] : memref<64x128xf32, #tpu.memory_space<vmem>>, vector<8x128xf32>
    %465 = arith.truncf %463 : vector<8x32xf32> to vector<8x32xbf16>
    %cst_175 = arith.constant dense<0.000000e+00> : vector<8x128xf32>
    %466 = tpu.matmul %465, %442, %cst_175 {dimension_numbers = #tpu.dot_dimension_numbers<[1], [0], [0], [1], [0, 0, 1, 1], [], []>} : vector<8x32xbf16>, vector<32x128xbf16>, vector<8x128xf32> -> vector<8x128xf32>
    %467 = arith.addf %464, %466 : vector<8x128xf32>
    %468 = arith.negf %467 : vector<8x128xf32>
    %469 = math.exp %468 : vector<8x128xf32>
    %cst_176 = arith.constant 1.000000e+00 : f32
    %470 = vector.broadcast %cst_176 : f32 to vector<8x128xf32>
    %471 = arith.addf %470, %469 : vector<8x128xf32>
    %472 = arith.divf %470, %471 : vector<8x128xf32>
    %473 = math.tanh %467 : vector<8x128xf32>
    %474 = vector.extract_strided_slice %472 {offsets = [0, 32], sizes = [8, 32], strides = [1, 1]} : vector<8x128xf32> to vector<8x32xf32>
    %475 = arith.mulf %474, %460 : vector<8x32xf32>
    %476 = vector.extract_strided_slice %472 {offsets = [0, 0], sizes = [8, 32], strides = [1, 1]} : vector<8x128xf32> to vector<8x32xf32>
    %477 = vector.extract_strided_slice %473 {offsets = [0, 64], sizes = [8, 32], strides = [1, 1]} : vector<8x128xf32> to vector<8x32xf32>
    %478 = arith.mulf %476, %477 : vector<8x32xf32>
    %479 = arith.addf %475, %478 : vector<8x32xf32>
    %480 = vector.extract_strided_slice %472 {offsets = [0, 96], sizes = [8, 32], strides = [1, 1]} : vector<8x128xf32> to vector<8x32xf32>
    %481 = math.tanh %479 : vector<8x32xf32>
    %482 = arith.mulf %480, %481 : vector<8x32xf32>
    %c16_177 = arith.constant 16 : index
    %c0_178 = arith.constant 0 : index
    %483 = vector.load %arg15[%c16_177, %c0_178] : memref<64x128xf32, #tpu.memory_space<vmem>>, vector<8x128xf32>
    %484 = arith.truncf %482 : vector<8x32xf32> to vector<8x32xbf16>
    %cst_179 = arith.constant dense<0.000000e+00> : vector<8x128xf32>
    %485 = tpu.matmul %484, %442, %cst_179 {dimension_numbers = #tpu.dot_dimension_numbers<[1], [0], [0], [1], [0, 0, 1, 1], [], []>} : vector<8x32xbf16>, vector<32x128xbf16>, vector<8x128xf32> -> vector<8x128xf32>
    %486 = arith.addf %483, %485 : vector<8x128xf32>
    %487 = arith.negf %486 : vector<8x128xf32>
    %488 = math.exp %487 : vector<8x128xf32>
    %cst_180 = arith.constant 1.000000e+00 : f32
    %489 = vector.broadcast %cst_180 : f32 to vector<8x128xf32>
    %490 = arith.addf %489, %488 : vector<8x128xf32>
    %491 = arith.divf %489, %490 : vector<8x128xf32>
    %492 = math.tanh %486 : vector<8x128xf32>
    %493 = vector.extract_strided_slice %491 {offsets = [0, 32], sizes = [8, 32], strides = [1, 1]} : vector<8x128xf32> to vector<8x32xf32>
    %494 = arith.mulf %493, %479 : vector<8x32xf32>
    %495 = vector.extract_strided_slice %491 {offsets = [0, 0], sizes = [8, 32], strides = [1, 1]} : vector<8x128xf32> to vector<8x32xf32>
    %496 = vector.extract_strided_slice %492 {offsets = [0, 64], sizes = [8, 32], strides = [1, 1]} : vector<8x128xf32> to vector<8x32xf32>
    %497 = arith.mulf %495, %496 : vector<8x32xf32>
    %498 = arith.addf %494, %497 : vector<8x32xf32>
    %499 = vector.extract_strided_slice %491 {offsets = [0, 96], sizes = [8, 32], strides = [1, 1]} : vector<8x128xf32> to vector<8x32xf32>
    %500 = math.tanh %498 : vector<8x32xf32>
    %501 = arith.mulf %499, %500 : vector<8x32xf32>
    %c24_181 = arith.constant 24 : index
    %c0_182 = arith.constant 0 : index
    %502 = vector.load %arg15[%c24_181, %c0_182] : memref<64x128xf32, #tpu.memory_space<vmem>>, vector<8x128xf32>
    %503 = arith.truncf %501 : vector<8x32xf32> to vector<8x32xbf16>
    %cst_183 = arith.constant dense<0.000000e+00> : vector<8x128xf32>
    %504 = tpu.matmul %503, %442, %cst_183 {dimension_numbers = #tpu.dot_dimension_numbers<[1], [0], [0], [1], [0, 0, 1, 1], [], []>} : vector<8x32xbf16>, vector<32x128xbf16>, vector<8x128xf32> -> vector<8x128xf32>
    %505 = arith.addf %502, %504 : vector<8x128xf32>
    %506 = arith.negf %505 : vector<8x128xf32>
    %507 = math.exp %506 : vector<8x128xf32>
    %cst_184 = arith.constant 1.000000e+00 : f32
    %508 = vector.broadcast %cst_184 : f32 to vector<8x128xf32>
    %509 = arith.addf %508, %507 : vector<8x128xf32>
    %510 = arith.divf %508, %509 : vector<8x128xf32>
    %511 = math.tanh %505 : vector<8x128xf32>
    %512 = vector.extract_strided_slice %510 {offsets = [0, 32], sizes = [8, 32], strides = [1, 1]} : vector<8x128xf32> to vector<8x32xf32>
    %513 = arith.mulf %512, %498 : vector<8x32xf32>
    %514 = vector.extract_strided_slice %510 {offsets = [0, 0], sizes = [8, 32], strides = [1, 1]} : vector<8x128xf32> to vector<8x32xf32>
    %515 = vector.extract_strided_slice %511 {offsets = [0, 64], sizes = [8, 32], strides = [1, 1]} : vector<8x128xf32> to vector<8x32xf32>
    %516 = arith.mulf %514, %515 : vector<8x32xf32>
    %517 = arith.addf %513, %516 : vector<8x32xf32>
    %518 = vector.extract_strided_slice %510 {offsets = [0, 96], sizes = [8, 32], strides = [1, 1]} : vector<8x128xf32> to vector<8x32xf32>
    %519 = math.tanh %517 : vector<8x32xf32>
    %520 = arith.mulf %518, %519 : vector<8x32xf32>
    %c32_185 = arith.constant 32 : index
    %c0_186 = arith.constant 0 : index
    %521 = vector.load %arg15[%c32_185, %c0_186] : memref<64x128xf32, #tpu.memory_space<vmem>>, vector<8x128xf32>
    %522 = arith.truncf %520 : vector<8x32xf32> to vector<8x32xbf16>
    %cst_187 = arith.constant dense<0.000000e+00> : vector<8x128xf32>
    %523 = tpu.matmul %522, %442, %cst_187 {dimension_numbers = #tpu.dot_dimension_numbers<[1], [0], [0], [1], [0, 0, 1, 1], [], []>} : vector<8x32xbf16>, vector<32x128xbf16>, vector<8x128xf32> -> vector<8x128xf32>
    %524 = arith.addf %521, %523 : vector<8x128xf32>
    %525 = arith.negf %524 : vector<8x128xf32>
    %526 = math.exp %525 : vector<8x128xf32>
    %cst_188 = arith.constant 1.000000e+00 : f32
    %527 = vector.broadcast %cst_188 : f32 to vector<8x128xf32>
    %528 = arith.addf %527, %526 : vector<8x128xf32>
    %529 = arith.divf %527, %528 : vector<8x128xf32>
    %530 = math.tanh %524 : vector<8x128xf32>
    %531 = vector.extract_strided_slice %529 {offsets = [0, 32], sizes = [8, 32], strides = [1, 1]} : vector<8x128xf32> to vector<8x32xf32>
    %532 = arith.mulf %531, %517 : vector<8x32xf32>
    %533 = vector.extract_strided_slice %529 {offsets = [0, 0], sizes = [8, 32], strides = [1, 1]} : vector<8x128xf32> to vector<8x32xf32>
    %534 = vector.extract_strided_slice %530 {offsets = [0, 64], sizes = [8, 32], strides = [1, 1]} : vector<8x128xf32> to vector<8x32xf32>
    %535 = arith.mulf %533, %534 : vector<8x32xf32>
    %536 = arith.addf %532, %535 : vector<8x32xf32>
    %537 = vector.extract_strided_slice %529 {offsets = [0, 96], sizes = [8, 32], strides = [1, 1]} : vector<8x128xf32> to vector<8x32xf32>
    %538 = math.tanh %536 : vector<8x32xf32>
    %539 = arith.mulf %537, %538 : vector<8x32xf32>
    %c40_189 = arith.constant 40 : index
    %c0_190 = arith.constant 0 : index
    %540 = vector.load %arg15[%c40_189, %c0_190] : memref<64x128xf32, #tpu.memory_space<vmem>>, vector<8x128xf32>
    %541 = arith.truncf %539 : vector<8x32xf32> to vector<8x32xbf16>
    %cst_191 = arith.constant dense<0.000000e+00> : vector<8x128xf32>
    %542 = tpu.matmul %541, %442, %cst_191 {dimension_numbers = #tpu.dot_dimension_numbers<[1], [0], [0], [1], [0, 0, 1, 1], [], []>} : vector<8x32xbf16>, vector<32x128xbf16>, vector<8x128xf32> -> vector<8x128xf32>
    %543 = arith.addf %540, %542 : vector<8x128xf32>
    %544 = arith.negf %543 : vector<8x128xf32>
    %545 = math.exp %544 : vector<8x128xf32>
    %cst_192 = arith.constant 1.000000e+00 : f32
    %546 = vector.broadcast %cst_192 : f32 to vector<8x128xf32>
    %547 = arith.addf %546, %545 : vector<8x128xf32>
    %548 = arith.divf %546, %547 : vector<8x128xf32>
    %549 = math.tanh %543 : vector<8x128xf32>
    %550 = vector.extract_strided_slice %548 {offsets = [0, 32], sizes = [8, 32], strides = [1, 1]} : vector<8x128xf32> to vector<8x32xf32>
    %551 = arith.mulf %550, %536 : vector<8x32xf32>
    %552 = vector.extract_strided_slice %548 {offsets = [0, 0], sizes = [8, 32], strides = [1, 1]} : vector<8x128xf32> to vector<8x32xf32>
    %553 = vector.extract_strided_slice %549 {offsets = [0, 64], sizes = [8, 32], strides = [1, 1]} : vector<8x128xf32> to vector<8x32xf32>
    %554 = arith.mulf %552, %553 : vector<8x32xf32>
    %555 = arith.addf %551, %554 : vector<8x32xf32>
    %556 = vector.extract_strided_slice %548 {offsets = [0, 96], sizes = [8, 32], strides = [1, 1]} : vector<8x128xf32> to vector<8x32xf32>
    %557 = math.tanh %555 : vector<8x32xf32>
    %558 = arith.mulf %556, %557 : vector<8x32xf32>
    %c48_193 = arith.constant 48 : index
    %c0_194 = arith.constant 0 : index
    %559 = vector.load %arg15[%c48_193, %c0_194] : memref<64x128xf32, #tpu.memory_space<vmem>>, vector<8x128xf32>
    %560 = arith.truncf %558 : vector<8x32xf32> to vector<8x32xbf16>
    %cst_195 = arith.constant dense<0.000000e+00> : vector<8x128xf32>
    %561 = tpu.matmul %560, %442, %cst_195 {dimension_numbers = #tpu.dot_dimension_numbers<[1], [0], [0], [1], [0, 0, 1, 1], [], []>} : vector<8x32xbf16>, vector<32x128xbf16>, vector<8x128xf32> -> vector<8x128xf32>
    %562 = arith.addf %559, %561 : vector<8x128xf32>
    %563 = arith.negf %562 : vector<8x128xf32>
    %564 = math.exp %563 : vector<8x128xf32>
    %cst_196 = arith.constant 1.000000e+00 : f32
    %565 = vector.broadcast %cst_196 : f32 to vector<8x128xf32>
    %566 = arith.addf %565, %564 : vector<8x128xf32>
    %567 = arith.divf %565, %566 : vector<8x128xf32>
    %568 = math.tanh %562 : vector<8x128xf32>
    %569 = vector.extract_strided_slice %567 {offsets = [0, 32], sizes = [8, 32], strides = [1, 1]} : vector<8x128xf32> to vector<8x32xf32>
    %570 = arith.mulf %569, %555 : vector<8x32xf32>
    %571 = vector.extract_strided_slice %567 {offsets = [0, 0], sizes = [8, 32], strides = [1, 1]} : vector<8x128xf32> to vector<8x32xf32>
    %572 = vector.extract_strided_slice %568 {offsets = [0, 64], sizes = [8, 32], strides = [1, 1]} : vector<8x128xf32> to vector<8x32xf32>
    %573 = arith.mulf %571, %572 : vector<8x32xf32>
    %574 = arith.addf %570, %573 : vector<8x32xf32>
    %575 = vector.extract_strided_slice %567 {offsets = [0, 96], sizes = [8, 32], strides = [1, 1]} : vector<8x128xf32> to vector<8x32xf32>
    %576 = math.tanh %574 : vector<8x32xf32>
    %577 = arith.mulf %575, %576 : vector<8x32xf32>
    %c56_197 = arith.constant 56 : index
    %c0_198 = arith.constant 0 : index
    %578 = vector.load %arg15[%c56_197, %c0_198] : memref<64x128xf32, #tpu.memory_space<vmem>>, vector<8x128xf32>
    %579 = arith.truncf %577 : vector<8x32xf32> to vector<8x32xbf16>
    %cst_199 = arith.constant dense<0.000000e+00> : vector<8x128xf32>
    %580 = tpu.matmul %579, %442, %cst_199 {dimension_numbers = #tpu.dot_dimension_numbers<[1], [0], [0], [1], [0, 0, 1, 1], [], []>} : vector<8x32xbf16>, vector<32x128xbf16>, vector<8x128xf32> -> vector<8x128xf32>
    %581 = arith.addf %578, %580 : vector<8x128xf32>
    %582 = arith.negf %581 : vector<8x128xf32>
    %583 = math.exp %582 : vector<8x128xf32>
    %cst_200 = arith.constant 1.000000e+00 : f32
    %584 = vector.broadcast %cst_200 : f32 to vector<8x128xf32>
    %585 = arith.addf %584, %583 : vector<8x128xf32>
    %586 = arith.divf %584, %585 : vector<8x128xf32>
    %587 = math.tanh %581 : vector<8x128xf32>
    %588 = vector.extract_strided_slice %586 {offsets = [0, 32], sizes = [8, 32], strides = [1, 1]} : vector<8x128xf32> to vector<8x32xf32>
    %589 = arith.mulf %588, %574 : vector<8x32xf32>
    %590 = vector.extract_strided_slice %586 {offsets = [0, 0], sizes = [8, 32], strides = [1, 1]} : vector<8x128xf32> to vector<8x32xf32>
    %591 = vector.extract_strided_slice %587 {offsets = [0, 64], sizes = [8, 32], strides = [1, 1]} : vector<8x128xf32> to vector<8x32xf32>
    %592 = arith.mulf %590, %591 : vector<8x32xf32>
    %593 = arith.addf %589, %592 : vector<8x32xf32>
    %594 = vector.extract_strided_slice %586 {offsets = [0, 96], sizes = [8, 32], strides = [1, 1]} : vector<8x128xf32> to vector<8x32xf32>
    %595 = math.tanh %593 : vector<8x32xf32>
    %596 = arith.mulf %594, %595 : vector<8x32xf32>
    %c0_201 = arith.constant 0 : index
    %c0_202 = arith.constant 0 : index
    %597 = vector.load %arg10[%c0_201, %c0_202] : memref<32x4xf32, #tpu.memory_space<vmem>>, vector<32x4xf32>
    %cst_203 = arith.constant dense<0.000000e+00> : vector<8x4xf32>
    %598 = tpu.matmul %596, %597, %cst_203 {dimension_numbers = #tpu.dot_dimension_numbers<[1], [0], [0], [1], [0, 0, 1, 1], [], []>} : vector<8x32xf32>, vector<32x4xf32>, vector<8x4xf32> -> vector<8x4xf32>
    %c0_204 = arith.constant 0 : index
    %c0_205 = arith.constant 0 : index
    %599 = vector.load %arg11[%c0_204, %c0_205] : memref<1x4xf32, #tpu.memory_space<vmem>>, vector<1x4xf32>
    %600 = vector.broadcast %599 : vector<1x4xf32> to vector<8x4xf32>
    %601 = arith.addf %598, %600 : vector<8x4xf32>
    %c0_206 = arith.constant 0 : index
    %c0_207 = arith.constant 0 : index
    %602 = vector.load %arg14[%c0_206, %c0_207] : memref<8x4xf32, #tpu.memory_space<vmem>>, vector<8x4xf32>
    tpu.vector_store %arg14[%c0_206, %c0_207], %601 {strides = array<i32>} : memref<8x4xf32, #tpu.memory_space<vmem>>, vector<8x4xf32>,
    return
  }
}

</mosaic_0001>

<llo_original>
// kernel: news_classifier_elmo_forward.1
$region0: #{news_classifier_elmo_forward.1}
  #allocation0 [shape = 'u32[]', space=smem, size = 0x4, offset = 0x4, fixed_abs, tag = 'smem constant byte address 0x4 - core index']
  #allocation1 [shape = 'u32[144,128]{1,0:T(1,128)}', space=vmem, size = 0x12000, scoped, tag = 'internal scratch']
  #allocation2 [shape = 'f32[64,128]{1,0:T(8,128)}', space=vmem, size = 0x8000, scoped, tag = 'scratch operand']
  #allocation3 [shape = 'f32[64,32]{1,0:T(8,128)}', space=vmem, size = 0x8000, scoped, tag = 'scratch operand']
  #allocation4 [shape = 'f32[64,32]{1,0:T(8,128)}', space=vmem, size = 0x8000, scoped, tag = 'scratch operand']
  %s0 = inlined_call_operand.vmem [shape: bf16[64,64], index: 0, kind: input, shape index: {}]
  %s1 = inlined_call_operand.vmem [shape: bf16[64,128], index: 1, kind: input, shape index: {}]
  %s2 = inlined_call_operand.vmem [shape: bf16[64,128], index: 2, kind: input, shape index: {}]
  %s3 = inlined_call_operand.vmem [shape: f32[64,128], index: 3, kind: input, shape index: {}]
  %s4 = inlined_call_operand.vmem [shape: bf16[64,128], index: 4, kind: input, shape index: {}]
  %s5 = inlined_call_operand.vmem [shape: bf16[64,128], index: 5, kind: input, shape index: {}]
  %s6 = inlined_call_operand.vmem [shape: f32[64,128], index: 6, kind: input, shape index: {}]
  %s7 = inlined_call_operand.vmem [shape: bf16[128,128], index: 7, kind: input, shape index: {}]
  %s8 = inlined_call_operand.vmem [shape: bf16[32,128], index: 8, kind: input, shape index: {}]
  %s9 = inlined_call_operand.vmem [shape: f32[1,128], index: 9, kind: input, shape index: {}]
  %s10 = inlined_call_operand.vmem [shape: f32[32,4], index: 10, kind: input, shape index: {}]
  %s11 = inlined_call_operand.vmem [shape: f32[1,4], index: 11, kind: input, shape index: {}]
  %s12 = inlined_call_operand.vmem [shape: f32[64,64], index: 12, kind: input, shape index: {}]
  %s13 = inlined_call_operand.vmem [shape: f32[64,128], index: 13, kind: input, shape index: {}]
  %s14 = inlined_call_operand.vmem [shape: f32[8,4], index: 14, kind: output, shape index: {}]
  %s15 = sld [smem:[#allocation0]]
  $region66: #{news_classifier_elmo_forward.1} parent=0
    _
  %s17 = ssub.s32 1, %s15
  %s18 = scalar_select 0, %s17, %s15
  // Predicated region
  $region2: #{news_classifier_elmo_forward.1} parent=0 // pred_check
    _
  $region3: #{news_classifier_elmo_forward.1} parent=0 // pred_check_branch
    %20 = sbr.rel (0) target = $region5
  $region4: #{news_classifier_elmo_forward.1} parent=0 // pred_region
    _
  $region5: #{news_classifier_elmo_forward.1} parent=0 // pred_fallthru
    _
  // Predicated region
  $region6: #{news_classifier_elmo_forward.1} parent=0 // pred_check
    _
  $region7: #{news_classifier_elmo_forward.1} parent=0 // pred_check_branch
    %22 = sbr.rel (0) target = $region9
  $region8: #{news_classifier_elmo_forward.1} parent=0 // pred_region
    _
  $region9: #{news_classifier_elmo_forward.1} parent=0 // pred_fallthru
    _
  // Predicated region
  $region10: #{news_classifier_elmo_forward.1} parent=0 // pred_check
    _
  $region11: #{news_classifier_elmo_forward.1} parent=0 // pred_check_branch
    %24 = sbr.rel (0) target = $region13
  $region12: #{news_classifier_elmo_forward.1} parent=0 // pred_region
    _
  $region13: #{news_classifier_elmo_forward.1} parent=0 // pred_fallthru
    _
  // Predicated region
  $region14: #{news_classifier_elmo_forward.1} parent=0 // pred_check
    _
  $region15: #{news_classifier_elmo_forward.1} parent=0 // pred_check_branch
    %26 = sbr.rel (0) target = $region17
  $region16: #{news_classifier_elmo_forward.1} parent=0 // pred_region
    _
  $region17: #{news_classifier_elmo_forward.1} parent=0 // pred_fallthru
    _
  // Predicated region
  $region18: #{news_classifier_elmo_forward.1} parent=0 // pred_check
    _
  $region19: #{news_classifier_elmo_forward.1} parent=0 // pred_check_branch
    %28 = sbr.rel (0) target = $region21
  $region20: #{news_classifier_elmo_forward.1} parent=0 // pred_region
    _
  $region21: #{news_classifier_elmo_forward.1} parent=0 // pred_fallthru
    _
  // Predicated region
  $region22: #{news_classifier_elmo_forward.1} parent=0 // pred_check
    _
  $region23: #{news_classifier_elmo_forward.1} parent=0 // pred_check_branch
    %30 = sbr.rel (0) target = $region25
  $region24: #{news_classifier_elmo_forward.1} parent=0 // pred_region
    _
  $region25: #{news_classifier_elmo_forward.1} parent=0 // pred_fallthru
    _
  // Predicated region
  $region26: #{news_classifier_elmo_forward.1} parent=0 // pred_check
    _
  $region27: #{news_classifier_elmo_forward.1} parent=0 // pred_check_branch
    %32 = sbr.rel (0) target = $region29
  $region28: #{news_classifier_elmo_forward.1} parent=0 // pred_region
    _
  $region29: #{news_classifier_elmo_forward.1} parent=0 // pred_fallthru
    _
  // Predicated region
  $region30: #{news_classifier_elmo_forward.1} parent=0 // pred_check
    _
  $region31: #{news_classifier_elmo_forward.1} parent=0 // pred_check_branch
    %34 = sbr.rel (0) target = $region33
  $region32: #{news_classifier_elmo_forward.1} parent=0 // pred_region
    _
  $region33: #{news_classifier_elmo_forward.1} parent=0 // pred_fallthru
    _
  // Predicated region
  $region34: #{news_classifier_elmo_forward.1} parent=0 // pred_check
    _
  $region35: #{news_classifier_elmo_forward.1} parent=0 // pred_check_branch
    %36 = sbr.rel (0) target = $region37
  $region36: #{news_classifier_elmo_forward.1} parent=0 // pred_region
    _
  $region37: #{news_classifier_elmo_forward.1} parent=0 // pred_fallthru
    _
  // Predicated region
  $region38: #{news_classifier_elmo_forward.1} parent=0 // pred_check
    _
  $region39: #{news_classifier_elmo_forward.1} parent=0 // pred_check_branch
    %38 = sbr.rel (0) target = $region41
  $region40: #{news_classifier_elmo_forward.1} parent=0 // pred_region
    _
  $region41: #{news_classifier_elmo_forward.1} parent=0 // pred_fallthru
    _
  // Predicated region
  $region42: #{news_classifier_elmo_forward.1} parent=0 // pred_check
    _
  $region43: #{news_classifier_elmo_forward.1} parent=0 // pred_check_branch
    %40 = sbr.rel (0) target = $region45
  $region44: #{news_classifier_elmo_forward.1} parent=0 // pred_region
    _
  $region45: #{news_classifier_elmo_forward.1} parent=0 // pred_fallthru
    _
  // Predicated region
  $region46: #{news_classifier_elmo_forward.1} parent=0 // pred_check
    _
  $region47: #{news_classifier_elmo_forward.1} parent=0 // pred_check_branch
    %42 = sbr.rel (0) target = $region49
  $region48: #{news_classifier_elmo_forward.1} parent=0 // pred_region
    _
  $region49: #{news_classifier_elmo_forward.1} parent=0 // pred_fallthru
    _
  // Predicated region
  $region50: #{news_classifier_elmo_forward.1} parent=0 // pred_check
    _
  $region51: #{news_classifier_elmo_forward.1} parent=0 // pred_check_branch
    %44 = sbr.rel (0) target = $region53
  $region52: #{news_classifier_elmo_forward.1} parent=0 // pred_region
    _
  $region53: #{news_classifier_elmo_forward.1} parent=0 // pred_fallthru
    _
  // Predicated region
  $region54: #{news_classifier_elmo_forward.1} parent=0 // pred_check
    _
  $region55: #{news_classifier_elmo_forward.1} parent=0 // pred_check_branch
    %46 = sbr.rel (0) target = $region57
  $region56: #{news_classifier_elmo_forward.1} parent=0 // pred_region
    _
  $region57: #{news_classifier_elmo_forward.1} parent=0 // pred_fallthru
    _
  %v48 = vld [vmem:[%s12] sm:$0xff]
  %v49 = vld [vmem:[%s0] sm:$0xf]
  %v50 = vld [vmem:[%s0 + $0x4] sm:$0xf]
  %v51 = vld [vmem:[%s0 + $0x8] sm:$0xf]
  %v52 = vld [vmem:[%s0 + $0xc] sm:$0xf]
  %v53 = vld [vmem:[%s0 + $0x10] sm:$0xf]
  %v54 = vld [vmem:[%s0 + $0x14] sm:$0xf]
  %v55 = vld [vmem:[%s0 + $0x18] sm:$0xf]
  %v56 = vld [vmem:[%s0 + $0x1c] sm:$0xf]
  %v57 = vld [vmem:[%s1] sm:$0xf]
  %v58 = vld [vmem:[%s1 + $0x4] sm:$0xf]
  %v59 = vld [vmem:[%s1 + $0x8] sm:$0xf]
  %v60 = vld [vmem:[%s1 + $0xc] sm:$0xf]
  %v61 = vld [vmem:[%s1 + $0x10] sm:$0xf]
  %v62 = vld [vmem:[%s1 + $0x14] sm:$0xf]
  %v63 = vld [vmem:[%s1 + $0x18] sm:$0xf]
  %v64 = vld [vmem:[%s1 + $0x1c] sm:$0xf]
  %v65 = vld [vmem:[%s3] sm:$0xff]
  %v66 = vld [vmem:[%s3 + $0x8] sm:$0xff]
  %v67 = vld [vmem:[%s3 + $0x10] sm:$0xff]
  %v68 = vld [vmem:[%s3 + $0x18] sm:$0xff]
  %v69 = vld [vmem:[%s3 + $0x20] sm:$0xff]
  %v70 = vld [vmem:[%s3 + $0x28] sm:$0xff]
  %v71 = vld [vmem:[%s3 + $0x30] sm:$0xff]
  %v72 = vld [vmem:[%s3 + $0x38] sm:$0xff]
  %v81 = vunpack.c.l.b16 %v49
  %v82 = vunpack.c.l.b16 %v50
  %v83 = vunpack.c.l.b16 %v51
  %v84 = vunpack.c.l.b16 %v52
  %v85 = vunpack.c.l.b16 %v53
  %v86 = vunpack.c.l.b16 %v54
  %v87 = vunpack.c.l.b16 %v55
  %v88 = vunpack.c.l.b16 %v56
  %v89 = vpack.c.b16 %v82, %v81
  %v90 = vpack.c.b16 %v84, %v83
  %v91 = vpack.c.b16 %v86, %v85
  %v92 = vpack.c.b16 %v88, %v87
  %v101 = vunpack.c.l.b16 %v57
  %v102 = vunpack.c.l.b16 %v58
  %v103 = vunpack.c.l.b16 %v59
  %v104 = vunpack.c.l.b16 %v60
  %v105 = vunpack.c.l.b16 %v61
  %v106 = vunpack.c.l.b16 %v62
  %v107 = vunpack.c.l.b16 %v63
  %v108 = vunpack.c.l.b16 %v64
  %v109 = vpack.c.b16 %v102, %v101
  %v110 = vpack.c.b16 %v104, %v103
  %v111 = vpack.c.b16 %v106, %v105
  %v112 = vpack.c.b16 %v108, %v107
  %vm117 = vcmask 523264
  %v119 = vsel %vm117, %v89, 0
  %v122 = vsel %vm117, %v90, 0
  %v125 = vsel %vm117, %v91, 0
  %v128 = vsel %vm117, %v92, 0
  %130 = vmatprep.subr.bf16.mxu0 0
  %131 = vmatpush1.bf16.msra.mxu0 0
  %132 = vmatprep.subr.bf16.mxu0 0
  %133 = vmatpush1.bf16.msra.mxu0 0
  %134 = vmatprep.subr.bf16.mxu0 0
  %135 = vmatpush1.bf16.msra.mxu0 0
  %136 = vmatprep.subr.bf16.mxu0 0
  %137 = vmatpush1.bf16.msra.mxu0 0
  %138 = vmatprep.subr.bf16.mxu0 0
  %139 = vmatpush1.bf16.msra.mxu0 %v112
  %140 = vmatprep.subr.bf16.mxu0 0
  %141 = vmatpush1.bf16.msra.mxu0 %v111
  %142 = vmatprep.subr.bf16.mxu0 0
  %143 = vmatpush1.bf16.msra.mxu0 %v110
  %144 = vmatprep.subr.bf16.mxu0 0
  %145 = vmatpush1.bf16.msra.mxu0 %v109
  %146 = vmatprep.subr.bf16.mxu0 0
  %147 = vmatpush2.bf16.msra.mxu0 0
  %148 = vmatprep.subr.bf16.mxu0 0
  %149 = vmatpush2.bf16.msra.mxu0 0
  %150 = vmatprep.subr.bf16.mxu0 0
  %151 = vmatpush2.bf16.msra.mxu0 0
  %152 = vmatprep.subr.bf16.mxu0 0
  %153 = vmatpush2.bf16.msra.mxu0 0
  %154 = vmatprep.subr.bf16.mxu0 0
  %155 = vmatpush2.bf16.msra.mxu0 0
  %156 = vmatprep.subr.bf16.mxu0 0
  %157 = vmatpush2.bf16.msra.mxu0 0
  %158 = vmatprep.subr.bf16.mxu0 0
  %159 = vmatpush2.bf16.msra.mxu0 0
  %160 = vmatprep.subr.bf16.mxu0 0
  %161 = vmatpush2.bf16.msra.mxu0 0
  %162 = vmatprep.mubr.bf16.mxu0 0
  %163 = vmatmul.mubr.bf16.gmra.mxu0 %v119
  %v164 = vpop.f32.mrf.mxu0
  %v165 = vadd.f32 %v65, %v164
  %v166 = vpop.f32.mrf.mxu0
  %v167 = vpop.f32.mrf.mxu0
  %v168 = vadd.f32 %v66, %v167
  %v169 = vpop.f32.mrf.mxu0
  %170 = vmatprep.mubr.bf16.mxu0 0
  %171 = vmatmul.mubr.bf16.gmra.mxu0 %v122
  %v172 = vpop.f32.mrf.mxu0
  %v173 = vadd.f32 %v67, %v172
  %v174 = vpop.f32.mrf.mxu0
  %v175 = vpop.f32.mrf.mxu0
  %v176 = vadd.f32 %v68, %v175
  %v177 = vpop.f32.mrf.mxu0
  %178 = vmatprep.mubr.bf16.mxu0 0
  %179 = vmatmul.mubr.bf16.gmra.mxu0 %v125
  %v180 = vpop.f32.mrf.mxu0
  %v181 = vadd.f32 %v69, %v180
  %v182 = vpop.f32.mrf.mxu0
  %v183 = vpop.f32.mrf.mxu0
  %v184 = vadd.f32 %v70, %v183
  %v185 = vpop.f32.mrf.mxu0
  %186 = vmatprep.mubr.bf16.mxu0 0
  %187 = vmatmul.mubr.bf16.gmra.mxu0 %v128
  %v188 = vpop.f32.mrf.mxu0
  %v189 = vadd.f32 %v71, %v188
  %v190 = vpop.f32.mrf.mxu0
  %v191 = vpop.f32.mrf.mxu0
  %v192 = vadd.f32 %v72, %v191
  %v193 = vpop.f32.mrf.mxu0
  %194 = vdwg.mxu0
  %195 = vst [vmem:[#allocation2] sm:$0xff] %v165
  %196 = vst [vmem:[#allocation2 + $0x8] sm:$0xff] %v168
  %197 = vst [vmem:[#allocation2 + $0x10] sm:$0xff] %v173
  %198 = vst [vmem:[#allocation2 + $0x18] sm:$0xff] %v176
  %199 = vst [vmem:[#allocation2 + $0x20] sm:$0xff] %v181
  %200 = vst [vmem:[#allocation2 + $0x28] sm:$0xff] %v184
  %201 = vst [vmem:[#allocation2 + $0x30] sm:$0xff] %v189
  %202 = vst [vmem:[#allocation2 + $0x38] sm:$0xff] %v192
  %v203 = vld [vmem:[%s2] sm:$0xf]
  %v204 = vld [vmem:[%s2 + $0x4] sm:$0xf]
  %v205 = vld [vmem:[%s2 + $0x8] sm:$0xf]
  %v206 = vld [vmem:[%s2 + $0xc] sm:$0xf]
  %v207 = vld [vmem:[%s2 + $0x10] sm:$0xf]
  %v208 = vld [vmem:[%s2 + $0x14] sm:$0xf]
  %v209 = vld [vmem:[%s2 + $0x18] sm:$0xf]
  %v210 = vld [vmem:[%s2 + $0x1c] sm:$0xf]
  %v211 = vld [vmem:[#allocation2] sm:$0xff]
  %v220 = vunpack.c.l.b16 %v203
  %v221 = vunpack.c.l.b16 %v204
  %v222 = vunpack.c.l.b16 %v205
  %v223 = vunpack.c.l.b16 %v206
  %v224 = vunpack.c.l.b16 %v207
  %v225 = vunpack.c.l.b16 %v208
  %v226 = vunpack.c.l.b16 %v209
  %v227 = vunpack.c.l.b16 %v210
  %v228 = vpack.c.b16 %v221, %v220
  %v229 = vpack.c.b16 %v223, %v222
  %v230 = vpack.c.b16 %v225, %v224
  %v231 = vpack.c.b16 %v227, %v226
  %v237 = vsel %vm117, 0, 0
  %239 = vmatprep.subr.bf16.mxu0 0
  %240 = vmatpush1.bf16.msra.mxu0 0
  %241 = vmatprep.subr.bf16.mxu0 0
  %242 = vmatpush1.bf16.msra.mxu0 0
  %243 = vmatprep.subr.bf16.mxu0 0
  %244 = vmatpush1.bf16.msra.mxu0 0
  %245 = vmatprep.subr.bf16.mxu0 0
  %246 = vmatpush1.bf16.msra.mxu0 0
  %247 = vmatprep.subr.bf16.mxu0 0
  %248 = vmatpush1.bf16.msra.mxu0 %v231
  %249 = vmatprep.subr.bf16.mxu0 0
  %250 = vmatpush1.bf16.msra.mxu0 %v230
  %251 = vmatprep.subr.bf16.mxu0 0
  %252 = vmatpush1.bf16.msra.mxu0 %v229
  %253 = vmatprep.subr.bf16.mxu0 0
  %254 = vmatpush1.bf16.msra.mxu0 %v228
  %255 = vmatprep.subr.bf16.mxu0 0
  %256 = vmatpush2.bf16.msra.mxu0 0
  %257 = vmatprep.subr.bf16.mxu0 0
  %258 = vmatpush2.bf16.msra.mxu0 0
  %259 = vmatprep.subr.bf16.mxu0 0
  %260 = vmatpush2.bf16.msra.mxu0 0
  %261 = vmatprep.subr.bf16.mxu0 0
  %262 = vmatpush2.bf16.msra.mxu0 0
  %263 = vmatprep.subr.bf16.mxu0 0
  %264 = vmatpush2.bf16.msra.mxu0 0
  %265 = vmatprep.subr.bf16.mxu0 0
  %266 = vmatpush2.bf16.msra.mxu0 0
  %267 = vmatprep.subr.bf16.mxu0 0
  %268 = vmatpush2.bf16.msra.mxu0 0
  %269 = vmatprep.subr.bf16.mxu0 0
  %270 = vmatpush2.bf16.msra.mxu0 0
  %271 = vmatprep.mubr.bf16.mxu0 0
  %272 = vmatmul.mubr.bf16.gmra.mxu0 %v237
  %v273 = vpop.f32.mrf.mxu0
  %v274 = vadd.f32 0.0, %v273
  %v275 = vpop.f32.mrf.mxu0
  %v276 = vpop.f32.mrf.mxu0
  %v277 = vpop.f32.mrf.mxu0
  %278 = vdwg.mxu0
  %v279 = vadd.f32 %v211, %v274
  %v280 = vxor.u32 %v279, 2147483648
  %v281 = vmul.f32 %v280, 1.442695
  %v282 = vpow.pop %v281
  %v283 = vadd.f32 %v282, 1.0
  %v284 = vrcp.pop %v283
  %v285 = vmul.f32 1.0, %v284
  %v286 = vtanh.pop %v279
  %v287 = vmul.f32 %v285, 0.0
  %289 = vrot.lane.b32.xlu0 %v286, 64
  %v290 = vpop.permute.xlu0 %289
  %v292 = vmul.f32 %v285, %v290
  %294 = vrot.lane.b32.xlu0 %v292, 32
  %v295 = vpop.permute.xlu0 %294
  %v297 = vadd.f32 %v287, %v295
  %v298 = vtanh.pop %v297
  %300 = vrot.lane.b32.xlu0 %v298, 64
  %v301 = vpop.permute.xlu0 %300
  %v303 = vmul.f32 %v285, %v301
  %305 = vrot.lane.b32.xlu0 %v303, 32
  %v306 = vpop.permute.xlu0 %305
  %vm308 = vcmask 261120
  %309 = vst.msk [vmem:[#allocation3] sm:$0xff] %vm308, %v306
  %310 = vrot.lane.b32.xlu0 %v303, 64
  %v311 = vpop.permute.xlu0 %310
  %v313 = vsel %vm308, %v306, %v311
  %v314 = vmul.f32 %v313, %v48
  %v315 = vpack.c.bf16 %v314, %v314
  %v316 = vld [vmem:[#allocation2 + $0x8] sm:$0xff]
  %v318 = vsel %vm117, %v315, 0
  %320 = vmatprep.subr.bf16.mxu0 0
  %321 = vmatpush1.bf16.msra.mxu0 0
  %322 = vmatprep.subr.bf16.mxu0 0
  %323 = vmatpush1.bf16.msra.mxu0 0
  %324 = vmatprep.subr.bf16.mxu0 0
  %325 = vmatpush1.bf16.msra.mxu0 0
  %326 = vmatprep.subr.bf16.mxu0 0
  %327 = vmatpush1.bf16.msra.mxu0 0
  %328 = vmatprep.subr.bf16.mxu0 0
  %329 = vmatpush1.bf16.msra.mxu0 %v231
  %330 = vmatprep.subr.bf16.mxu0 0
  %331 = vmatpush1.bf16.msra.mxu0 %v230
  %332 = vmatprep.subr.bf16.mxu0 0
  %333 = vmatpush1.bf16.msra.mxu0 %v229
  %334 = vmatprep.subr.bf16.mxu0 0
  %335 = vmatpush1.bf16.msra.mxu0 %v228
  %336 = vmatprep.subr.bf16.mxu0 0
  %337 = vmatpush2.bf16.msra.mxu0 0
  %338 = vmatprep.subr.bf16.mxu0 0
  %339 = vmatpush2.bf16.msra.mxu0 0
  %340 = vmatprep.subr.bf16.mxu0 0
  %341 = vmatpush2.bf16.msra.mxu0 0
  %342 = vmatprep.subr.bf16.mxu0 0
  %343 = vmatpush2.bf16.msra.mxu0 0
  %344 = vmatprep.subr.bf16.mxu0 0
  %345 = vmatpush2.bf16.msra.mxu0 0
  %346 = vmatprep.subr.bf16.mxu0 0
  %347 = vmatpush2.bf16.msra.mxu0 0
  %348 = vmatprep.subr.bf16.mxu0 0
  %349 = vmatpush2.bf16.msra.mxu0 0
  %350 = vmatprep.subr.bf16.mxu0 0
  %351 = vmatpush2.bf16.msra.mxu0 0
  %352 = vmatprep.mubr.bf16.mxu0 0
  %353 = vmatmul.mubr.bf16.gmra.mxu0 %v318
  %v354 = vpop.f32.mrf.mxu0
  %v355 = vadd.f32 0.0, %v354
  %v356 = vpop.f32.mrf.mxu0
  %v357 = vpop.f32.mrf.mxu0
  %v358 = vpop.f32.mrf.mxu0
  %359 = vdwg.mxu0
  %v360 = vadd.f32 %v316, %v355
  %v361 = vxor.u32 %v360, 2147483648
  %v362 = vmul.f32 %v361, 1.442695
  %v363 = vpow.pop %v362
  %v364 = vadd.f32 %v363, 1.0
  %v365 = vrcp.pop %v364
  %v366 = vmul.f32 1.0, %v365
  %v367 = vtanh.pop %v360
  %v368 = vmul.f32 %v366, %v297
  %370 = vrot.lane.b32.xlu0 %v367, 64
  %v371 = vpop.permute.xlu0 %370
  %v373 = vmul.f32 %v366, %v371
  %375 = vrot.lane.b32.xlu0 %v373, 32
  %v376 = vpop.permute.xlu0 %375
  %v378 = vadd.f32 %v368, %v376
  %v379 = vtanh.pop %v378
  %381 = vrot.lane.b32.xlu0 %v379, 64
  %v382 = vpop.permute.xlu0 %381
  %v384 = vmul.f32 %v366, %v382
  %386 = vrot.lane.b32.xlu0 %v384, 32
  %v387 = vpop.permute.xlu0 %386
  %389 = vst.msk [vmem:[#allocation3 + $0x8] sm:$0xff] %vm308, %v387
  %390 = vrot.lane.b32.xlu0 %v384, 64
  %v391 = vpop.permute.xlu0 %390
  %v393 = vsel %vm308, %v387, %v391
  %v394 = vmul.f32 %v393, %v48
  %v395 = vpack.c.bf16 %v394, %v394
  %v396 = vld [vmem:[#allocation2 + $0x10] sm:$0xff]
  %v398 = vsel %vm117, %v395, 0
  %400 = vmatprep.subr.bf16.mxu0 0
  %401 = vmatpush1.bf16.msra.mxu0 0
  %402 = vmatprep.subr.bf16.mxu0 0
  %403 = vmatpush1.bf16.msra.mxu0 0
  %404 = vmatprep.subr.bf16.mxu0 0
  %405 = vmatpush1.bf16.msra.mxu0 0
  %406 = vmatprep.subr.bf16.mxu0 0
  %407 = vmatpush1.bf16.msra.mxu0 0
  %408 = vmatprep.subr.bf16.mxu0 0
  %409 = vmatpush1.bf16.msra.mxu0 %v231
  %410 = vmatprep.subr.bf16.mxu0 0
  %411 = vmatpush1.bf16.msra.mxu0 %v230
  %412 = vmatprep.subr.bf16.mxu0 0
  %413 = vmatpush1.bf16.msra.mxu0 %v229
  %414 = vmatprep.subr.bf16.mxu0 0
  %415 = vmatpush1.bf16.msra.mxu0 %v228
  %416 = vmatprep.subr.bf16.mxu0 0
  %417 = vmatpush2.bf16.msra.mxu0 0
  %418 = vmatprep.subr.bf16.mxu0 0
  %419 = vmatpush2.bf16.msra.mxu0 0
  %420 = vmatprep.subr.bf16.mxu0 0
  %421 = vmatpush2.bf16.msra.mxu0 0
  %422 = vmatprep.subr.bf16.mxu0 0
  %423 = vmatpush2.bf16.msra.mxu0 0
  %424 = vmatprep.subr.bf16.mxu0 0
  %425 = vmatpush2.bf16.msra.mxu0 0
  %426 = vmatprep.subr.bf16.mxu0 0
  %427 = vmatpush2.bf16.msra.mxu0 0
  %428 = vmatprep.subr.bf16.mxu0 0
  %429 = vmatpush2.bf16.msra.mxu0 0
  %430 = vmatprep.subr.bf16.mxu0 0
  %431 = vmatpush2.bf16.msra.mxu0 0
  %432 = vmatprep.mubr.bf16.mxu0 0
  %433 = vmatmul.mubr.bf16.gmra.mxu0 %v398
  %v434 = vpop.f32.mrf.mxu0
  %v435 = vadd.f32 0.0, %v434
  %v436 = vpop.f32.mrf.mxu0
  %v437 = vpop.f32.mrf.mxu0
  %v438 = vpop.f32.mrf.mxu0
  %439 = vdwg.mxu0
  %v440 = vadd.f32 %v396, %v435
  %v441 = vxor.u32 %v440, 2147483648
  %v442 = vmul.f32 %v441, 1.442695
  %v443 = vpow.pop %v442
  %v444 = vadd.f32 %v443, 1.0
  %v445 = vrcp.pop %v444
  %v446 = vmul.f32 1.0, %v445
  %v447 = vtanh.pop %v440
  %v448 = vmul.f32 %v446, %v378
  %450 = vrot.lane.b32.xlu0 %v447, 64
  %v451 = vpop.permute.xlu0 %450
  %v453 = vmul.f32 %v446, %v451
  %455 = vrot.lane.b32.xlu0 %v453, 32
  %v456 = vpop.permute.xlu0 %455
  %v458 = vadd.f32 %v448, %v456
  %v459 = vtanh.pop %v458
  %461 = vrot.lane.b32.xlu0 %v459, 64
  %v462 = vpop.permute.xlu0 %461
  %v464 = vmul.f32 %v446, %v462
  %466 = vrot.lane.b32.xlu0 %v464, 32
  %v467 = vpop.permute.xlu0 %466
  %469 = vst.msk [vmem:[#allocation3 + $0x10] sm:$0xff] %vm308, %v467
  %470 = vrot.lane.b32.xlu0 %v464, 64
  %v471 = vpop.permute.xlu0 %470
  %v473 = vsel %vm308, %v467, %v471
  %v474 = vmul.f32 %v473, %v48
  %v475 = vpack.c.bf16 %v474, %v474
  %v476 = vld [vmem:[#allocation2 + $0x18] sm:$0xff]
  %v478 = vsel %vm117, %v475, 0
  %480 = vmatprep.subr.bf16.mxu0 0
  %481 = vmatpush1.bf16.msra.mxu0 0
  %482 = vmatprep.subr.bf16.mxu0 0
  %483 = vmatpush1.bf16.msra.mxu0 0
  %484 = vmatprep.subr.bf16.mxu0 0
  %485 = vmatpush1.bf16.msra.mxu0 0
  %486 = vmatprep.subr.bf16.mxu0 0
  %487 = vmatpush1.bf16.msra.mxu0 0
  %488 = vmatprep.subr.bf16.mxu0 0
  %489 = vmatpush1.bf16.msra.mxu0 %v231
  %490 = vmatprep.subr.bf16.mxu0 0
  %491 = vmatpush1.bf16.msra.mxu0 %v230
  %492 = vmatprep.subr.bf16.mxu0 0
  %493 = vmatpush1.bf16.msra.mxu0 %v229
  %494 = vmatprep.subr.bf16.mxu0 0
  %495 = vmatpush1.bf16.msra.mxu0 %v228
  %496 = vmatprep.subr.bf16.mxu0 0
  %497 = vmatpush2.bf16.msra.mxu0 0
  %498 = vmatprep.subr.bf16.mxu0 0
  %499 = vmatpush2.bf16.msra.mxu0 0
  %500 = vmatprep.subr.bf16.mxu0 0
  %501 = vmatpush2.bf16.msra.mxu0 0
  %502 = vmatprep.subr.bf16.mxu0 0
  %503 = vmatpush2.bf16.msra.mxu0 0
  %504 = vmatprep.subr.bf16.mxu0 0
  %505 = vmatpush2.bf16.msra.mxu0 0
  %506 = vmatprep.subr.bf16.mxu0 0
  %507 = vmatpush2.bf16.msra.mxu0 0
  %508 = vmatprep.subr.bf16.mxu0 0
  %509 = vmatpush2.bf16.msra.mxu0 0
  %510 = vmatprep.subr.bf16.mxu0 0
  %511 = vmatpush2.bf16.msra.mxu0 0
  %512 = vmatprep.mubr.bf16.mxu0 0
  %513 = vmatmul.mubr.bf16.gmra.mxu0 %v478
  %v514 = vpop.f32.mrf.mxu0
  %v515 = vadd.f32 0.0, %v514
  %v516 = vpop.f32.mrf.mxu0
  %v517 = vpop.f32.mrf.mxu0
  %v518 = vpop.f32.mrf.mxu0
  %519 = vdwg.mxu0
  %v520 = vadd.f32 %v476, %v515
  %v521 = vxor.u32 %v520, 2147483648
  %v522 = vmul.f32 %v521, 1.442695
  %v523 = vpow.pop %v522
  %v524 = vadd.f32 %v523, 1.0
  %v525 = vrcp.pop %v524
  %v526 = vmul.f32 1.0, %v525
  %v527 = vtanh.pop %v520
  %v528 = vmul.f32 %v526, %v458
  %530 = vrot.lane.b32.xlu0 %v527, 64
  %v531 = vpop.permute.xlu0 %530
  %v533 = vmul.f32 %v526, %v531
  %535 = vrot.lane.b32.xlu0 %v533, 32
  %v536 = vpop.permute.xlu0 %535
  %v538 = vadd.f32 %v528, %v536
  %v539 = vtanh.pop %v538
  %541 = vrot.lane.b32.xlu0 %v539, 64
  %v542 = vpop.permute.xlu0 %541
  %v544 = vmul.f32 %v526, %v542
  %546 = vrot.lane.b32.xlu0 %v544, 32
  %v547 = vpop.permute.xlu0 %546
  %549 = vst.msk [vmem:[#allocation3 + $0x18] sm:$0xff] %vm308, %v547
  %550 = vrot.lane.b32.xlu0 %v544, 64
  %v551 = vpop.permute.xlu0 %550
  %v553 = vsel %vm308, %v547, %v551
  %v554 = vmul.f32 %v553, %v48
  %v555 = vpack.c.bf16 %v554, %v554
  %v556 = vld [vmem:[#allocation2 + $0x20] sm:$0xff]
  %v558 = vsel %vm117, %v555, 0
  %560 = vmatprep.subr.bf16.mxu0 0
  %561 = vmatpush1.bf16.msra.mxu0 0
  %562 = vmatprep.subr.bf16.mxu0 0
  %563 = vmatpush1.bf16.msra.mxu0 0
  %564 = vmatprep.subr.bf16.mxu0 0
  %565 = vmatpush1.bf16.msra.mxu0 0
  %566 = vmatprep.subr.bf16.mxu0 0
  %567 = vmatpush1.bf16.msra.mxu0 0
  %568 = vmatprep.subr.bf16.mxu0 0
  %569 = vmatpush1.bf16.msra.mxu0 %v231
  %570 = vmatprep.subr.bf16.mxu0 0
  %571 = vmatpush1.bf16.msra.mxu0 %v230
  %572 = vmatprep.subr.bf16.mxu0 0
  %573 = vmatpush1.bf16.msra.mxu0 %v229
  %574 = vmatprep.subr.bf16.mxu0 0
  %575 = vmatpush1.bf16.msra.mxu0 %v228
  %576 = vmatprep.subr.bf16.mxu0 0
  %577 = vmatpush2.bf16.msra.mxu0 0
  %578 = vmatprep.subr.bf16.mxu0 0
  %579 = vmatpush2.bf16.msra.mxu0 0
  %580 = vmatprep.subr.bf16.mxu0 0
  %581 = vmatpush2.bf16.msra.mxu0 0
  %582 = vmatprep.subr.bf16.mxu0 0
  %583 = vmatpush2.bf16.msra.mxu0 0
  %584 = vmatprep.subr.bf16.mxu0 0
  %585 = vmatpush2.bf16.msra.mxu0 0
  %586 = vmatprep.subr.bf16.mxu0 0
  %587 = vmatpush2.bf16.msra.mxu0 0
  %588 = vmatprep.subr.bf16.mxu0 0
  %589 = vmatpush2.bf16.msra.mxu0 0
  %590 = vmatprep.subr.bf16.mxu0 0
  %591 = vmatpush2.bf16.msra.mxu0 0
  %592 = vmatprep.mubr.bf16.mxu0 0
  %593 = vmatmul.mubr.bf16.gmra.mxu0 %v558
  %v594 = vpop.f32.mrf.mxu0
  %v595 = vadd.f32 0.0, %v594
  %v596 = vpop.f32.mrf.mxu0
  %v597 = vpop.f32.mrf.mxu0
  %v598 = vpop.f32.mrf.mxu0
  %599 = vdwg.mxu0
  %v600 = vadd.f32 %v556, %v595
  %v601 = vxor.u32 %v600, 2147483648
  %v602 = vmul.f32 %v601, 1.442695
  %v603 = vpow.pop %v602
  %v604 = vadd.f32 %v603, 1.0
  %v605 = vrcp.pop %v604
  %v606 = vmul.f32 1.0, %v605
  %v607 = vtanh.pop %v600
  %v608 = vmul.f32 %v606, %v538
  %610 = vrot.lane.b32.xlu0 %v607, 64
  %v611 = vpop.permute.xlu0 %610
  %v613 = vmul.f32 %v606, %v611
  %615 = vrot.lane.b32.xlu0 %v613, 32
  %v616 = vpop.permute.xlu0 %615
  %v618 = vadd.f32 %v608, %v616
  %v619 = vtanh.pop %v618
  %621 = vrot.lane.b32.xlu0 %v619, 64
  %v622 = vpop.permute.xlu0 %621
  %v624 = vmul.f32 %v606, %v622
  %626 = vrot.lane.b32.xlu0 %v624, 32
  %v627 = vpop.permute.xlu0 %626
  %629 = vst.msk [vmem:[#allocation3 + $0x20] sm:$0xff] %vm308, %v627
  %630 = vrot.lane.b32.xlu0 %v624, 64
  %v631 = vpop.permute.xlu0 %630
  %v633 = vsel %vm308, %v627, %v631
  %v634 = vmul.f32 %v633, %v48
  %v635 = vpack.c.bf16 %v634, %v634
  %v636 = vld [vmem:[#allocation2 + $0x28] sm:$0xff]
  %v638 = vsel %vm117, %v635, 0
  %640 = vmatprep.subr.bf16.mxu0 0
  %641 = vmatpush1.bf16.msra.mxu0 0
  %642 = vmatprep.subr.bf16.mxu0 0
  %643 = vmatpush1.bf16.msra.mxu0 0
  %644 = vmatprep.subr.bf16.mxu0 0
  %645 = vmatpush1.bf16.msra.mxu0 0
  %646 = vmatprep.subr.bf16.mxu0 0
  %647 = vmatpush1.bf16.msra.mxu0 0
  %648 = vmatprep.subr.bf16.mxu0 0
  %649 = vmatpush1.bf16.msra.mxu0 %v231
  %650 = vmatprep.subr.bf16.mxu0 0
  %651 = vmatpush1.bf16.msra.mxu0 %v230
  %652 = vmatprep.subr.bf16.mxu0 0
  %653 = vmatpush1.bf16.msra.mxu0 %v229
  %654 = vmatprep.subr.bf16.mxu0 0
  %655 = vmatpush1.bf16.msra.mxu0 %v228
  %656 = vmatprep.subr.bf16.mxu0 0
  %657 = vmatpush2.bf16.msra.mxu0 0
  %658 = vmatprep.subr.bf16.mxu0 0
  %659 = vmatpush2.bf16.msra.mxu0 0
  %660 = vmatprep.subr.bf16.mxu0 0
  %661 = vmatpush2.bf16.msra.mxu0 0
  %662 = vmatprep.subr.bf16.mxu0 0
  %663 = vmatpush2.bf16.msra.mxu0 0
  %664 = vmatprep.subr.bf16.mxu0 0
  %665 = vmatpush2.bf16.msra.mxu0 0
  %666 = vmatprep.subr.bf16.mxu0 0
  %667 = vmatpush2.bf16.msra.mxu0 0
  %668 = vmatprep.subr.bf16.mxu0 0
  %669 = vmatpush2.bf16.msra.mxu0 0
  %670 = vmatprep.subr.bf16.mxu0 0
  %671 = vmatpush2.bf16.msra.mxu0 0
  %672 = vmatprep.mubr.bf16.mxu0 0
  %673 = vmatmul.mubr.bf16.gmra.mxu0 %v638
  %v674 = vpop.f32.mrf.mxu0
  %v675 = vadd.f32 0.0, %v674
  %v676 = vpop.f32.mrf.mxu0
  %v677 = vpop.f32.mrf.mxu0
  %v678 = vpop.f32.mrf.mxu0
  %679 = vdwg.mxu0
  %v680 = vadd.f32 %v636, %v675
  %v681 = vxor.u32 %v680, 2147483648
  %v682 = vmul.f32 %v681, 1.442695
  %v683 = vpow.pop %v682
  %v684 = vadd.f32 %v683, 1.0
  %v685 = vrcp.pop %v684
  %v686 = vmul.f32 1.0, %v685
  %v687 = vtanh.pop %v680
  %v688 = vmul.f32 %v686, %v618
  %690 = vrot.lane.b32.xlu0 %v687, 64
  %v691 = vpop.permute.xlu0 %690
  %v693 = vmul.f32 %v686, %v691
  %695 = vrot.lane.b32.xlu0 %v693, 32
  %v696 = vpop.permute.xlu0 %695
  %v698 = vadd.f32 %v688, %v696
  %v699 = vtanh.pop %v698
  %701 = vrot.lane.b32.xlu0 %v699, 64
  %v702 = vpop.permute.xlu0 %701
  %v704 = vmul.f32 %v686, %v702
  %706 = vrot.lane.b32.xlu0 %v704, 32
  %v707 = vpop.permute.xlu0 %706
  %709 = vst.msk [vmem:[#allocation3 + $0x28] sm:$0xff] %vm308, %v707
  %710 = vrot.lane.b32.xlu0 %v704, 64
  %v711 = vpop.permute.xlu0 %710
  %v713 = vsel %vm308, %v707, %v711
  %v714 = vmul.f32 %v713, %v48
  %v715 = vpack.c.bf16 %v714, %v714
  %v716 = vld [vmem:[#allocation2 + $0x30] sm:$0xff]
  %v718 = vsel %vm117, %v715, 0
  %720 = vmatprep.subr.bf16.mxu0 0
  %721 = vmatpush1.bf16.msra.mxu0 0
  %722 = vmatprep.subr.bf16.mxu0 0
  %723 = vmatpush1.bf16.msra.mxu0 0
  %724 = vmatprep.subr.bf16.mxu0 0
  %725 = vmatpush1.bf16.msra.mxu0 0
  %726 = vmatprep.subr.bf16.mxu0 0
  %727 = vmatpush1.bf16.msra.mxu0 0
  %728 = vmatprep.subr.bf16.mxu0 0
  %729 = vmatpush1.bf16.msra.mxu0 %v231
  %730 = vmatprep.subr.bf16.mxu0 0
  %731 = vmatpush1.bf16.msra.mxu0 %v230
  %732 = vmatprep.subr.bf16.mxu0 0
  %733 = vmatpush1.bf16.msra.mxu0 %v229
  %734 = vmatprep.subr.bf16.mxu0 0
  %735 = vmatpush1.bf16.msra.mxu0 %v228
  %736 = vmatprep.subr.bf16.mxu0 0
  %737 = vmatpush2.bf16.msra.mxu0 0
  %738 = vmatprep.subr.bf16.mxu0 0
  %739 = vmatpush2.bf16.msra.mxu0 0
  %740 = vmatprep.subr.bf16.mxu0 0
  %741 = vmatpush2.bf16.msra.mxu0 0
  %742 = vmatprep.subr.bf16.mxu0 0
  %743 = vmatpush2.bf16.msra.mxu0 0
  %744 = vmatprep.subr.bf16.mxu0 0
  %745 = vmatpush2.bf16.msra.mxu0 0
  %746 = vmatprep.subr.bf16.mxu0 0
  %747 = vmatpush2.bf16.msra.mxu0 0
  %748 = vmatprep.subr.bf16.mxu0 0
  %749 = vmatpush2.bf16.msra.mxu0 0
  %750 = vmatprep.subr.bf16.mxu0 0
  %751 = vmatpush2.bf16.msra.mxu0 0
  %752 = vmatprep.mubr.bf16.mxu0 0
  %753 = vmatmul.mubr.bf16.gmra.mxu0 %v718
  %v754 = vpop.f32.mrf.mxu0
  %v755 = vadd.f32 0.0, %v754
  %v756 = vpop.f32.mrf.mxu0
  %v757 = vpop.f32.mrf.mxu0
  %v758 = vpop.f32.mrf.mxu0
  %759 = vdwg.mxu0
  %v760 = vadd.f32 %v716, %v755
  %v761 = vxor.u32 %v760, 2147483648
  %v762 = vmul.f32 %v761, 1.442695
  %v763 = vpow.pop %v762
  %v764 = vadd.f32 %v763, 1.0
  %v765 = vrcp.pop %v764
  %v766 = vmul.f32 1.0, %v765
  %v767 = vtanh.pop %v760
  %v768 = vmul.f32 %v766, %v698
  %770 = vrot.lane.b32.xlu0 %v767, 64
  %v771 = vpop.permute.xlu0 %770
  %v773 = vmul.f32 %v766, %v771
  %775 = vrot.lane.b32.xlu0 %v773, 32
  %v776 = vpop.permute.xlu0 %775
  %v778 = vadd.f32 %v768, %v776
  %v779 = vtanh.pop %v778
  %781 = vrot.lane.b32.xlu0 %v779, 64
  %v782 = vpop.permute.xlu0 %781
  %v784 = vmul.f32 %v766, %v782
  %786 = vrot.lane.b32.xlu0 %v784, 32
  %v787 = vpop.permute.xlu0 %786
  %789 = vst.msk [vmem:[#allocation3 + $0x30] sm:$0xff] %vm308, %v787
  %790 = vrot.lane.b32.xlu0 %v784, 64
  %v791 = vpop.permute.xlu0 %790
  %v793 = vsel %vm308, %v787, %v791
  %v794 = vmul.f32 %v793, %v48
  %v795 = vpack.c.bf16 %v794, %v794
  %v796 = vld [vmem:[#allocation2 + $0x38] sm:$0xff]
  %v798 = vsel %vm117, %v795, 0
  %800 = vmatprep.subr.bf16.mxu0 0
  %801 = vmatpush1.bf16.msra.mxu0 0
  %802 = vmatprep.subr.bf16.mxu0 0
  %803 = vmatpush1.bf16.msra.mxu0 0
  %804 = vmatprep.subr.bf16.mxu0 0
  %805 = vmatpush1.bf16.msra.mxu0 0
  %806 = vmatprep.subr.bf16.mxu0 0
  %807 = vmatpush1.bf16.msra.mxu0 0
  %808 = vmatprep.subr.bf16.mxu0 0
  %809 = vmatpush1.bf16.msra.mxu0 %v231
  %810 = vmatprep.subr.bf16.mxu0 0
  %811 = vmatpush1.bf16.msra.mxu0 %v230
  %812 = vmatprep.subr.bf16.mxu0 0
  %813 = vmatpush1.bf16.msra.mxu0 %v229
  %814 = vmatprep.subr.bf16.mxu0 0
  %815 = vmatpush1.bf16.msra.mxu0 %v228
  %816 = vmatprep.subr.bf16.mxu0 0
  %817 = vmatpush2.bf16.msra.mxu0 0
  %818 = vmatprep.subr.bf16.mxu0 0
  %819 = vmatpush2.bf16.msra.mxu0 0
  %820 = vmatprep.subr.bf16.mxu0 0
  %821 = vmatpush2.bf16.msra.mxu0 0
  %822 = vmatprep.subr.bf16.mxu0 0
  %823 = vmatpush2.bf16.msra.mxu0 0
  %824 = vmatprep.subr.bf16.mxu0 0
  %825 = vmatpush2.bf16.msra.mxu0 0
  %826 = vmatprep.subr.bf16.mxu0 0
  %827 = vmatpush2.bf16.msra.mxu0 0
  %828 = vmatprep.subr.bf16.mxu0 0
  %829 = vmatpush2.bf16.msra.mxu0 0
  %830 = vmatprep.subr.bf16.mxu0 0
  %831 = vmatpush2.bf16.msra.mxu0 0
  %832 = vmatprep.mubr.bf16.mxu0 0
  %833 = vmatmul.mubr.bf16.gmra.mxu0 %v798
  %v834 = vpop.f32.mrf.mxu0
  %v835 = vadd.f32 0.0, %v834
  %v836 = vpop.f32.mrf.mxu0
  %v837 = vpop.f32.mrf.mxu0
  %v838 = vpop.f32.mrf.mxu0
  %839 = vdwg.mxu0
  %v840 = vadd.f32 %v796, %v835
  %v841 = vxor.u32 %v840, 2147483648
  %v842 = vmul.f32 %v841, 1.442695
  %v843 = vpow.pop %v842
  %v844 = vadd.f32 %v843, 1.0
  %v845 = vrcp.pop %v844
  %v846 = vmul.f32 1.0, %v845
  %v847 = vtanh.pop %v840
  %v848 = vmul.f32 %v846, %v778
  %850 = vrot.lane.b32.xlu0 %v847, 64
  %v851 = vpop.permute.xlu0 %850
  %v853 = vmul.f32 %v846, %v851
  %855 = vrot.lane.b32.xlu0 %v853, 32
  %v856 = vpop.permute.xlu0 %855
  %v858 = vadd.f32 %v848, %v856
  %v859 = vtanh.pop %v858
  %861 = vrot.lane.b32.xlu0 %v859, 64
  %v862 = vpop.permute.xlu0 %861
  %v864 = vmul.f32 %v846, %v862
  %866 = vrot.lane.b32.xlu0 %v864, 32
  %v867 = vpop.permute.xlu0 %866
  %869 = vst.msk [vmem:[#allocation3 + $0x38] sm:$0xff] %vm308, %v867
  %v870 = vld [vmem:[#allocation3] sm:$0xff]
  %v871 = vld [vmem:[#allocation3 + $0x8] sm:$0xff]
  %v872 = vld [vmem:[#allocation3 + $0x10] sm:$0xff]
  %v873 = vld [vmem:[#allocation3 + $0x18] sm:$0xff]
  %v874 = vld [vmem:[#allocation3 + $0x20] sm:$0xff]
  %v875 = vld [vmem:[#allocation3 + $0x28] sm:$0xff]
  %v876 = vld [vmem:[#allocation3 + $0x30] sm:$0xff]
  %v877 = vld [vmem:[#allocation3 + $0x38] sm:$0xff]
  %886 = vrot.lane.b32.xlu0 %v877, 32
  %v887 = vpop.permute.xlu0 %886
  %888 = vrot.lane.b32.xlu0 %v876, 32
  %v889 = vpop.permute.xlu0 %888
  %890 = vrot.lane.b32.xlu0 %v875, 32
  %v891 = vpop.permute.xlu0 %890
  %892 = vrot.lane.b32.xlu0 %v874, 32
  %v893 = vpop.permute.xlu0 %892
  %894 = vrot.lane.b32.xlu0 %v873, 32
  %v895 = vpop.permute.xlu0 %894
  %896 = vrot.lane.b32.xlu0 %v872, 32
  %v897 = vpop.permute.xlu0 %896
  %898 = vrot.lane.b32.xlu0 %v871, 32
  %v899 = vpop.permute.xlu0 %898
  %900 = vrot.lane.b32.xlu0 %v870, 32
  %v901 = vpop.permute.xlu0 %900
  %v910 = vsel %vm308, %v870, %v887
  %v911 = vsel %vm308, %v871, %v889
  %v912 = vsel %vm308, %v872, %v891
  %v913 = vsel %vm308, %v873, %v893
  %v914 = vsel %vm308, %v874, %v895
  %v915 = vsel %vm308, %v875, %v897
  %v916 = vsel %vm308, %v876, %v899
  %v917 = vsel %vm308, %v877, %v901
  %v918 = vld [vmem:[%s12] sm:$0xff]
  %v919 = vld [vmem:[%s12 + $0x8] sm:$0xff]
  %v920 = vld [vmem:[%s12 + $0x10] sm:$0xff]
  %v921 = vld [vmem:[%s12 + $0x18] sm:$0xff]
  %v922 = vld [vmem:[%s12 + $0x20] sm:$0xff]
  %v923 = vld [vmem:[%s12 + $0x28] sm:$0xff]
  %v924 = vld [vmem:[%s12 + $0x30] sm:$0xff]
  %v925 = vld [vmem:[%s12 + $0x38] sm:$0xff]
  %v926 = vmul.f32 %v910, %v918
  %v927 = vmul.f32 %v911, %v919
  %v928 = vmul.f32 %v912, %v920
  %v929 = vmul.f32 %v913, %v921
  %v930 = vmul.f32 %v914, %v922
  %v931 = vmul.f32 %v915, %v923
  %v932 = vmul.f32 %v916, %v924
  %v933 = vmul.f32 %v917, %v925
  %v934 = vpack.c.bf16 %v927, %v926
  %v935 = vpack.c.bf16 %v929, %v928
  %v936 = vpack.c.bf16 %v931, %v930
  %v937 = vpack.c.bf16 %v933, %v932
  %v938 = vld [vmem:[%s4] sm:$0xf]
  %v939 = vld [vmem:[%s4 + $0x4] sm:$0xf]
  %v940 = vld [vmem:[%s4 + $0x8] sm:$0xf]
  %v941 = vld [vmem:[%s4 + $0xc] sm:$0xf]
  %v942 = vld [vmem:[%s4 + $0x10] sm:$0xf]
  %v943 = vld [vmem:[%s4 + $0x14] sm:$0xf]
  %v944 = vld [vmem:[%s4 + $0x18] sm:$0xf]
  %v945 = vld [vmem:[%s4 + $0x1c] sm:$0xf]
  %v946 = vld [vmem:[%s6] sm:$0xff]
  %v947 = vld [vmem:[%s6 + $0x8] sm:$0xff]
  %v948 = vld [vmem:[%s6 + $0x10] sm:$0xff]
  %v949 = vld [vmem:[%s6 + $0x18] sm:$0xff]
  %v950 = vld [vmem:[%s6 + $0x20] sm:$0xff]
  %v951 = vld [vmem:[%s6 + $0x28] sm:$0xff]
  %v952 = vld [vmem:[%s6 + $0x30] sm:$0xff]
  %v953 = vld [vmem:[%s6 + $0x38] sm:$0xff]
  %v962 = vunpack.c.l.b16 %v938
  %v963 = vunpack.c.l.b16 %v939
  %v964 = vunpack.c.l.b16 %v940
  %v965 = vunpack.c.l.b16 %v941
  %v966 = vunpack.c.l.b16 %v942
  %v967 = vunpack.c.l.b16 %v943
  %v968 = vunpack.c.l.b16 %v944
  %v969 = vunpack.c.l.b16 %v945
  %v970 = vpack.c.b16 %v963, %v962
  %v971 = vpack.c.b16 %v965, %v964
  %v972 = vpack.c.b16 %v967, %v966
  %v973 = vpack.c.b16 %v969, %v968
  %v979 = vsel %vm117, %v934, 0
  %v982 = vsel %vm117, %v935, 0
  %v985 = vsel %vm117, %v936, 0
  %v988 = vsel %vm117, %v937, 0
  %990 = vmatprep.subr.bf16.mxu0 0
  %991 = vmatpush1.bf16.msra.mxu0 0
  %992 = vmatprep.subr.bf16.mxu0 0
  %993 = vmatpush1.bf16.msra.mxu0 0
  %994 = vmatprep.subr.bf16.mxu0 0
  %995 = vmatpush1.bf16.msra.mxu0 0
  %996 = vmatprep.subr.bf16.mxu0 0
  %997 = vmatpush1.bf16.msra.mxu0 0
  %998 = vmatprep.subr.bf16.mxu0 0
  %999 = vmatpush1.bf16.msra.mxu0 %v973
  %1000 = vmatprep.subr.bf16.mxu0 0
  %1001 = vmatpush1.bf16.msra.mxu0 %v972
  %1002 = vmatprep.subr.bf16.mxu0 0
  %1003 = vmatpush1.bf16.msra.mxu0 %v971
  %1004 = vmatprep.subr.bf16.mxu0 0
  %1005 = vmatpush1.bf16.msra.mxu0 %v970
  %1006 = vmatprep.subr.bf16.mxu0 0
  %1007 = vmatpush2.bf16.msra.mxu0 0
  %1008 = vmatprep.subr.bf16.mxu0 0
  %1009 = vmatpush2.bf16.msra.mxu0 0
  %1010 = vmatprep.subr.bf16.mxu0 0
  %1011 = vmatpush2.bf16.msra.mxu0 0
  %1012 = vmatprep.subr.bf16.mxu0 0
  %1013 = vmatpush2.bf16.msra.mxu0 0
  %1014 = vmatprep.subr.bf16.mxu0 0
  %1015 = vmatpush2.bf16.msra.mxu0 0
  %1016 = vmatprep.subr.bf16.mxu0 0
  %1017 = vmatpush2.bf16.msra.mxu0 0
  %1018 = vmatprep.subr.bf16.mxu0 0
  %1019 = vmatpush2.bf16.msra.mxu0 0
  %1020 = vmatprep.subr.bf16.mxu0 0
  %1021 = vmatpush2.bf16.msra.mxu0 0
  %1022 = vmatprep.mubr.bf16.mxu0 0
  %1023 = vmatmul.mubr.bf16.gmra.mxu0 %v979
  %v1024 = vpop.f32.mrf.mxu0
  %v1025 = vadd.f32 %v946, %v1024
  %v1026 = vpop.f32.mrf.mxu0
  %v1027 = vpop.f32.mrf.mxu0
  %v1028 = vadd.f32 %v947, %v1027
  %v1029 = vpop.f32.mrf.mxu0
  %1030 = vmatprep.mubr.bf16.mxu0 0
  %1031 = vmatmul.mubr.bf16.gmra.mxu0 %v982
  %v1032 = vpop.f32.mrf.mxu0
  %v1033 = vadd.f32 %v948, %v1032
  %v1034 = vpop.f32.mrf.mxu0
  %v1035 = vpop.f32.mrf.mxu0
  %v1036 = vadd.f32 %v949, %v1035
  %v1037 = vpop.f32.mrf.mxu0
  %1038 = vmatprep.mubr.bf16.mxu0 0
  %1039 = vmatmul.mubr.bf16.gmra.mxu0 %v985
  %v1040 = vpop.f32.mrf.mxu0
  %v1041 = vadd.f32 %v950, %v1040
  %v1042 = vpop.f32.mrf.mxu0
  %v1043 = vpop.f32.mrf.mxu0
  %v1044 = vadd.f32 %v951, %v1043
  %v1045 = vpop.f32.mrf.mxu0
  %1046 = vmatprep.mubr.bf16.mxu0 0
  %1047 = vmatmul.mubr.bf16.gmra.mxu0 %v988
  %v1048 = vpop.f32.mrf.mxu0
  %v1049 = vadd.f32 %v952, %v1048
  %v1050 = vpop.f32.mrf.mxu0
  %v1051 = vpop.f32.mrf.mxu0
  %v1052 = vadd.f32 %v953, %v1051
  %v1053 = vpop.f32.mrf.mxu0
  %1054 = vdwg.mxu0
  %1055 = vst [vmem:[#allocation2] sm:$0xff] %v1025
  %1056 = vst [vmem:[#allocation2 + $0x8] sm:$0xff] %v1028
  %1057 = vst [vmem:[#allocation2 + $0x10] sm:$0xff] %v1033
  %1058 = vst [vmem:[#allocation2 + $0x18] sm:$0xff] %v1036
  %1059 = vst [vmem:[#allocation2 + $0x20] sm:$0xff] %v1041
  %1060 = vst [vmem:[#allocation2 + $0x28] sm:$0xff] %v1044
  %1061 = vst [vmem:[#allocation2 + $0x30] sm:$0xff] %v1049
  %1062 = vst [vmem:[#allocation2 + $0x38] sm:$0xff] %v1052
  %v1063 = vld [vmem:[%s5] sm:$0xf]
  %v1064 = vld [vmem:[%s5 + $0x4] sm:$0xf]
  %v1065 = vld [vmem:[%s5 + $0x8] sm:$0xf]
  %v1066 = vld [vmem:[%s5 + $0xc] sm:$0xf]
  %v1067 = vld [vmem:[%s5 + $0x10] sm:$0xf]
  %v1068 = vld [vmem:[%s5 + $0x14] sm:$0xf]
  %v1069 = vld [vmem:[%s5 + $0x18] sm:$0xf]
  %v1070 = vld [vmem:[%s5 + $0x1c] sm:$0xf]
  %v1071 = vld [vmem:[#allocation2] sm:$0xff]
  %v1080 = vunpack.c.l.b16 %v1063
  %v1081 = vunpack.c.l.b16 %v1064
  %v1082 = vunpack.c.l.b16 %v1065
  %v1083 = vunpack.c.l.b16 %v1066
  %v1084 = vunpack.c.l.b16 %v1067
  %v1085 = vunpack.c.l.b16 %v1068
  %v1086 = vunpack.c.l.b16 %v1069
  %v1087 = vunpack.c.l.b16 %v1070
  %v1088 = vpack.c.b16 %v1081, %v1080
  %v1089 = vpack.c.b16 %v1083, %v1082
  %v1090 = vpack.c.b16 %v1085, %v1084
  %v1091 = vpack.c.b16 %v1087, %v1086
  %1096 = vmatprep.subr.bf16.mxu0 0
  %1097 = vmatpush1.bf16.msra.mxu0 0
  %1098 = vmatprep.subr.bf16.mxu0 0
  %1099 = vmatpush1.bf16.msra.mxu0 0
  %1100 = vmatprep.subr.bf16.mxu0 0
  %1101 = vmatpush1.bf16.msra.mxu0 0
  %1102 = vmatprep.subr.bf16.mxu0 0
  %1103 = vmatpush1.bf16.msra.mxu0 0
  %1104 = vmatprep.subr.bf16.mxu0 0
  %1105 = vmatpush1.bf16.msra.mxu0 %v1091
  %1106 = vmatprep.subr.bf16.mxu0 0
  %1107 = vmatpush1.bf16.msra.mxu0 %v1090
  %1108 = vmatprep.subr.bf16.mxu0 0
  %1109 = vmatpush1.bf16.msra.mxu0 %v1089
  %1110 = vmatprep.subr.bf16.mxu0 0
  %1111 = vmatpush1.bf16.msra.mxu0 %v1088
  %1112 = vmatprep.subr.bf16.mxu0 0
  %1113 = vmatpush2.bf16.msra.mxu0 0
  %1114 = vmatprep.subr.bf16.mxu0 0
  %1115 = vmatpush2.bf16.msra.mxu0 0
  %1116 = vmatprep.subr.bf16.mxu0 0
  %1117 = vmatpush2.bf16.msra.mxu0 0
  %1118 = vmatprep.subr.bf16.mxu0 0
  %1119 = vmatpush2.bf16.msra.mxu0 0
  %1120 = vmatprep.subr.bf16.mxu0 0
  %1121 = vmatpush2.bf16.msra.mxu0 0
  %1122 = vmatprep.subr.bf16.mxu0 0
  %1123 = vmatpush2.bf16.msra.mxu0 0
  %1124 = vmatprep.subr.bf16.mxu0 0
  %1125 = vmatpush2.bf16.msra.mxu0 0
  %1126 = vmatprep.subr.bf16.mxu0 0
  %1127 = vmatpush2.bf16.msra.mxu0 0
  %1128 = vmatprep.mubr.bf16.mxu0 0
  %1129 = vmatmul.mubr.bf16.gmra.mxu0 %v237
  %v1130 = vpop.f32.mrf.mxu0
  %v1131 = vadd.f32 0.0, %v1130
  %v1132 = vpop.f32.mrf.mxu0
  %v1133 = vpop.f32.mrf.mxu0
  %v1134 = vpop.f32.mrf.mxu0
  %1135 = vdwg.mxu0
  %v1136 = vadd.f32 %v1071, %v1131
  %v1137 = vxor.u32 %v1136, 2147483648
  %v1138 = vmul.f32 %v1137, 1.442695
  %v1139 = vpow.pop %v1138
  %v1140 = vadd.f32 %v1139, 1.0
  %v1141 = vrcp.pop %v1140
  %v1142 = vmul.f32 1.0, %v1141
  %v1143 = vtanh.pop %v1136
  %v1144 = vmul.f32 %v1142, 0.0
  %1146 = vrot.lane.b32.xlu0 %v1143, 64
  %v1147 = vpop.permute.xlu0 %1146
  %v1149 = vmul.f32 %v1142, %v1147
  %1151 = vrot.lane.b32.xlu0 %v1149, 32
  %v1152 = vpop.permute.xlu0 %1151
  %v1154 = vadd.f32 %v1144, %v1152
  %v1155 = vtanh.pop %v1154
  %1157 = vrot.lane.b32.xlu0 %v1155, 64
  %v1158 = vpop.permute.xlu0 %1157
  %v1160 = vmul.f32 %v1142, %v1158
  %1162 = vrot.lane.b32.xlu0 %v1160, 32
  %v1163 = vpop.permute.xlu0 %1162
  %1165 = vst.msk [vmem:[#allocation4] sm:$0xff] %vm308, %v1163
  %1166 = vrot.lane.b32.xlu0 %v1160, 64
  %v1167 = vpop.permute.xlu0 %1166
  %v1169 = vsel %vm308, %v1163, %v1167
  %v1170 = vmul.f32 %v1169, %v48
  %v1171 = vpack.c.bf16 %v1170, %v1170
  %v1172 = vld [vmem:[#allocation2 + $0x8] sm:$0xff]
  %v1174 = vsel %vm117, %v1171, 0
  %1176 = vmatprep.subr.bf16.mxu0 0
  %1177 = vmatpush1.bf16.msra.mxu0 0
  %1178 = vmatprep.subr.bf16.mxu0 0
  %1179 = vmatpush1.bf16.msra.mxu0 0
  %1180 = vmatprep.subr.bf16.mxu0 0
  %1181 = vmatpush1.bf16.msra.mxu0 0
  %1182 = vmatprep.subr.bf16.mxu0 0
  %1183 = vmatpush1.bf16.msra.mxu0 0
  %1184 = vmatprep.subr.bf16.mxu0 0
  %1185 = vmatpush1.bf16.msra.mxu0 %v1091
  %1186 = vmatprep.subr.bf16.mxu0 0
  %1187 = vmatpush1.bf16.msra.mxu0 %v1090
  %1188 = vmatprep.subr.bf16.mxu0 0
  %1189 = vmatpush1.bf16.msra.mxu0 %v1089
  %1190 = vmatprep.subr.bf16.mxu0 0
  %1191 = vmatpush1.bf16.msra.mxu0 %v1088
  %1192 = vmatprep.subr.bf16.mxu0 0
  %1193 = vmatpush2.bf16.msra.mxu0 0
  %1194 = vmatprep.subr.bf16.mxu0 0
  %1195 = vmatpush2.bf16.msra.mxu0 0
  %1196 = vmatprep.subr.bf16.mxu0 0
  %1197 = vmatpush2.bf16.msra.mxu0 0
  %1198 = vmatprep.subr.bf16.mxu0 0
  %1199 = vmatpush2.bf16.msra.mxu0 0
  %1200 = vmatprep.subr.bf16.mxu0 0
  %1201 = vmatpush2.bf16.msra.mxu0 0
  %1202 = vmatprep.subr.bf16.mxu0 0
  %1203 = vmatpush2.bf16.msra.mxu0 0
  %1204 = vmatprep.subr.bf16.mxu0 0
  %1205 = vmatpush2.bf16.msra.mxu0 0
  %1206 = vmatprep.subr.bf16.mxu0 0
  %1207 = vmatpush2.bf16.msra.mxu0 0
  %1208 = vmatprep.mubr.bf16.mxu0 0
  %1209 = vmatmul.mubr.bf16.gmra.mxu0 %v1174
  %v1210 = vpop.f32.mrf.mxu0
  %v1211 = vadd.f32 0.0, %v1210
  %v1212 = vpop.f32.mrf.mxu0
  %v1213 = vpop.f32.mrf.mxu0
  %v1214 = vpop.f32.mrf.mxu0
  %1215 = vdwg.mxu0
  %v1216 = vadd.f32 %v1172, %v1211
  %v1217 = vxor.u32 %v1216, 2147483648
  %v1218 = vmul.f32 %v1217, 1.442695
  %v1219 = vpow.pop %v1218
  %v1220 = vadd.f32 %v1219, 1.0
  %v1221 = vrcp.pop %v1220
  %v1222 = vmul.f32 1.0, %v1221
  %v1223 = vtanh.pop %v1216
  %v1224 = vmul.f32 %v1222, %v1154
  %1226 = vrot.lane.b32.xlu0 %v1223, 64
  %v1227 = vpop.permute.xlu0 %1226
  %v1229 = vmul.f32 %v1222, %v1227
  %1231 = vrot.lane.b32.xlu0 %v1229, 32
  %v1232 = vpop.permute.xlu0 %1231
  %v1234 = vadd.f32 %v1224, %v1232
  %v1235 = vtanh.pop %v1234
  %1237 = vrot.lane.b32.xlu0 %v1235, 64
  %v1238 = vpop.permute.xlu0 %1237
  %v1240 = vmul.f32 %v1222, %v1238
  %1242 = vrot.lane.b32.xlu0 %v1240, 32
  %v1243 = vpop.permute.xlu0 %1242
  %1245 = vst.msk [vmem:[#allocation4 + $0x8] sm:$0xff] %vm308, %v1243
  %1246 = vrot.lane.b32.xlu0 %v1240, 64
  %v1247 = vpop.permute.xlu0 %1246
  %v1249 = vsel %vm308, %v1243, %v1247
  %v1250 = vmul.f32 %v1249, %v48
  %v1251 = vpack.c.bf16 %v1250, %v1250
  %v1252 = vld [vmem:[#allocation2 + $0x10] sm:$0xff]
  %v1254 = vsel %vm117, %v1251, 0
  %1256 = vmatprep.subr.bf16.mxu0 0
  %1257 = vmatpush1.bf16.msra.mxu0 0
  %1258 = vmatprep.subr.bf16.mxu0 0
  %1259 = vmatpush1.bf16.msra.mxu0 0
  %1260 = vmatprep.subr.bf16.mxu0 0
  %1261 = vmatpush1.bf16.msra.mxu0 0
  %1262 = vmatprep.subr.bf16.mxu0 0
  %1263 = vmatpush1.bf16.msra.mxu0 0
  %1264 = vmatprep.subr.bf16.mxu0 0
  %1265 = vmatpush1.bf16.msra.mxu0 %v1091
  %1266 = vmatprep.subr.bf16.mxu0 0
  %1267 = vmatpush1.bf16.msra.mxu0 %v1090
  %1268 = vmatprep.subr.bf16.mxu0 0
  %1269 = vmatpush1.bf16.msra.mxu0 %v1089
  %1270 = vmatprep.subr.bf16.mxu0 0
  %1271 = vmatpush1.bf16.msra.mxu0 %v1088
  %1272 = vmatprep.subr.bf16.mxu0 0
  %1273 = vmatpush2.bf16.msra.mxu0 0
  %1274 = vmatprep.subr.bf16.mxu0 0
  %1275 = vmatpush2.bf16.msra.mxu0 0
  %1276 = vmatprep.subr.bf16.mxu0 0
  %1277 = vmatpush2.bf16.msra.mxu0 0
  %1278 = vmatprep.subr.bf16.mxu0 0
  %1279 = vmatpush2.bf16.msra.mxu0 0
  %1280 = vmatprep.subr.bf16.mxu0 0
  %1281 = vmatpush2.bf16.msra.mxu0 0
  %1282 = vmatprep.subr.bf16.mxu0 0
  %1283 = vmatpush2.bf16.msra.mxu0 0
  %1284 = vmatprep.subr.bf16.mxu0 0
  %1285 = vmatpush2.bf16.msra.mxu0 0
  %1286 = vmatprep.subr.bf16.mxu0 0
  %1287 = vmatpush2.bf16.msra.mxu0 0
  %1288 = vmatprep.mubr.bf16.mxu0 0
  %1289 = vmatmul.mubr.bf16.gmra.mxu0 %v1254
  %v1290 = vpop.f32.mrf.mxu0
  %v1291 = vadd.f32 0.0, %v1290
  %v1292 = vpop.f32.mrf.mxu0
  %v1293 = vpop.f32.mrf.mxu0
  %v1294 = vpop.f32.mrf.mxu0
  %1295 = vdwg.mxu0
  %v1296 = vadd.f32 %v1252, %v1291
  %v1297 = vxor.u32 %v1296, 2147483648
  %v1298 = vmul.f32 %v1297, 1.442695
  %v1299 = vpow.pop %v1298
  %v1300 = vadd.f32 %v1299, 1.0
  %v1301 = vrcp.pop %v1300
  %v1302 = vmul.f32 1.0, %v1301
  %v1303 = vtanh.pop %v1296
  %v1304 = vmul.f32 %v1302, %v1234
  %1306 = vrot.lane.b32.xlu0 %v1303, 64
  %v1307 = vpop.permute.xlu0 %1306
  %v1309 = vmul.f32 %v1302, %v1307
  %1311 = vrot.lane.b32.xlu0 %v1309, 32
  %v1312 = vpop.permute.xlu0 %1311
  %v1314 = vadd.f32 %v1304, %v1312
  %v1315 = vtanh.pop %v1314
  %1317 = vrot.lane.b32.xlu0 %v1315, 64
  %v1318 = vpop.permute.xlu0 %1317
  %v1320 = vmul.f32 %v1302, %v1318
  %1322 = vrot.lane.b32.xlu0 %v1320, 32
  %v1323 = vpop.permute.xlu0 %1322
  %1325 = vst.msk [vmem:[#allocation4 + $0x10] sm:$0xff] %vm308, %v1323
  %1326 = vrot.lane.b32.xlu0 %v1320, 64
  %v1327 = vpop.permute.xlu0 %1326
  %v1329 = vsel %vm308, %v1323, %v1327
  %v1330 = vmul.f32 %v1329, %v48
  %v1331 = vpack.c.bf16 %v1330, %v1330
  %v1332 = vld [vmem:[#allocation2 + $0x18] sm:$0xff]
  %v1334 = vsel %vm117, %v1331, 0
  %1336 = vmatprep.subr.bf16.mxu0 0
  %1337 = vmatpush1.bf16.msra.mxu0 0
  %1338 = vmatprep.subr.bf16.mxu0 0
  %1339 = vmatpush1.bf16.msra.mxu0 0
  %1340 = vmatprep.subr.bf16.mxu0 0
  %1341 = vmatpush1.bf16.msra.mxu0 0
  %1342 = vmatprep.subr.bf16.mxu0 0
  %1343 = vmatpush1.bf16.msra.mxu0 0
  %1344 = vmatprep.subr.bf16.mxu0 0
  %1345 = vmatpush1.bf16.msra.mxu0 %v1091
  %1346 = vmatprep.subr.bf16.mxu0 0
  %1347 = vmatpush1.bf16.msra.mxu0 %v1090
  %1348 = vmatprep.subr.bf16.mxu0 0
  %1349 = vmatpush1.bf16.msra.mxu0 %v1089
  %1350 = vmatprep.subr.bf16.mxu0 0
  %1351 = vmatpush1.bf16.msra.mxu0 %v1088
  %1352 = vmatprep.subr.bf16.mxu0 0
  %1353 = vmatpush2.bf16.msra.mxu0 0
  %1354 = vmatprep.subr.bf16.mxu0 0
  %1355 = vmatpush2.bf16.msra.mxu0 0
  %1356 = vmatprep.subr.bf16.mxu0 0
  %1357 = vmatpush2.bf16.msra.mxu0 0
  %1358 = vmatprep.subr.bf16.mxu0 0
  %1359 = vmatpush2.bf16.msra.mxu0 0
  %1360 = vmatprep.subr.bf16.mxu0 0
  %1361 = vmatpush2.bf16.msra.mxu0 0
  %1362 = vmatprep.subr.bf16.mxu0 0
  %1363 = vmatpush2.bf16.msra.mxu0 0
  %1364 = vmatprep.subr.bf16.mxu0 0
  %1365 = vmatpush2.bf16.msra.mxu0 0
  %1366 = vmatprep.subr.bf16.mxu0 0
  %1367 = vmatpush2.bf16.msra.mxu0 0
  %1368 = vmatprep.mubr.bf16.mxu0 0
  %1369 = vmatmul.mubr.bf16.gmra.mxu0 %v1334
  %v1370 = vpop.f32.mrf.mxu0
  %v1371 = vadd.f32 0.0, %v1370
  %v1372 = vpop.f32.mrf.mxu0
  %v1373 = vpop.f32.mrf.mxu0
  %v1374 = vpop.f32.mrf.mxu0
  %1375 = vdwg.mxu0
  %v1376 = vadd.f32 %v1332, %v1371
  %v1377 = vxor.u32 %v1376, 2147483648
  %v1378 = vmul.f32 %v1377, 1.442695
  %v1379 = vpow.pop %v1378
  %v1380 = vadd.f32 %v1379, 1.0
  %v1381 = vrcp.pop %v1380
  %v1382 = vmul.f32 1.0, %v1381
  %v1383 = vtanh.pop %v1376
  %v1384 = vmul.f32 %v1382, %v1314
  %1386 = vrot.lane.b32.xlu0 %v1383, 64
  %v1387 = vpop.permute.xlu0 %1386
  %v1389 = vmul.f32 %v1382, %v1387
  %1391 = vrot.lane.b32.xlu0 %v1389, 32
  %v1392 = vpop.permute.xlu0 %1391
  %v1394 = vadd.f32 %v1384, %v1392
  %v1395 = vtanh.pop %v1394
  %1397 = vrot.lane.b32.xlu0 %v1395, 64
  %v1398 = vpop.permute.xlu0 %1397
  %v1400 = vmul.f32 %v1382, %v1398
  %1402 = vrot.lane.b32.xlu0 %v1400, 32
  %v1403 = vpop.permute.xlu0 %1402
  %1405 = vst.msk [vmem:[#allocation4 + $0x18] sm:$0xff] %vm308, %v1403
  %1406 = vrot.lane.b32.xlu0 %v1400, 64
  %v1407 = vpop.permute.xlu0 %1406
  %v1409 = vsel %vm308, %v1403, %v1407
  %v1410 = vmul.f32 %v1409, %v48
  %v1411 = vpack.c.bf16 %v1410, %v1410
  %v1412 = vld [vmem:[#allocation2 + $0x20] sm:$0xff]
  %v1414 = vsel %vm117, %v1411, 0
  %1416 = vmatprep.subr.bf16.mxu0 0
  %1417 = vmatpush1.bf16.msra.mxu0 0
  %1418 = vmatprep.subr.bf16.mxu0 0
  %1419 = vmatpush1.bf16.msra.mxu0 0
  %1420 = vmatprep.subr.bf16.mxu0 0
  %1421 = vmatpush1.bf16.msra.mxu0 0
  %1422 = vmatprep.subr.bf16.mxu0 0
  %1423 = vmatpush1.bf16.msra.mxu0 0
  %1424 = vmatprep.subr.bf16.mxu0 0
  %1425 = vmatpush1.bf16.msra.mxu0 %v1091
  %1426 = vmatprep.subr.bf16.mxu0 0
  %1427 = vmatpush1.bf16.msra.mxu0 %v1090
  %1428 = vmatprep.subr.bf16.mxu0 0
  %1429 = vmatpush1.bf16.msra.mxu0 %v1089
  %1430 = vmatprep.subr.bf16.mxu0 0
  %1431 = vmatpush1.bf16.msra.mxu0 %v1088
  %1432 = vmatprep.subr.bf16.mxu0 0
  %1433 = vmatpush2.bf16.msra.mxu0 0
  %1434 = vmatprep.subr.bf16.mxu0 0
  %1435 = vmatpush2.bf16.msra.mxu0 0
  %1436 = vmatprep.subr.bf16.mxu0 0
  %1437 = vmatpush2.bf16.msra.mxu0 0
  %1438 = vmatprep.subr.bf16.mxu0 0
  %1439 = vmatpush2.bf16.msra.mxu0 0
  %1440 = vmatprep.subr.bf16.mxu0 0
  %1441 = vmatpush2.bf16.msra.mxu0 0
  %1442 = vmatprep.subr.bf16.mxu0 0
  %1443 = vmatpush2.bf16.msra.mxu0 0
  %1444 = vmatprep.subr.bf16.mxu0 0
  %1445 = vmatpush2.bf16.msra.mxu0 0
  %1446 = vmatprep.subr.bf16.mxu0 0
  %1447 = vmatpush2.bf16.msra.mxu0 0
  %1448 = vmatprep.mubr.bf16.mxu0 0
  %1449 = vmatmul.mubr.bf16.gmra.mxu0 %v1414
  %v1450 = vpop.f32.mrf.mxu0
  %v1451 = vadd.f32 0.0, %v1450
  %v1452 = vpop.f32.mrf.mxu0
  %v1453 = vpop.f32.mrf.mxu0
  %v1454 = vpop.f32.mrf.mxu0
  %1455 = vdwg.mxu0
  %v1456 = vadd.f32 %v1412, %v1451
  %v1457 = vxor.u32 %v1456, 2147483648
  %v1458 = vmul.f32 %v1457, 1.442695
  %v1459 = vpow.pop %v1458
  %v1460 = vadd.f32 %v1459, 1.0
  %v1461 = vrcp.pop %v1460
  %v1462 = vmul.f32 1.0, %v1461
  %v1463 = vtanh.pop %v1456
  %v1464 = vmul.f32 %v1462, %v1394
  %1466 = vrot.lane.b32.xlu0 %v1463, 64
  %v1467 = vpop.permute.xlu0 %1466
  %v1469 = vmul.f32 %v1462, %v1467
  %1471 = vrot.lane.b32.xlu0 %v1469, 32
  %v1472 = vpop.permute.xlu0 %1471
  %v1474 = vadd.f32 %v1464, %v1472
  %v1475 = vtanh.pop %v1474
  %1477 = vrot.lane.b32.xlu0 %v1475, 64
  %v1478 = vpop.permute.xlu0 %1477
  %v1480 = vmul.f32 %v1462, %v1478
  %1482 = vrot.lane.b32.xlu0 %v1480, 32
  %v1483 = vpop.permute.xlu0 %1482
  %1485 = vst.msk [vmem:[#allocation4 + $0x20] sm:$0xff] %vm308, %v1483
  %1486 = vrot.lane.b32.xlu0 %v1480, 64
  %v1487 = vpop.permute.xlu0 %1486
  %v1489 = vsel %vm308, %v1483, %v1487
  %v1490 = vmul.f32 %v1489, %v48
  %v1491 = vpack.c.bf16 %v1490, %v1490
  %v1492 = vld [vmem:[#allocation2 + $0x28] sm:$0xff]
  %v1494 = vsel %vm117, %v1491, 0
  %1496 = vmatprep.subr.bf16.mxu0 0
  %1497 = vmatpush1.bf16.msra.mxu0 0
  %1498 = vmatprep.subr.bf16.mxu0 0
  %1499 = vmatpush1.bf16.msra.mxu0 0
  %1500 = vmatprep.subr.bf16.mxu0 0
  %1501 = vmatpush1.bf16.msra.mxu0 0
  %1502 = vmatprep.subr.bf16.mxu0 0
  %1503 = vmatpush1.bf16.msra.mxu0 0
  %1504 = vmatprep.subr.bf16.mxu0 0
  %1505 = vmatpush1.bf16.msra.mxu0 %v1091
  %1506 = vmatprep.subr.bf16.mxu0 0
  %1507 = vmatpush1.bf16.msra.mxu0 %v1090
  %1508 = vmatprep.subr.bf16.mxu0 0
  %1509 = vmatpush1.bf16.msra.mxu0 %v1089
  %1510 = vmatprep.subr.bf16.mxu0 0
  %1511 = vmatpush1.bf16.msra.mxu0 %v1088
  %1512 = vmatprep.subr.bf16.mxu0 0
  %1513 = vmatpush2.bf16.msra.mxu0 0
  %1514 = vmatprep.subr.bf16.mxu0 0
  %1515 = vmatpush2.bf16.msra.mxu0 0
  %1516 = vmatprep.subr.bf16.mxu0 0
  %1517 = vmatpush2.bf16.msra.mxu0 0
  %1518 = vmatprep.subr.bf16.mxu0 0
  %1519 = vmatpush2.bf16.msra.mxu0 0
  %1520 = vmatprep.subr.bf16.mxu0 0
  %1521 = vmatpush2.bf16.msra.mxu0 0
  %1522 = vmatprep.subr.bf16.mxu0 0
  %1523 = vmatpush2.bf16.msra.mxu0 0
  %1524 = vmatprep.subr.bf16.mxu0 0
  %1525 = vmatpush2.bf16.msra.mxu0 0
  %1526 = vmatprep.subr.bf16.mxu0 0
  %1527 = vmatpush2.bf16.msra.mxu0 0
  %1528 = vmatprep.mubr.bf16.mxu0 0
  %1529 = vmatmul.mubr.bf16.gmra.mxu0 %v1494
  %v1530 = vpop.f32.mrf.mxu0
  %v1531 = vadd.f32 0.0, %v1530
  %v1532 = vpop.f32.mrf.mxu0
  %v1533 = vpop.f32.mrf.mxu0
  %v1534 = vpop.f32.mrf.mxu0
  %1535 = vdwg.mxu0
  %v1536 = vadd.f32 %v1492, %v1531
  %v1537 = vxor.u32 %v1536, 2147483648
  %v1538 = vmul.f32 %v1537, 1.442695
  %v1539 = vpow.pop %v1538
  %v1540 = vadd.f32 %v1539, 1.0
  %v1541 = vrcp.pop %v1540
  %v1542 = vmul.f32 1.0, %v1541
  %v1543 = vtanh.pop %v1536
  %v1544 = vmul.f32 %v1542, %v1474
  %1546 = vrot.lane.b32.xlu0 %v1543, 64
  %v1547 = vpop.permute.xlu0 %1546
  %v1549 = vmul.f32 %v1542, %v1547
  %1551 = vrot.lane.b32.xlu0 %v1549, 32
  %v1552 = vpop.permute.xlu0 %1551
  %v1554 = vadd.f32 %v1544, %v1552
  %v1555 = vtanh.pop %v1554
  %1557 = vrot.lane.b32.xlu0 %v1555, 64
  %v1558 = vpop.permute.xlu0 %1557
  %v1560 = vmul.f32 %v1542, %v1558
  %1562 = vrot.lane.b32.xlu0 %v1560, 32
  %v1563 = vpop.permute.xlu0 %1562
  %1565 = vst.msk [vmem:[#allocation4 + $0x28] sm:$0xff] %vm308, %v1563
  %1566 = vrot.lane.b32.xlu0 %v1560, 64
  %v1567 = vpop.permute.xlu0 %1566
  %v1569 = vsel %vm308, %v1563, %v1567
  %v1570 = vmul.f32 %v1569, %v48
  %v1571 = vpack.c.bf16 %v1570, %v1570
  %v1572 = vld [vmem:[#allocation2 + $0x30] sm:$0xff]
  %v1574 = vsel %vm117, %v1571, 0
  %1576 = vmatprep.subr.bf16.mxu0 0
  %1577 = vmatpush1.bf16.msra.mxu0 0
  %1578 = vmatprep.subr.bf16.mxu0 0
  %1579 = vmatpush1.bf16.msra.mxu0 0
  %1580 = vmatprep.subr.bf16.mxu0 0
  %1581 = vmatpush1.bf16.msra.mxu0 0
  %1582 = vmatprep.subr.bf16.mxu0 0
  %1583 = vmatpush1.bf16.msra.mxu0 0
  %1584 = vmatprep.subr.bf16.mxu0 0
  %1585 = vmatpush1.bf16.msra.mxu0 %v1091
  %1586 = vmatprep.subr.bf16.mxu0 0
  %1587 = vmatpush1.bf16.msra.mxu0 %v1090
  %1588 = vmatprep.subr.bf16.mxu0 0
  %1589 = vmatpush1.bf16.msra.mxu0 %v1089
  %1590 = vmatprep.subr.bf16.mxu0 0
  %1591 = vmatpush1.bf16.msra.mxu0 %v1088
  %1592 = vmatprep.subr.bf16.mxu0 0
  %1593 = vmatpush2.bf16.msra.mxu0 0
  %1594 = vmatprep.subr.bf16.mxu0 0
  %1595 = vmatpush2.bf16.msra.mxu0 0
  %1596 = vmatprep.subr.bf16.mxu0 0
  %1597 = vmatpush2.bf16.msra.mxu0 0
  %1598 = vmatprep.subr.bf16.mxu0 0
  %1599 = vmatpush2.bf16.msra.mxu0 0
  %1600 = vmatprep.subr.bf16.mxu0 0
  %1601 = vmatpush2.bf16.msra.mxu0 0
  %1602 = vmatprep.subr.bf16.mxu0 0
  %1603 = vmatpush2.bf16.msra.mxu0 0
  %1604 = vmatprep.subr.bf16.mxu0 0
  %1605 = vmatpush2.bf16.msra.mxu0 0
  %1606 = vmatprep.subr.bf16.mxu0 0
  %1607 = vmatpush2.bf16.msra.mxu0 0
  %1608 = vmatprep.mubr.bf16.mxu0 0
  %1609 = vmatmul.mubr.bf16.gmra.mxu0 %v1574
  %v1610 = vpop.f32.mrf.mxu0
  %v1611 = vadd.f32 0.0, %v1610
  %v1612 = vpop.f32.mrf.mxu0
  %v1613 = vpop.f32.mrf.mxu0
  %v1614 = vpop.f32.mrf.mxu0
  %1615 = vdwg.mxu0
  %v1616 = vadd.f32 %v1572, %v1611
  %v1617 = vxor.u32 %v1616, 2147483648
  %v1618 = vmul.f32 %v1617, 1.442695
  %v1619 = vpow.pop %v1618
  %v1620 = vadd.f32 %v1619, 1.0
  %v1621 = vrcp.pop %v1620
  %v1622 = vmul.f32 1.0, %v1621
  %v1623 = vtanh.pop %v1616
  %v1624 = vmul.f32 %v1622, %v1554
  %1626 = vrot.lane.b32.xlu0 %v1623, 64
  %v1627 = vpop.permute.xlu0 %1626
  %v1629 = vmul.f32 %v1622, %v1627
  %1631 = vrot.lane.b32.xlu0 %v1629, 32
  %v1632 = vpop.permute.xlu0 %1631
  %v1634 = vadd.f32 %v1624, %v1632
  %v1635 = vtanh.pop %v1634
  %1637 = vrot.lane.b32.xlu0 %v1635, 64
  %v1638 = vpop.permute.xlu0 %1637
  %v1640 = vmul.f32 %v1622, %v1638
  %1642 = vrot.lane.b32.xlu0 %v1640, 32
  %v1643 = vpop.permute.xlu0 %1642
  %1645 = vst.msk [vmem:[#allocation4 + $0x30] sm:$0xff] %vm308, %v1643
  %1646 = vrot.lane.b32.xlu0 %v1640, 64
  %v1647 = vpop.permute.xlu0 %1646
  %v1649 = vsel %vm308, %v1643, %v1647
  %v1650 = vmul.f32 %v1649, %v48
  %v1651 = vpack.c.bf16 %v1650, %v1650
  %v1652 = vld [vmem:[#allocation2 + $0x38] sm:$0xff]
  %v1654 = vsel %vm117, %v1651, 0
  %1656 = vmatprep.subr.bf16.mxu0 0
  %1657 = vmatpush1.bf16.msra.mxu0 0
  %1658 = vmatprep.subr.bf16.mxu0 0
  %1659 = vmatpush1.bf16.msra.mxu0 0
  %1660 = vmatprep.subr.bf16.mxu0 0
  %1661 = vmatpush1.bf16.msra.mxu0 0
  %1662 = vmatprep.subr.bf16.mxu0 0
  %1663 = vmatpush1.bf16.msra.mxu0 0
  %1664 = vmatprep.subr.bf16.mxu0 0
  %1665 = vmatpush1.bf16.msra.mxu0 %v1091
  %1666 = vmatprep.subr.bf16.mxu0 0
  %1667 = vmatpush1.bf16.msra.mxu0 %v1090
  %1668 = vmatprep.subr.bf16.mxu0 0
  %1669 = vmatpush1.bf16.msra.mxu0 %v1089
  %1670 = vmatprep.subr.bf16.mxu0 0
  %1671 = vmatpush1.bf16.msra.mxu0 %v1088
  %1672 = vmatprep.subr.bf16.mxu0 0
  %1673 = vmatpush2.bf16.msra.mxu0 0
  %1674 = vmatprep.subr.bf16.mxu0 0
  %1675 = vmatpush2.bf16.msra.mxu0 0
  %1676 = vmatprep.subr.bf16.mxu0 0
  %1677 = vmatpush2.bf16.msra.mxu0 0
  %1678 = vmatprep.subr.bf16.mxu0 0
  %1679 = vmatpush2.bf16.msra.mxu0 0
  %1680 = vmatprep.subr.bf16.mxu0 0
  %1681 = vmatpush2.bf16.msra.mxu0 0
  %1682 = vmatprep.subr.bf16.mxu0 0
  %1683 = vmatpush2.bf16.msra.mxu0 0
  %1684 = vmatprep.subr.bf16.mxu0 0
  %1685 = vmatpush2.bf16.msra.mxu0 0
  %1686 = vmatprep.subr.bf16.mxu0 0
  %1687 = vmatpush2.bf16.msra.mxu0 0
  %1688 = vmatprep.mubr.bf16.mxu0 0
  %1689 = vmatmul.mubr.bf16.gmra.mxu0 %v1654
  %v1690 = vpop.f32.mrf.mxu0
  %v1691 = vadd.f32 0.0, %v1690
  %v1692 = vpop.f32.mrf.mxu0
  %v1693 = vpop.f32.mrf.mxu0
  %v1694 = vpop.f32.mrf.mxu0
  %1695 = vdwg.mxu0
  %v1696 = vadd.f32 %v1652, %v1691
  %v1697 = vxor.u32 %v1696, 2147483648
  %v1698 = vmul.f32 %v1697, 1.442695
  %v1699 = vpow.pop %v1698
  %v1700 = vadd.f32 %v1699, 1.0
  %v1701 = vrcp.pop %v1700
  %v1702 = vmul.f32 1.0, %v1701
  %v1703 = vtanh.pop %v1696
  %v1704 = vmul.f32 %v1702, %v1634
  %1706 = vrot.lane.b32.xlu0 %v1703, 64
  %v1707 = vpop.permute.xlu0 %1706
  %v1709 = vmul.f32 %v1702, %v1707
  %1711 = vrot.lane.b32.xlu0 %v1709, 32
  %v1712 = vpop.permute.xlu0 %1711
  %v1714 = vadd.f32 %v1704, %v1712
  %v1715 = vtanh.pop %v1714
  %1717 = vrot.lane.b32.xlu0 %v1715, 64
  %v1718 = vpop.permute.xlu0 %1717
  %v1720 = vmul.f32 %v1702, %v1718
  %1722 = vrot.lane.b32.xlu0 %v1720, 32
  %v1723 = vpop.permute.xlu0 %1722
  %1725 = vst.msk [vmem:[#allocation4 + $0x38] sm:$0xff] %vm308, %v1723
  %v1726 = vld [vmem:[#allocation4] sm:$0xff]
  %v1727 = vld [vmem:[#allocation4 + $0x8] sm:$0xff]
  %v1728 = vld [vmem:[#allocation4 + $0x10] sm:$0xff]
  %v1729 = vld [vmem:[#allocation4 + $0x18] sm:$0xff]
  %v1730 = vld [vmem:[#allocation4 + $0x20] sm:$0xff]
  %v1731 = vld [vmem:[#allocation4 + $0x28] sm:$0xff]
  %v1732 = vld [vmem:[#allocation4 + $0x30] sm:$0xff]
  %v1733 = vld [vmem:[#allocation4 + $0x38] sm:$0xff]
  %1742 = vrot.lane.b32.xlu0 %v1726, 32
  %v1743 = vpop.permute.xlu0 %1742
  %1744 = vrot.lane.b32.xlu0 %v1727, 32
  %v1745 = vpop.permute.xlu0 %1744
  %1746 = vrot.lane.b32.xlu0 %v1728, 32
  %v1747 = vpop.permute.xlu0 %1746
  %1748 = vrot.lane.b32.xlu0 %v1729, 32
  %v1749 = vpop.permute.xlu0 %1748
  %1750 = vrot.lane.b32.xlu0 %v1730, 32
  %v1751 = vpop.permute.xlu0 %1750
  %1752 = vrot.lane.b32.xlu0 %v1731, 32
  %v1753 = vpop.permute.xlu0 %1752
  %1754 = vrot.lane.b32.xlu0 %v1732, 32
  %v1755 = vpop.permute.xlu0 %1754
  %1756 = vrot.lane.b32.xlu0 %v1733, 32
  %v1757 = vpop.permute.xlu0 %1756
  %1766 = vrot.lane.b32.xlu0 %v870, 64
  %v1767 = vpop.permute.xlu0 %1766
  %1768 = vrot.lane.b32.xlu0 %v871, 64
  %v1769 = vpop.permute.xlu0 %1768
  %1770 = vrot.lane.b32.xlu0 %v872, 64
  %v1771 = vpop.permute.xlu0 %1770
  %1772 = vrot.lane.b32.xlu0 %v873, 64
  %v1773 = vpop.permute.xlu0 %1772
  %1774 = vrot.lane.b32.xlu0 %v874, 64
  %v1775 = vpop.permute.xlu0 %1774
  %1776 = vrot.lane.b32.xlu0 %v875, 64
  %v1777 = vpop.permute.xlu0 %1776
  %1778 = vrot.lane.b32.xlu0 %v876, 64
  %v1779 = vpop.permute.xlu0 %1778
  %1780 = vrot.lane.b32.xlu0 %v877, 64
  %v1781 = vpop.permute.xlu0 %1780
  %1790 = vrot.lane.b32.xlu0 %v1726, 96
  %v1791 = vpop.permute.xlu0 %1790
  %1792 = vrot.lane.b32.xlu0 %v1727, 96
  %v1793 = vpop.permute.xlu0 %1792
  %1794 = vrot.lane.b32.xlu0 %v1728, 96
  %v1795 = vpop.permute.xlu0 %1794
  %1796 = vrot.lane.b32.xlu0 %v1729, 96
  %v1797 = vpop.permute.xlu0 %1796
  %1798 = vrot.lane.b32.xlu0 %v1730, 96
  %v1799 = vpop.permute.xlu0 %1798
  %1800 = vrot.lane.b32.xlu0 %v1731, 96
  %v1801 = vpop.permute.xlu0 %1800
  %1802 = vrot.lane.b32.xlu0 %v1732, 96
  %v1803 = vpop.permute.xlu0 %1802
  %1804 = vrot.lane.b32.xlu0 %v1733, 96
  %v1805 = vpop.permute.xlu0 %1804
  %v1814 = vsel %vm308, %v870, %v1743
  %v1815 = vsel %vm308, %v871, %v1745
  %v1816 = vsel %vm308, %v872, %v1747
  %v1817 = vsel %vm308, %v873, %v1749
  %v1818 = vsel %vm308, %v874, %v1751
  %v1819 = vsel %vm308, %v875, %v1753
  %v1820 = vsel %vm308, %v876, %v1755
  %v1821 = vsel %vm308, %v877, %v1757
  %v1822 = vsel %vm117, %v1814, %v1767
  %v1823 = vsel %vm117, %v1815, %v1769
  %v1824 = vsel %vm117, %v1816, %v1771
  %v1825 = vsel %vm117, %v1817, %v1773
  %v1826 = vsel %vm117, %v1818, %v1775
  %v1827 = vsel %vm117, %v1819, %v1777
  %v1828 = vsel %vm117, %v1820, %v1779
  %v1829 = vsel %vm117, %v1821, %v1781
  %vm1830 = vcmask 785408
  %v1831 = vsel %vm1830, %v1822, %v1791
  %v1832 = vsel %vm1830, %v1823, %v1793
  %v1833 = vsel %vm1830, %v1824, %v1795
  %v1834 = vsel %vm1830, %v1825, %v1797
  %v1835 = vsel %vm1830, %v1826, %v1799
  %v1836 = vsel %vm1830, %v1827, %v1801
  %v1837 = vsel %vm1830, %v1828, %v1803
  %v1838 = vsel %vm1830, %v1829, %v1805
  %v1839 = vld [vmem:[%s13] sm:$0xff]
  %v1840 = vld [vmem:[%s13 + $0x8] sm:$0xff]
  %v1841 = vld [vmem:[%s13 + $0x10] sm:$0xff]
  %v1842 = vld [vmem:[%s13 + $0x18] sm:$0xff]
  %v1843 = vld [vmem:[%s13 + $0x20] sm:$0xff]
  %v1844 = vld [vmem:[%s13 + $0x28] sm:$0xff]
  %v1845 = vld [vmem:[%s13 + $0x30] sm:$0xff]
  %v1846 = vld [vmem:[%s13 + $0x38] sm:$0xff]
  %v1847 = vmul.f32 %v1831, %v1839
  %v1848 = vmul.f32 %v1832, %v1840
  %v1849 = vmul.f32 %v1833, %v1841
  %v1850 = vmul.f32 %v1834, %v1842
  %v1851 = vmul.f32 %v1835, %v1843
  %v1852 = vmul.f32 %v1836, %v1844
  %v1853 = vmul.f32 %v1837, %v1845
  %v1854 = vmul.f32 %v1838, %v1846
  %v1855 = vpack.c.bf16 %v1848, %v1847
  %v1856 = vpack.c.bf16 %v1850, %v1849
  %v1857 = vpack.c.bf16 %v1852, %v1851
  %v1858 = vpack.c.bf16 %v1854, %v1853
  %v1859 = vld [vmem:[%s7] sm:$0xf]
  %v1860 = vld [vmem:[%s7 + $0x4] sm:$0xf]
  %v1861 = vld [vmem:[%s7 + $0x8] sm:$0xf]
  %v1862 = vld [vmem:[%s7 + $0xc] sm:$0xf]
  %v1863 = vld [vmem:[%s7 + $0x10] sm:$0xf]
  %v1864 = vld [vmem:[%s7 + $0x14] sm:$0xf]
  %v1865 = vld [vmem:[%s7 + $0x18] sm:$0xf]
  %v1866 = vld [vmem:[%s7 + $0x1c] sm:$0xf]
  %v1867 = vld [vmem:[%s7 + $0x20] sm:$0xf]
  %v1868 = vld [vmem:[%s7 + $0x24] sm:$0xf]
  %v1869 = vld [vmem:[%s7 + $0x28] sm:$0xf]
  %v1870 = vld [vmem:[%s7 + $0x2c] sm:$0xf]
  %v1871 = vld [vmem:[%s7 + $0x30] sm:$0xf]
  %v1872 = vld [vmem:[%s7 + $0x34] sm:$0xf]
  %v1873 = vld [vmem:[%s7 + $0x38] sm:$0xf]
  %v1874 = vld [vmem:[%s7 + $0x3c] sm:$0xf]
  %v1891 = vunpack.c.l.b16 %v1859
  %v1892 = vunpack.c.l.b16 %v1860
  %v1893 = vunpack.c.l.b16 %v1861
  %v1894 = vunpack.c.l.b16 %v1862
  %v1895 = vunpack.c.l.b16 %v1863
  %v1896 = vunpack.c.l.b16 %v1864
  %v1897 = vunpack.c.l.b16 %v1865
  %v1898 = vunpack.c.l.b16 %v1866
  %v1899 = vunpack.c.l.b16 %v1867
  %v1900 = vunpack.c.l.b16 %v1868
  %v1901 = vunpack.c.l.b16 %v1869
  %v1902 = vunpack.c.l.b16 %v1870
  %v1903 = vunpack.c.l.b16 %v1871
  %v1904 = vunpack.c.l.b16 %v1872
  %v1905 = vunpack.c.l.b16 %v1873
  %v1906 = vunpack.c.l.b16 %v1874
  %v1907 = vpack.c.b16 %v1892, %v1891
  %v1908 = vpack.c.b16 %v1894, %v1893
  %v1909 = vpack.c.b16 %v1896, %v1895
  %v1910 = vpack.c.b16 %v1898, %v1897
  %v1911 = vpack.c.b16 %v1900, %v1899
  %v1912 = vpack.c.b16 %v1902, %v1901
  %v1913 = vpack.c.b16 %v1904, %v1903
  %v1914 = vpack.c.b16 %v1906, %v1905
  %1923 = vmatprep.subr.bf16.mxu0 0
  %1924 = vmatpush1.bf16.msra.mxu0 %v1914
  %1925 = vmatprep.subr.bf16.mxu0 0
  %1926 = vmatpush1.bf16.msra.mxu0 %v1913
  %1927 = vmatprep.subr.bf16.mxu0 0
  %1928 = vmatpush1.bf16.msra.mxu0 %v1912
  %1929 = vmatprep.subr.bf16.mxu0 0
  %1930 = vmatpush1.bf16.msra.mxu0 %v1911
  %1931 = vmatprep.subr.bf16.mxu0 0
  %1932 = vmatpush1.bf16.msra.mxu0 %v1910
  %1933 = vmatprep.subr.bf16.mxu0 0
  %1934 = vmatpush1.bf16.msra.mxu0 %v1909
  %1935 = vmatprep.subr.bf16.mxu0 0
  %1936 = vmatpush1.bf16.msra.mxu0 %v1908
  %1937 = vmatprep.subr.bf16.mxu0 0
  %1938 = vmatpush1.bf16.msra.mxu0 %v1907
  %1939 = vmatprep.subr.bf16.mxu0 0
  %1940 = vmatpush2.bf16.msra.mxu0 0
  %1941 = vmatprep.subr.bf16.mxu0 0
  %1942 = vmatpush2.bf16.msra.mxu0 0
  %1943 = vmatprep.subr.bf16.mxu0 0
  %1944 = vmatpush2.bf16.msra.mxu0 0
  %1945 = vmatprep.subr.bf16.mxu0 0
  %1946 = vmatpush2.bf16.msra.mxu0 0
  %1947 = vmatprep.subr.bf16.mxu0 0
  %1948 = vmatpush2.bf16.msra.mxu0 0
  %1949 = vmatprep.subr.bf16.mxu0 0
  %1950 = vmatpush2.bf16.msra.mxu0 0
  %1951 = vmatprep.subr.bf16.mxu0 0
  %1952 = vmatpush2.bf16.msra.mxu0 0
  %1953 = vmatprep.subr.bf16.mxu0 0
  %1954 = vmatpush2.bf16.msra.mxu0 0
  %1955 = vmatprep.mubr.bf16.mxu0 0
  %1956 = vmatmul.mubr.bf16.gmra.mxu0 %v1855
  %v1957 = vpop.f32.mrf.mxu0
  %v1958 = vadd.f32 0.0, %v1957
  %v1959 = vpop.f32.mrf.mxu0
  %v1960 = vpop.f32.mrf.mxu0
  %v1961 = vadd.f32 0.0, %v1960
  %v1962 = vpop.f32.mrf.mxu0
  %1963 = vmatprep.mubr.bf16.mxu0 0
  %1964 = vmatmul.mubr.bf16.gmra.mxu0 %v1856
  %v1965 = vpop.f32.mrf.mxu0
  %v1966 = vadd.f32 0.0, %v1965
  %v1967 = vpop.f32.mrf.mxu0
  %v1968 = vpop.f32.mrf.mxu0
  %v1969 = vadd.f32 0.0, %v1968
  %v1970 = vpop.f32.mrf.mxu0
  %1971 = vmatprep.mubr.bf16.mxu0 0
  %1972 = vmatmul.mubr.bf16.gmra.mxu0 %v1857
  %v1973 = vpop.f32.mrf.mxu0
  %v1974 = vadd.f32 0.0, %v1973
  %v1975 = vpop.f32.mrf.mxu0
  %v1976 = vpop.f32.mrf.mxu0
  %v1977 = vadd.f32 0.0, %v1976
  %v1978 = vpop.f32.mrf.mxu0
  %1979 = vmatprep.mubr.bf16.mxu0 0
  %1980 = vmatmul.mubr.bf16.gmra.mxu0 %v1858
  %v1981 = vpop.f32.mrf.mxu0
  %v1982 = vadd.f32 0.0, %v1981
  %v1983 = vpop.f32.mrf.mxu0
  %v1984 = vpop.f32.mrf.mxu0
  %v1985 = vadd.f32 0.0, %v1984
  %v1986 = vpop.f32.mrf.mxu0
  %1987 = vdwg.mxu0
  %v1988 = vld [vmem:[%s9] sm:$0x1]
  %v1989 = vrot.slane %v1985, 4
  %v1990 = vadd.f32 %v1958, %v1989
  %v1992 = vlaneseq
  %v1993 = vshrl.u32 %v1992, 7
  %v1994 = vsub.s32 0, %v1993
  %v1995 = vrot.slane %v1988, %v1994
  %v1997 = vadd.f32 %v1990, %v1995
  %1998 = vst [vmem:[#allocation2] sm:$0xff] %v1997
  %v1999 = vrot.slane %v1982, 4
  %v2000 = vadd.f32 %v1961, %v1999
  %v2001 = vadd.f32 %v2000, %v1995
  %2002 = vst [vmem:[#allocation2 + $0x8] sm:$0xff] %v2001
  %v2003 = vrot.slane %v1977, 4
  %v2004 = vadd.f32 %v1966, %v2003
  %v2005 = vadd.f32 %v2004, %v1995
  %2006 = vst [vmem:[#allocation2 + $0x10] sm:$0xff] %v2005
  %v2007 = vrot.slane %v1974, 4
  %v2008 = vadd.f32 %v1969, %v2007
  %v2009 = vadd.f32 %v2008, %v1995
  %2010 = vst [vmem:[#allocation2 + $0x18] sm:$0xff] %v2009
  %v2011 = vrot.slane %v1969, 4
  %v2012 = vadd.f32 %v1974, %v2011
  %v2013 = vadd.f32 %v2012, %v1995
  %2014 = vst [vmem:[#allocation2 + $0x20] sm:$0xff] %v2013
  %v2015 = vrot.slane %v1966, 4
  %v2016 = vadd.f32 %v1977, %v2015
  %v2017 = vadd.f32 %v2016, %v1995
  %2018 = vst [vmem:[#allocation2 + $0x28] sm:$0xff] %v2017
  %v2019 = vrot.slane %v1961, 4
  %v2020 = vadd.f32 %v1982, %v2019
  %v2021 = vadd.f32 %v2020, %v1995
  %2022 = vst [vmem:[#allocation2 + $0x30] sm:$0xff] %v2021
  %v2023 = vrot.slane %v1958, 4
  %v2024 = vadd.f32 %v1985, %v2023
  %v2025 = vadd.f32 %v2024, %v1995
  %2026 = vst [vmem:[#allocation2 + $0x38] sm:$0xff] %v2025
  %v2027 = vld [vmem:[%s8] sm:$0xf]
  %v2028 = vld [vmem:[%s8 + $0x4] sm:$0xf]
  %v2029 = vld [vmem:[%s8 + $0x8] sm:$0xf]
  %v2030 = vld [vmem:[%s8 + $0xc] sm:$0xf]
  %v2031 = vld [vmem:[#allocation2] sm:$0xff]
  %v2036 = vunpack.c.l.b16 %v2027
  %v2037 = vunpack.c.l.b16 %v2028
  %v2038 = vunpack.c.l.b16 %v2029
  %v2039 = vunpack.c.l.b16 %v2030
  %v2040 = vpack.c.b16 %v2037, %v2036
  %v2041 = vpack.c.b16 %v2039, %v2038
  %v2044 = vsel %vm308, 0, 0
  %2046 = vmatprep.subr.bf16.mxu0 0
  %2047 = vmatpush1.bf16.msra.mxu0 0
  %2048 = vmatprep.subr.bf16.mxu0 0
  %2049 = vmatpush1.bf16.msra.mxu0 0
  %2050 = vmatprep.subr.bf16.mxu0 0
  %2051 = vmatpush1.bf16.msra.mxu0 0
  %2052 = vmatprep.subr.bf16.mxu0 0
  %2053 = vmatpush1.bf16.msra.mxu0 0
  %2054 = vmatprep.subr.bf16.mxu0 0
  %2055 = vmatpush1.bf16.msra.mxu0 0
  %2056 = vmatprep.subr.bf16.mxu0 0
  %2057 = vmatpush1.bf16.msra.mxu0 0
  %2058 = vmatprep.subr.bf16.mxu0 0
  %2059 = vmatpush1.bf16.msra.mxu0 %v2041
  %2060 = vmatprep.subr.bf16.mxu0 0
  %2061 = vmatpush1.bf16.msra.mxu0 %v2040
  %2062 = vmatprep.subr.bf16.mxu0 0
  %2063 = vmatpush2.bf16.msra.mxu0 0
  %2064 = vmatprep.subr.bf16.mxu0 0
  %2065 = vmatpush2.bf16.msra.mxu0 0
  %2066 = vmatprep.subr.bf16.mxu0 0
  %2067 = vmatpush2.bf16.msra.mxu0 0
  %2068 = vmatprep.subr.bf16.mxu0 0
  %2069 = vmatpush2.bf16.msra.mxu0 0
  %2070 = vmatprep.subr.bf16.mxu0 0
  %2071 = vmatpush2.bf16.msra.mxu0 0
  %2072 = vmatprep.subr.bf16.mxu0 0
  %2073 = vmatpush2.bf16.msra.mxu0 0
  %2074 = vmatprep.subr.bf16.mxu0 0
  %2075 = vmatpush2.bf16.msra.mxu0 0
  %2076 = vmatprep.subr.bf16.mxu0 0
  %2077 = vmatpush2.bf16.msra.mxu0 0
  %2078 = vmatprep.mubr.bf16.mxu0 0
  %2079 = vmatmul.mubr.bf16.gmra.mxu0 %v2044
  %v2080 = vpop.f32.mrf.mxu0
  %v2081 = vadd.f32 0.0, %v2080
  %v2082 = vpop.f32.mrf.mxu0
  %v2083 = vpop.f32.mrf.mxu0
  %v2084 = vpop.f32.mrf.mxu0
  %2085 = vdwg.mxu0
  %v2086 = vadd.f32 %v2031, %v2081
  %v2087 = vxor.u32 %v2086, 2147483648
  %v2088 = vmul.f32 %v2087, 1.442695
  %v2089 = vpow.pop %v2088
  %v2090 = vadd.f32 %v2089, 1.0
  %v2091 = vrcp.pop %v2090
  %v2092 = vmul.f32 1.0, %v2091
  %v2093 = vtanh.pop %v2086
  %v2094 = vmul.f32 %v2092, 0.0
  %2096 = vrot.lane.b32.xlu0 %v2093, 64
  %v2097 = vpop.permute.xlu0 %2096
  %v2099 = vmul.f32 %v2092, %v2097
  %2101 = vrot.lane.b32.xlu0 %v2099, 32
  %v2102 = vpop.permute.xlu0 %2101
  %v2104 = vadd.f32 %v2094, %v2102
  %v2105 = vtanh.pop %v2104
  %2107 = vrot.lane.b32.xlu0 %v2105, 64
  %v2108 = vpop.permute.xlu0 %2107
  %v2110 = vmul.f32 %v2092, %v2108
  %v2111 = vld [vmem:[#allocation2 + $0x8] sm:$0xff]
  %v2112 = vpack.c.bf16 %v2110, %v2110
  %2114 = vrot.lane.b32.xlu0 %v2112, 32
  %v2115 = vpop.permute.xlu0 %2114
  %v2117 = vsel %vm308, %v2115, 0
  %2119 = vmatprep.subr.bf16.mxu0 0
  %2120 = vmatpush1.bf16.msra.mxu0 0
  %2121 = vmatprep.subr.bf16.mxu0 0
  %2122 = vmatpush1.bf16.msra.mxu0 0
  %2123 = vmatprep.subr.bf16.mxu0 0
  %2124 = vmatpush1.bf16.msra.mxu0 0
  %2125 = vmatprep.subr.bf16.mxu0 0
  %2126 = vmatpush1.bf16.msra.mxu0 0
  %2127 = vmatprep.subr.bf16.mxu0 0
  %2128 = vmatpush1.bf16.msra.mxu0 0
  %2129 = vmatprep.subr.bf16.mxu0 0
  %2130 = vmatpush1.bf16.msra.mxu0 0
  %2131 = vmatprep.subr.bf16.mxu0 0
  %2132 = vmatpush1.bf16.msra.mxu0 %v2041
  %2133 = vmatprep.subr.bf16.mxu0 0
  %2134 = vmatpush1.bf16.msra.mxu0 %v2040
  %2135 = vmatprep.subr.bf16.mxu0 0
  %2136 = vmatpush2.bf16.msra.mxu0 0
  %2137 = vmatprep.subr.bf16.mxu0 0
  %2138 = vmatpush2.bf16.msra.mxu0 0
  %2139 = vmatprep.subr.bf16.mxu0 0
  %2140 = vmatpush2.bf16.msra.mxu0 0
  %2141 = vmatprep.subr.bf16.mxu0 0
  %2142 = vmatpush2.bf16.msra.mxu0 0
  %2143 = vmatprep.subr.bf16.mxu0 0
  %2144 = vmatpush2.bf16.msra.mxu0 0
  %2145 = vmatprep.subr.bf16.mxu0 0
  %2146 = vmatpush2.bf16.msra.mxu0 0
  %2147 = vmatprep.subr.bf16.mxu0 0
  %2148 = vmatpush2.bf16.msra.mxu0 0
  %2149 = vmatprep.subr.bf16.mxu0 0
  %2150 = vmatpush2.bf16.msra.mxu0 0
  %2151 = vmatprep.mubr.bf16.mxu0 0
  %2152 = vmatmul.mubr.bf16.gmra.mxu0 %v2117
  %v2153 = vpop.f32.mrf.mxu0
  %v2154 = vadd.f32 0.0, %v2153
  %v2155 = vpop.f32.mrf.mxu0
  %v2156 = vpop.f32.mrf.mxu0
  %v2157 = vpop.f32.mrf.mxu0
  %2158 = vdwg.mxu0
  %v2159 = vadd.f32 %v2111, %v2154
  %v2160 = vxor.u32 %v2159, 2147483648
  %v2161 = vmul.f32 %v2160, 1.442695
  %v2162 = vpow.pop %v2161
  %v2163 = vadd.f32 %v2162, 1.0
  %v2164 = vrcp.pop %v2163
  %v2165 = vmul.f32 1.0, %v2164
  %v2166 = vtanh.pop %v2159
  %v2167 = vmul.f32 %v2165, %v2104
  %2169 = vrot.lane.b32.xlu0 %v2166, 64
  %v2170 = vpop.permute.xlu0 %2169
  %v2172 = vmul.f32 %v2165, %v2170
  %2174 = vrot.lane.b32.xlu0 %v2172, 32
  %v2175 = vpop.permute.xlu0 %2174
  %v2177 = vadd.f32 %v2167, %v2175
  %v2178 = vtanh.pop %v2177
  %2180 = vrot.lane.b32.xlu0 %v2178, 64
  %v2181 = vpop.permute.xlu0 %2180
  %v2183 = vmul.f32 %v2165, %v2181
  %v2184 = vld [vmem:[#allocation2 + $0x10] sm:$0xff]
  %v2185 = vpack.c.bf16 %v2183, %v2183
  %2187 = vrot.lane.b32.xlu0 %v2185, 32
  %v2188 = vpop.permute.xlu0 %2187
  %v2190 = vsel %vm308, %v2188, 0
  %2192 = vmatprep.subr.bf16.mxu0 0
  %2193 = vmatpush1.bf16.msra.mxu0 0
  %2194 = vmatprep.subr.bf16.mxu0 0
  %2195 = vmatpush1.bf16.msra.mxu0 0
  %2196 = vmatprep.subr.bf16.mxu0 0
  %2197 = vmatpush1.bf16.msra.mxu0 0
  %2198 = vmatprep.subr.bf16.mxu0 0
  %2199 = vmatpush1.bf16.msra.mxu0 0
  %2200 = vmatprep.subr.bf16.mxu0 0
  %2201 = vmatpush1.bf16.msra.mxu0 0
  %2202 = vmatprep.subr.bf16.mxu0 0
  %2203 = vmatpush1.bf16.msra.mxu0 0
  %2204 = vmatprep.subr.bf16.mxu0 0
  %2205 = vmatpush1.bf16.msra.mxu0 %v2041
  %2206 = vmatprep.subr.bf16.mxu0 0
  %2207 = vmatpush1.bf16.msra.mxu0 %v2040
  %2208 = vmatprep.subr.bf16.mxu0 0
  %2209 = vmatpush2.bf16.msra.mxu0 0
  %2210 = vmatprep.subr.bf16.mxu0 0
  %2211 = vmatpush2.bf16.msra.mxu0 0
  %2212 = vmatprep.subr.bf16.mxu0 0
  %2213 = vmatpush2.bf16.msra.mxu0 0
  %2214 = vmatprep.subr.bf16.mxu0 0
  %2215 = vmatpush2.bf16.msra.mxu0 0
  %2216 = vmatprep.subr.bf16.mxu0 0
  %2217 = vmatpush2.bf16.msra.mxu0 0
  %2218 = vmatprep.subr.bf16.mxu0 0
  %2219 = vmatpush2.bf16.msra.mxu0 0
  %2220 = vmatprep.subr.bf16.mxu0 0
  %2221 = vmatpush2.bf16.msra.mxu0 0
  %2222 = vmatprep.subr.bf16.mxu0 0
  %2223 = vmatpush2.bf16.msra.mxu0 0
  %2224 = vmatprep.mubr.bf16.mxu0 0
  %2225 = vmatmul.mubr.bf16.gmra.mxu0 %v2190
  %v2226 = vpop.f32.mrf.mxu0
  %v2227 = vadd.f32 0.0, %v2226
  %v2228 = vpop.f32.mrf.mxu0
  %v2229 = vpop.f32.mrf.mxu0
  %v2230 = vpop.f32.mrf.mxu0
  %2231 = vdwg.mxu0
  %v2232 = vadd.f32 %v2184, %v2227
  %v2233 = vxor.u32 %v2232, 2147483648
  %v2234 = vmul.f32 %v2233, 1.442695
  %v2235 = vpow.pop %v2234
  %v2236 = vadd.f32 %v2235, 1.0
  %v2237 = vrcp.pop %v2236
  %v2238 = vmul.f32 1.0, %v2237
  %v2239 = vtanh.pop %v2232
  %v2240 = vmul.f32 %v2238, %v2177
  %2242 = vrot.lane.b32.xlu0 %v2239, 64
  %v2243 = vpop.permute.xlu0 %2242
  %v2245 = vmul.f32 %v2238, %v2243
  %2247 = vrot.lane.b32.xlu0 %v2245, 32
  %v2248 = vpop.permute.xlu0 %2247
  %v2250 = vadd.f32 %v2240, %v2248
  %v2251 = vtanh.pop %v2250
  %2253 = vrot.lane.b32.xlu0 %v2251, 64
  %v2254 = vpop.permute.xlu0 %2253
  %v2256 = vmul.f32 %v2238, %v2254
  %v2257 = vld [vmem:[#allocation2 + $0x18] sm:$0xff]
  %v2258 = vpack.c.bf16 %v2256, %v2256
  %2260 = vrot.lane.b32.xlu0 %v2258, 32
  %v2261 = vpop.permute.xlu0 %2260
  %v2263 = vsel %vm308, %v2261, 0
  %2265 = vmatprep.subr.bf16.mxu0 0
  %2266 = vmatpush1.bf16.msra.mxu0 0
  %2267 = vmatprep.subr.bf16.mxu0 0
  %2268 = vmatpush1.bf16.msra.mxu0 0
  %2269 = vmatprep.subr.bf16.mxu0 0
  %2270 = vmatpush1.bf16.msra.mxu0 0
  %2271 = vmatprep.subr.bf16.mxu0 0
  %2272 = vmatpush1.bf16.msra.mxu0 0
  %2273 = vmatprep.subr.bf16.mxu0 0
  %2274 = vmatpush1.bf16.msra.mxu0 0
  %2275 = vmatprep.subr.bf16.mxu0 0
  %2276 = vmatpush1.bf16.msra.mxu0 0
  %2277 = vmatprep.subr.bf16.mxu0 0
  %2278 = vmatpush1.bf16.msra.mxu0 %v2041
  %2279 = vmatprep.subr.bf16.mxu0 0
  %2280 = vmatpush1.bf16.msra.mxu0 %v2040
  %2281 = vmatprep.subr.bf16.mxu0 0
  %2282 = vmatpush2.bf16.msra.mxu0 0
  %2283 = vmatprep.subr.bf16.mxu0 0
  %2284 = vmatpush2.bf16.msra.mxu0 0
  %2285 = vmatprep.subr.bf16.mxu0 0
  %2286 = vmatpush2.bf16.msra.mxu0 0
  %2287 = vmatprep.subr.bf16.mxu0 0
  %2288 = vmatpush2.bf16.msra.mxu0 0
  %2289 = vmatprep.subr.bf16.mxu0 0
  %2290 = vmatpush2.bf16.msra.mxu0 0
  %2291 = vmatprep.subr.bf16.mxu0 0
  %2292 = vmatpush2.bf16.msra.mxu0 0
  %2293 = vmatprep.subr.bf16.mxu0 0
  %2294 = vmatpush2.bf16.msra.mxu0 0
  %2295 = vmatprep.subr.bf16.mxu0 0
  %2296 = vmatpush2.bf16.msra.mxu0 0
  %2297 = vmatprep.mubr.bf16.mxu0 0
  %2298 = vmatmul.mubr.bf16.gmra.mxu0 %v2263
  %v2299 = vpop.f32.mrf.mxu0
  %v2300 = vadd.f32 0.0, %v2299
  %v2301 = vpop.f32.mrf.mxu0
  %v2302 = vpop.f32.mrf.mxu0
  %v2303 = vpop.f32.mrf.mxu0
  %2304 = vdwg.mxu0
  %v2305 = vadd.f32 %v2257, %v2300
  %v2306 = vxor.u32 %v2305, 2147483648
  %v2307 = vmul.f32 %v2306, 1.442695
  %v2308 = vpow.pop %v2307
  %v2309 = vadd.f32 %v2308, 1.0
  %v2310 = vrcp.pop %v2309
  %v2311 = vmul.f32 1.0, %v2310
  %v2312 = vtanh.pop %v2305
  %v2313 = vmul.f32 %v2311, %v2250
  %2315 = vrot.lane.b32.xlu0 %v2312, 64
  %v2316 = vpop.permute.xlu0 %2315
  %v2318 = vmul.f32 %v2311, %v2316
  %2320 = vrot.lane.b32.xlu0 %v2318, 32
  %v2321 = vpop.permute.xlu0 %2320
  %v2323 = vadd.f32 %v2313, %v2321
  %v2324 = vtanh.pop %v2323
  %2326 = vrot.lane.b32.xlu0 %v2324, 64
  %v2327 = vpop.permute.xlu0 %2326
  %v2329 = vmul.f32 %v2311, %v2327
  %v2330 = vld [vmem:[#allocation2 + $0x20] sm:$0xff]
  %v2331 = vpack.c.bf16 %v2329, %v2329
  %2333 = vrot.lane.b32.xlu0 %v2331, 32
  %v2334 = vpop.permute.xlu0 %2333
  %v2336 = vsel %vm308, %v2334, 0
  %2338 = vmatprep.subr.bf16.mxu0 0
  %2339 = vmatpush1.bf16.msra.mxu0 0
  %2340 = vmatprep.subr.bf16.mxu0 0
  %2341 = vmatpush1.bf16.msra.mxu0 0
  %2342 = vmatprep.subr.bf16.mxu0 0
  %2343 = vmatpush1.bf16.msra.mxu0 0
  %2344 = vmatprep.subr.bf16.mxu0 0
  %2345 = vmatpush1.bf16.msra.mxu0 0
  %2346 = vmatprep.subr.bf16.mxu0 0
  %2347 = vmatpush1.bf16.msra.mxu0 0
  %2348 = vmatprep.subr.bf16.mxu0 0
  %2349 = vmatpush1.bf16.msra.mxu0 0
  %2350 = vmatprep.subr.bf16.mxu0 0
  %2351 = vmatpush1.bf16.msra.mxu0 %v2041
  %2352 = vmatprep.subr.bf16.mxu0 0
  %2353 = vmatpush1.bf16.msra.mxu0 %v2040
  %2354 = vmatprep.subr.bf16.mxu0 0
  %2355 = vmatpush2.bf16.msra.mxu0 0
  %2356 = vmatprep.subr.bf16.mxu0 0
  %2357 = vmatpush2.bf16.msra.mxu0 0
  %2358 = vmatprep.subr.bf16.mxu0 0
  %2359 = vmatpush2.bf16.msra.mxu0 0
  %2360 = vmatprep.subr.bf16.mxu0 0
  %2361 = vmatpush2.bf16.msra.mxu0 0
  %2362 = vmatprep.subr.bf16.mxu0 0
  %2363 = vmatpush2.bf16.msra.mxu0 0
  %2364 = vmatprep.subr.bf16.mxu0 0
  %2365 = vmatpush2.bf16.msra.mxu0 0
  %2366 = vmatprep.subr.bf16.mxu0 0
  %2367 = vmatpush2.bf16.msra.mxu0 0
  %2368 = vmatprep.subr.bf16.mxu0 0
  %2369 = vmatpush2.bf16.msra.mxu0 0
  %2370 = vmatprep.mubr.bf16.mxu0 0
  %2371 = vmatmul.mubr.bf16.gmra.mxu0 %v2336
  %v2372 = vpop.f32.mrf.mxu0
  %v2373 = vadd.f32 0.0, %v2372
  %v2374 = vpop.f32.mrf.mxu0
  %v2375 = vpop.f32.mrf.mxu0
  %v2376 = vpop.f32.mrf.mxu0
  %2377 = vdwg.mxu0
  %v2378 = vadd.f32 %v2330, %v2373
  %v2379 = vxor.u32 %v2378, 2147483648
  %v2380 = vmul.f32 %v2379, 1.442695
  %v2381 = vpow.pop %v2380
  %v2382 = vadd.f32 %v2381, 1.0
  %v2383 = vrcp.pop %v2382
  %v2384 = vmul.f32 1.0, %v2383
  %v2385 = vtanh.pop %v2378
  %v2386 = vmul.f32 %v2384, %v2323
  %2388 = vrot.lane.b32.xlu0 %v2385, 64
  %v2389 = vpop.permute.xlu0 %2388
  %v2391 = vmul.f32 %v2384, %v2389
  %2393 = vrot.lane.b32.xlu0 %v2391, 32
  %v2394 = vpop.permute.xlu0 %2393
  %v2396 = vadd.f32 %v2386, %v2394
  %v2397 = vtanh.pop %v2396
  %2399 = vrot.lane.b32.xlu0 %v2397, 64
  %v2400 = vpop.permute.xlu0 %2399
  %v2402 = vmul.f32 %v2384, %v2400
  %v2403 = vld [vmem:[#allocation2 + $0x28] sm:$0xff]
  %v2404 = vpack.c.bf16 %v2402, %v2402
  %2406 = vrot.lane.b32.xlu0 %v2404, 32
  %v2407 = vpop.permute.xlu0 %2406
  %v2409 = vsel %vm308, %v2407, 0
  %2411 = vmatprep.subr.bf16.mxu0 0
  %2412 = vmatpush1.bf16.msra.mxu0 0
  %2413 = vmatprep.subr.bf16.mxu0 0
  %2414 = vmatpush1.bf16.msra.mxu0 0
  %2415 = vmatprep.subr.bf16.mxu0 0
  %2416 = vmatpush1.bf16.msra.mxu0 0
  %2417 = vmatprep.subr.bf16.mxu0 0
  %2418 = vmatpush1.bf16.msra.mxu0 0
  %2419 = vmatprep.subr.bf16.mxu0 0
  %2420 = vmatpush1.bf16.msra.mxu0 0
  %2421 = vmatprep.subr.bf16.mxu0 0
  %2422 = vmatpush1.bf16.msra.mxu0 0
  %2423 = vmatprep.subr.bf16.mxu0 0
  %2424 = vmatpush1.bf16.msra.mxu0 %v2041
  %2425 = vmatprep.subr.bf16.mxu0 0
  %2426 = vmatpush1.bf16.msra.mxu0 %v2040
  %2427 = vmatprep.subr.bf16.mxu0 0
  %2428 = vmatpush2.bf16.msra.mxu0 0
  %2429 = vmatprep.subr.bf16.mxu0 0
  %2430 = vmatpush2.bf16.msra.mxu0 0
  %2431 = vmatprep.subr.bf16.mxu0 0
  %2432 = vmatpush2.bf16.msra.mxu0 0
  %2433 = vmatprep.subr.bf16.mxu0 0
  %2434 = vmatpush2.bf16.msra.mxu0 0
  %2435 = vmatprep.subr.bf16.mxu0 0
  %2436 = vmatpush2.bf16.msra.mxu0 0
  %2437 = vmatprep.subr.bf16.mxu0 0
  %2438 = vmatpush2.bf16.msra.mxu0 0
  %2439 = vmatprep.subr.bf16.mxu0 0
  %2440 = vmatpush2.bf16.msra.mxu0 0
  %2441 = vmatprep.subr.bf16.mxu0 0
  %2442 = vmatpush2.bf16.msra.mxu0 0
  %2443 = vmatprep.mubr.bf16.mxu0 0
  %2444 = vmatmul.mubr.bf16.gmra.mxu0 %v2409
  %v2445 = vpop.f32.mrf.mxu0
  %v2446 = vadd.f32 0.0, %v2445
  %v2447 = vpop.f32.mrf.mxu0
  %v2448 = vpop.f32.mrf.mxu0
  %v2449 = vpop.f32.mrf.mxu0
  %2450 = vdwg.mxu0
  %v2451 = vadd.f32 %v2403, %v2446
  %v2452 = vxor.u32 %v2451, 2147483648
  %v2453 = vmul.f32 %v2452, 1.442695
  %v2454 = vpow.pop %v2453
  %v2455 = vadd.f32 %v2454, 1.0
  %v2456 = vrcp.pop %v2455
  %v2457 = vmul.f32 1.0, %v2456
  %v2458 = vtanh.pop %v2451
  %v2459 = vmul.f32 %v2457, %v2396
  %2461 = vrot.lane.b32.xlu0 %v2458, 64
  %v2462 = vpop.permute.xlu0 %2461
  %v2464 = vmul.f32 %v2457, %v2462
  %2466 = vrot.lane.b32.xlu0 %v2464, 32
  %v2467 = vpop.permute.xlu0 %2466
  %v2469 = vadd.f32 %v2459, %v2467
  %v2470 = vtanh.pop %v2469
  %2472 = vrot.lane.b32.xlu0 %v2470, 64
  %v2473 = vpop.permute.xlu0 %2472
  %v2475 = vmul.f32 %v2457, %v2473
  %v2476 = vld [vmem:[#allocation2 + $0x30] sm:$0xff]
  %v2477 = vpack.c.bf16 %v2475, %v2475
  %2479 = vrot.lane.b32.xlu0 %v2477, 32
  %v2480 = vpop.permute.xlu0 %2479
  %v2482 = vsel %vm308, %v2480, 0
  %2484 = vmatprep.subr.bf16.mxu0 0
  %2485 = vmatpush1.bf16.msra.mxu0 0
  %2486 = vmatprep.subr.bf16.mxu0 0
  %2487 = vmatpush1.bf16.msra.mxu0 0
  %2488 = vmatprep.subr.bf16.mxu0 0
  %2489 = vmatpush1.bf16.msra.mxu0 0
  %2490 = vmatprep.subr.bf16.mxu0 0
  %2491 = vmatpush1.bf16.msra.mxu0 0
  %2492 = vmatprep.subr.bf16.mxu0 0
  %2493 = vmatpush1.bf16.msra.mxu0 0
  %2494 = vmatprep.subr.bf16.mxu0 0
  %2495 = vmatpush1.bf16.msra.mxu0 0
  %2496 = vmatprep.subr.bf16.mxu0 0
  %2497 = vmatpush1.bf16.msra.mxu0 %v2041
  %2498 = vmatprep.subr.bf16.mxu0 0
  %2499 = vmatpush1.bf16.msra.mxu0 %v2040
  %2500 = vmatprep.subr.bf16.mxu0 0
  %2501 = vmatpush2.bf16.msra.mxu0 0
  %2502 = vmatprep.subr.bf16.mxu0 0
  %2503 = vmatpush2.bf16.msra.mxu0 0
  %2504 = vmatprep.subr.bf16.mxu0 0
  %2505 = vmatpush2.bf16.msra.mxu0 0
  %2506 = vmatprep.subr.bf16.mxu0 0
  %2507 = vmatpush2.bf16.msra.mxu0 0
  %2508 = vmatprep.subr.bf16.mxu0 0
  %2509 = vmatpush2.bf16.msra.mxu0 0
  %2510 = vmatprep.subr.bf16.mxu0 0
  %2511 = vmatpush2.bf16.msra.mxu0 0
  %2512 = vmatprep.subr.bf16.mxu0 0
  %2513 = vmatpush2.bf16.msra.mxu0 0
  %2514 = vmatprep.subr.bf16.mxu0 0
  %2515 = vmatpush2.bf16.msra.mxu0 0
  %2516 = vmatprep.mubr.bf16.mxu0 0
  %2517 = vmatmul.mubr.bf16.gmra.mxu0 %v2482
  %v2518 = vpop.f32.mrf.mxu0
  %v2519 = vadd.f32 0.0, %v2518
  %v2520 = vpop.f32.mrf.mxu0
  %v2521 = vpop.f32.mrf.mxu0
  %v2522 = vpop.f32.mrf.mxu0
  %2523 = vdwg.mxu0
  %v2524 = vadd.f32 %v2476, %v2519
  %v2525 = vxor.u32 %v2524, 2147483648
  %v2526 = vmul.f32 %v2525, 1.442695
  %v2527 = vpow.pop %v2526
  %v2528 = vadd.f32 %v2527, 1.0
  %v2529 = vrcp.pop %v2528
  %v2530 = vmul.f32 1.0, %v2529
  %v2531 = vtanh.pop %v2524
  %v2532 = vmul.f32 %v2530, %v2469
  %2534 = vrot.lane.b32.xlu0 %v2531, 64
  %v2535 = vpop.permute.xlu0 %2534
  %v2537 = vmul.f32 %v2530, %v2535
  %2539 = vrot.lane.b32.xlu0 %v2537, 32
  %v2540 = vpop.permute.xlu0 %2539
  %v2542 = vadd.f32 %v2532, %v2540
  %v2543 = vtanh.pop %v2542
  %2545 = vrot.lane.b32.xlu0 %v2543, 64
  %v2546 = vpop.permute.xlu0 %2545
  %v2548 = vmul.f32 %v2530, %v2546
  %v2549 = vld [vmem:[#allocation2 + $0x38] sm:$0xff]
  %v2550 = vpack.c.bf16 %v2548, %v2548
  %2552 = vrot.lane.b32.xlu0 %v2550, 32
  %v2553 = vpop.permute.xlu0 %2552
  %v2555 = vsel %vm308, %v2553, 0
  %2557 = vmatprep.subr.bf16.mxu0 0
  %2558 = vmatpush1.bf16.msra.mxu0 0
  %2559 = vmatprep.subr.bf16.mxu0 0
  %2560 = vmatpush1.bf16.msra.mxu0 0
  %2561 = vmatprep.subr.bf16.mxu0 0
  %2562 = vmatpush1.bf16.msra.mxu0 0
  %2563 = vmatprep.subr.bf16.mxu0 0
  %2564 = vmatpush1.bf16.msra.mxu0 0
  %2565 = vmatprep.subr.bf16.mxu0 0
  %2566 = vmatpush1.bf16.msra.mxu0 0
  %2567 = vmatprep.subr.bf16.mxu0 0
  %2568 = vmatpush1.bf16.msra.mxu0 0
  %2569 = vmatprep.subr.bf16.mxu0 0
  %2570 = vmatpush1.bf16.msra.mxu0 %v2041
  %2571 = vmatprep.subr.bf16.mxu0 0
  %2572 = vmatpush1.bf16.msra.mxu0 %v2040
  %2573 = vmatprep.subr.bf16.mxu0 0
  %2574 = vmatpush2.bf16.msra.mxu0 0
  %2575 = vmatprep.subr.bf16.mxu0 0
  %2576 = vmatpush2.bf16.msra.mxu0 0
  %2577 = vmatprep.subr.bf16.mxu0 0
  %2578 = vmatpush2.bf16.msra.mxu0 0
  %2579 = vmatprep.subr.bf16.mxu0 0
  %2580 = vmatpush2.bf16.msra.mxu0 0
  %2581 = vmatprep.subr.bf16.mxu0 0
  %2582 = vmatpush2.bf16.msra.mxu0 0
  %2583 = vmatprep.subr.bf16.mxu0 0
  %2584 = vmatpush2.bf16.msra.mxu0 0
  %2585 = vmatprep.subr.bf16.mxu0 0
  %2586 = vmatpush2.bf16.msra.mxu0 0
  %2587 = vmatprep.subr.bf16.mxu0 0
  %2588 = vmatpush2.bf16.msra.mxu0 0
  %2589 = vmatprep.mubr.bf16.mxu0 0
  %2590 = vmatmul.mubr.bf16.gmra.mxu0 %v2555
  %v2591 = vpop.f32.mrf.mxu0
  %v2592 = vadd.f32 0.0, %v2591
  %v2593 = vpop.f32.mrf.mxu0
  %v2594 = vpop.f32.mrf.mxu0
  %v2595 = vpop.f32.mrf.mxu0
  %2596 = vdwg.mxu0
  %v2597 = vadd.f32 %v2549, %v2592
  %v2598 = vxor.u32 %v2597, 2147483648
  %v2599 = vmul.f32 %v2598, 1.442695
  %v2600 = vpow.pop %v2599
  %v2601 = vadd.f32 %v2600, 1.0
  %v2602 = vrcp.pop %v2601
  %v2603 = vmul.f32 1.0, %v2602
  %v2604 = vtanh.pop %v2597
  %v2605 = vmul.f32 %v2603, %v2542
  %2607 = vrot.lane.b32.xlu0 %v2604, 64
  %v2608 = vpop.permute.xlu0 %2607
  %v2610 = vmul.f32 %v2603, %v2608
  %2612 = vrot.lane.b32.xlu0 %v2610, 32
  %v2613 = vpop.permute.xlu0 %2612
  %v2615 = vadd.f32 %v2605, %v2613
  %v2616 = vtanh.pop %v2615
  %2618 = vrot.lane.b32.xlu0 %v2616, 64
  %v2619 = vpop.permute.xlu0 %2618
  %v2621 = vmul.f32 %v2603, %v2619
  %v2622 = vld [vmem:[%s10] sm:$0xff]
  %v2623 = vld [vmem:[%s10 + $0x8] sm:$0xff]
  %v2624 = vld [vmem:[%s10 + $0x10] sm:$0xff]
  %v2625 = vld [vmem:[%s10 + $0x18] sm:$0xff]
  %v2626 = vld [vmem:[%s11] sm:$0x1]
  %v2628 = vlaneseq
  %v2629 = vshrl.u32 %v2628, 7
  %v2630 = vsub.s32 0, %v2629
  %v2631 = vrot.slane %v2626, %v2630
  %2634 = vrot.lane.b32.xlu0 %v2621, 32
  %v2635 = vpop.permute.xlu0 %2634
  %v2636 = vsel %vm308, %v2635, 0
  %2638 = vmatprep.subr.mxu0 0.0
  %2639 = vmatpush1.msra.mxu0 0.0
  %2640 = vmatprep.subr.mxu0 0.0
  %2641 = vmatpush1.msra.mxu0 0.0
  %2642 = vmatprep.subr.mxu0 0.0
  %2643 = vmatpush1.msra.mxu0 0.0
  %2644 = vmatprep.subr.mxu0 0.0
  %2645 = vmatpush1.msra.mxu0 0.0
  %2646 = vmatprep.subr.mxu0 0.0
  %2647 = vmatpush1.msra.mxu0 0.0
  %2648 = vmatprep.subr.mxu0 0.0
  %2649 = vmatpush1.msra.mxu0 0.0
  %2650 = vmatprep.subr.mxu0 0.0
  %2651 = vmatpush1.msra.mxu0 0.0
  %2652 = vmatprep.subr.mxu0 0.0
  %2653 = vmatpush1.msra.mxu0 0.0
  %2654 = vmatprep.subr.mxu0 0.0
  %2655 = vmatpush1.msra.mxu0 0.0
  %2656 = vmatprep.subr.mxu0 0.0
  %2657 = vmatpush1.msra.mxu0 0.0
  %2658 = vmatprep.subr.mxu0 0.0
  %2659 = vmatpush1.msra.mxu0 0.0
  %2660 = vmatprep.subr.mxu0 0.0
  %2661 = vmatpush1.msra.mxu0 0.0
  %2662 = vmatprep.subr.mxu0 0.0
  %2663 = vmatpush1.msra.mxu0 %v2625
  %2664 = vmatprep.subr.mxu0 0.0
  %2665 = vmatpush1.msra.mxu0 %v2624
  %2666 = vmatprep.subr.mxu0 0.0
  %2667 = vmatpush1.msra.mxu0 %v2623
  %2668 = vmatprep.subr.mxu0 0.0
  %2669 = vmatpush1.msra.mxu0 %v2622
  %2670 = vmatprep.subr.mxu0 0.0
  %2671 = vmatpush2.msra.mxu0 0.0
  %2672 = vmatprep.subr.mxu0 0.0
  %2673 = vmatpush2.msra.mxu0 0.0
  %2674 = vmatprep.subr.mxu0 0.0
  %2675 = vmatpush2.msra.mxu0 0.0
  %2676 = vmatprep.subr.mxu0 0.0
  %2677 = vmatpush2.msra.mxu0 0.0
  %2678 = vmatprep.subr.mxu0 0.0
  %2679 = vmatpush2.msra.mxu0 0.0
  %2680 = vmatprep.subr.mxu0 0.0
  %2681 = vmatpush2.msra.mxu0 0.0
  %2682 = vmatprep.subr.mxu0 0.0
  %2683 = vmatpush2.msra.mxu0 0.0
  %2684 = vmatprep.subr.mxu0 0.0
  %2685 = vmatpush2.msra.mxu0 0.0
  %2686 = vmatprep.subr.mxu0 0.0
  %2687 = vmatpush2.msra.mxu0 0.0
  %2688 = vmatprep.subr.mxu0 0.0
  %2689 = vmatpush2.msra.mxu0 0.0
  %2690 = vmatprep.subr.mxu0 0.0
  %2691 = vmatpush2.msra.mxu0 0.0
  %2692 = vmatprep.subr.mxu0 0.0
  %2693 = vmatpush2.msra.mxu0 0.0
  %2694 = vmatprep.subr.mxu0 0.0
  %2695 = vmatpush2.msra.mxu0 0.0
  %2696 = vmatprep.subr.mxu0 0.0
  %2697 = vmatpush2.msra.mxu0 0.0
  %2698 = vmatprep.subr.mxu0 0.0
  %2699 = vmatpush2.msra.mxu0 0.0
  %2700 = vmatprep.subr.mxu0 0.0
  %2701 = vmatpush2.msra.mxu0 0.0
  %2702 = vmatprep.mubr.f32.mxu0 0.0
  %2703 = vmatmul.mubr.f32.gmra.mxu0 %v2636
  %v2704 = vpop.f32.mrf.mxu0
  %v2705 = vadd.f32 %v2631, %v2704
  %v2706 = vpop.f32.mrf.mxu0
  %2707 = vdwg.mxu0
  %vm2708 = vcmask 31744
  %2709 = vst.msk [vmem:[%s14] sm:$0xff] %vm2708, %v2705
  // Predicated region
  $region58: #{news_classifier_elmo_forward.1} parent=0 // pred_check
    _
  $region59: #{news_classifier_elmo_forward.1} parent=0 // pred_check_branch
    %2711 = sbr.rel (0) target = $region61
  $region60: #{news_classifier_elmo_forward.1} parent=0 // pred_region
    _
  $region61: #{news_classifier_elmo_forward.1} parent=0 // pred_fallthru
    _
  // Predicated region
  $region62: #{news_classifier_elmo_forward.1} parent=0 // pred_check
    _
  $region63: #{news_classifier_elmo_forward.1} parent=0 // pred_check_branch
    %2713 = sbr.rel (0) target = $region65
  $region64: #{news_classifier_elmo_forward.1} parent=0 // pred_region
    _
  $region65: #{news_classifier_elmo_forward.1} parent=0 // pred_fallthru
    _

</llo_original>
